<compile_context>
chip_gen: v7x
topology: tpu7x:2x2x1
jax: 0.10.0
libtpu: 0.0.40
codegen_flags: <defaults>
</compile_context>

<pallas_src>
from functools import partial

import numpy as np
import jax
import jax.numpy as jnp
from jax import lax
from jax.experimental import pallas as pl
from jax.experimental.pallas import tpu as pltpu

_DFT_PREC = lax.Precision.HIGH     # bf16x3 passes; |DFT factors| <= 1 keeps ~1e-5 error


# ----------------------------- small helpers --------------------------------

def _vmem_limit_bytes():
    """Generation-aware VMEM budget (v7x: 64 MiB physical, v5e/v6e: 128 MiB)."""
    try:
        cap = pltpu.get_tpu_info().vmem_capacity_bytes
    except Exception:
        cap = 64 * 1024 * 1024
    return int(max(32 * 1024 * 1024, min(cap * 3 // 4, 100 * 1024 * 1024)))


def _pick_block(n, max_size, align=1):
    """Largest divisor of n that is <= max_size and (a multiple of align or == n)."""
    divs = [d for d in range(1, n + 1) if n % d == 0 and (d % align == 0 or d == n)]
    fits = [d for d in divs if d <= max_size]
    return max(fits) if fits else min(divs)


def _gelu(v, exact):
    if exact:          # torch.nn.functional.gelu default (erf based)
        return 0.5 * v * (1.0 + lax.erf(v * 0.7071067811865476))
    c = 0.7978845608028654   # tanh approximation: transcendental goes to the EUP slot
    return 0.5 * v * (1.0 + jnp.tanh(c * (v + 0.044715 * v * v * v)))


def _erf_supported():
    """Explicit feature detection for erf lowering (not exception-driven at run)."""
    def k(x_ref, o_ref):
        o_ref[...] = lax.erf(x_ref[...])
    try:
        f = pl.pallas_call(k, out_shape=jax.ShapeDtypeStruct((8, 128), jnp.float32))
        jax.jit(f).lower(jax.ShapeDtypeStruct((8, 128), jnp.float32)).compile()
        return True
    except Exception:
        return False


# ------------------------------- kernels ------------------------------------

def _spectral_mix_kernel(x_ref, wr_ref, wi_ref, o_ref):
    """Per-mode complex channel mixing; real/imag weights kept separate (pure VPU).

    x_ref : (B, Vb, 2*Cin, Mt)   rows [xr_0..xr_{Cin-1}, xi_0..xi_{Cin-1}]
    wr/wi : (Vb, Cin, Cout, Mt)
    o_ref : (B, Vb, 2*Cout, Mt)  rows [or..., oi...]
        or[b,v,o,m] = sum_i xr*wr - xi*wi ;   oi[b,v,o,m] = sum_i xr*wi + xi*wr
    """
    nb, vb, _, mt = x_ref.shape
    cin, co = wr_ref.shape[1], wr_ref.shape[2]
    for b in range(nb):
        for v in range(vb):
            acc_r = jnp.zeros((co, mt), jnp.float32)
            acc_i = jnp.zeros((co, mt), jnp.float32)
            for i in range(cin):
                # one explicit sublane broadcast per row, reused by all four FMAs
                xr = jnp.broadcast_to(x_ref[b, v, i, :], (co, mt))
                xi = jnp.broadcast_to(x_ref[b, v, cin + i, :], (co, mt))
                wr = wr_ref[v, i]
                wi = wi_ref[v, i]
                acc_r = acc_r + xr * wr - xi * wi
                acc_i = acc_i + xr * wi + xi * wr
            o_ref[b, v, :co, :] = acc_r
            o_ref[b, v, co:, :] = acc_i


def _make_conv_spec_gelu_kernel(exact_gelu):
    def kernel(w_ref, b_ref, gc_ref, gs_ref, x_ref, zr_ref, zi_ref, o_ref):
        """Fused: inverse-DFT lane expansion (MXU) + 1x1x1 conv + add + GELU.

        w_ref : (C, C) SMEM       b_ref : (C,) SMEM
        gc/gs : (S, HW) VMEM      block-diagonal kron(I_H, Cw / Sw), S = H*mw
        x_ref : (nb, C, T, HW)    raw torch-reshape layout (HW = 256 lanes, dense)
        zr/zi : (nb, C*T, S)      partial inverse (ifft over t,h) of the spectrum
        o_ref : (nb, C, T, HW)
        """
        nb, C, T, HW = x_ref.shape

        def per_sample(n, carry):
            # spectral field for sample n: (C*T, S) @ (S, HW) on the MXU
            spec = (jnp.dot(zr_ref[n], gc_ref[...],
                            preferred_element_type=jnp.float32) +
                    jnp.dot(zi_ref[n], gs_ref[...],
                            preferred_element_type=jnp.float32))
            xs = [x_ref[n, i] for i in range(C)]       # each (T, HW); loaded once
            for o in range(C):
                acc = spec[o * T:(o + 1) * T, :] + b_ref[o]
                for i in range(C):
                    acc = acc + w_ref[o, i] * xs[i]
                o_ref[n, o] = _gelu(acc, exact_gelu).astype(o_ref.dtype)
            return carry

        lax.fori_loop(0, nb, per_sample, 0, unroll=bool(nb <= 8))
    return kernel


# --------------------------- pallas_call wrappers ---------------------------

def spectral_mix(x_ri, wr, wi):
    """x_ri (B,V,2Cin,M) x wr/wi (V,Cin,Cout,M) -> (B,V,2Cout,M) stacked re/im."""
    B, V, C2, M = x_ri.shape
    Cin, Co = wr.shape[1], wr.shape[2]
    budget = _vmem_limit_bytes()
    per_vm = 4 * (B * C2 + 2 * Cin * Co + 2 * B * Co)     # bytes per (v, mode)
    target = budget // 4                                  # headroom for double buffering
    vb = _pick_block(V, max(1, target // max(1, per_vm * M * 2)))
    mt = _pick_block(M, max(1, target // max(1, per_vm * vb * 2)), align=128)
    grid = (V // vb, M // mt)   # collapses to (1, 1) at small sizes (one DMA, one step)
    return pl.pallas_call(
        _spectral_mix_kernel,
        grid=grid,
        in_specs=[
            pl.BlockSpec((B, vb, C2, mt), lambda v, m: (0, v, 0, m)),
            pl.BlockSpec((vb, Cin, Co, mt), lambda v, m: (v, 0, 0, m)),
            pl.BlockSpec((vb, Cin, Co, mt), lambda v, m: (v, 0, 0, m)),
        ],
        out_specs=pl.BlockSpec((B, vb, 2 * Co, mt), lambda v, m: (0, v, 0, m)),
        out_shape=jax.ShapeDtypeStruct((B, V, 2 * Co, M), jnp.float32),
        compiler_params=pltpu.CompilerParams(
            dimension_semantics=("parallel", "parallel"),
            vmem_limit_bytes=budget),
    )(x_ri, wr, wi)


def conv_spec_gelu(x4, zr3, zi3, gc, gs, w, b, exact_gelu):
    """gelu(inverse_dft_w(z) + 1x1x1 conv(x) + bias), fused, one HBM pass."""
    BV, C, T, HW = x4.shape
    S = zr3.shape[2]
    budget = _vmem_limit_bytes()
    # x + zr + zi + out blocks, double buffered, target ~1/3 of the VMEM limit
    per_n = 4 * C * T * (2 * HW + 2 * S) * 2
    nb = _pick_block(BV, max(1, (budget // 3) // per_n))
    if nb == BV and BV > 1 and BV % 2 == 0:
        nb = _pick_block(BV, BV // 2)   # >= 2 grid steps so both v7x cores get work
    grid = (BV // nb,)
    dspec = pl.BlockSpec((nb, C, T, HW), lambda n: (n, 0, 0, 0))
    zspec = pl.BlockSpec((nb, C * T, S), lambda n: (n, 0, 0))
    gspec = pl.BlockSpec((S, HW), lambda n: (0, 0))     # block index constant: no re-DMA
    smem = pl.BlockSpec(memory_space=pltpu.MemorySpace.SMEM)
    return pl.pallas_call(
        _make_conv_spec_gelu_kernel(exact_gelu),
        grid=grid,
        in_specs=[smem, smem, gspec, gspec, dspec, zspec, zspec],
        out_specs=dspec,
        out_shape=jax.ShapeDtypeStruct((BV, C, T, HW), jnp.float32),
        compiler_params=pltpu.CompilerParams(
            dimension_semantics=("parallel",),
            vmem_limit_bytes=budget),
    )(w, b, gc, gs, x4, zr3, zi3)


# --------------------- truncated DFT factors (no zero-filled spectrum) -------

def _dft_factors(T, H, W, mt, mh, mw):
    assert 2 * mt <= T and 2 * mh <= H and mw <= W // 2 + 1, \
        "modes must satisfy 2*mt<=T, 2*mh<=H, mw<=W//2+1"
    kt = np.concatenate([np.arange(mt), np.arange(T - mt, T)])
    kh = np.concatenate([np.arange(mh), np.arange(H - mh, H)])
    kw = np.arange(mw)
    t, h, w = np.arange(T), np.arange(H), np.arange(W)
    # forward: fused (H*W, 2mh*mw) spatial factor (K = H*W on the MXU) + (T, 2mt)
    Eh = np.exp(-2j * np.pi * np.outer(h, kh) / H)
    Ew = np.exp(-2j * np.pi * np.outer(w, kw) / W)
    Ehw = (Eh[:, None, :, None] * Ew[None, :, None, :]).reshape(H * W, 2 * mh * mw)
    Et = np.exp(-2j * np.pi * np.outer(t, kt) / T).astype(np.complex64)
    # inverse: ifft factors along t, h; real irfft along w as cos/sin matrices
    Dt = (np.exp(2j * np.pi * np.outer(kt, t) / T) / T).astype(np.complex64)
    Dh = (np.exp(2j * np.pi * np.outer(kh, h) / H) / H).astype(np.complex64)
    alpha = np.where((kw == 0) | (2 * kw == W), 1.0, 2.0)
    ang = 2.0 * np.pi * np.outer(kw, w) / W
    Cw = (alpha[:, None] * np.cos(ang) / W).astype(np.float32)    # (mw, W)
    Sw = (-alpha[:, None] * np.sin(ang) / W).astype(np.float32)
    # block-diagonal lane-expansion matrices consumed inside the fused conv kernel
    Gc = np.kron(np.eye(H, dtype=np.float32), Cw).astype(np.float32)   # (H*mw, H*W)
    Gs = np.kron(np.eye(H, dtype=np.float32), Sw).astype(np.float32)
    out = dict(Ehw_r=np.real(Ehw).astype(np.float32),
               Ehw_i=np.imag(Ehw).astype(np.float32),
               Et=Et, Dt=Dt, Dh=Dh, Gc=Gc, Gs=Gs)
    return {k: jnp.asarray(v) for k, v in out.items()}


def _forward_modes(x, f):
    """(B,C,T,V,H,W) real -> kept-mode coefficients stacked re/im: (B,V,2C,M)."""
    B, C, T, V, H, W = x.shape
    xf = x.reshape(B, C, T, V, H * W)
    # fused (h, w) factor: K = H*W contraction in real arithmetic on the full field
    a_r = jnp.einsum('bctvl,lp->bvctp', xf, f["Ehw_r"], precision=_DFT_PREC)
    a_i = jnp.einsum('bctvl,lp->bvctp', xf, f["Ehw_i"], precision=_DFT_PREC)
    s = jnp.einsum('bvctp,tj->bvcjp', lax.complex(a_r, a_i), f["Et"],
                   precision=_DFT_PREC)
    M = s.shape[3] * s.shape[4]
    sel = s.reshape(B, V, C, M)
    return jnp.concatenate([jnp.real(sel), jnp.imag(sel)], axis=2)   # (B, V, 2C, M)


def _inverse_to_z(o_ri, shape, modes, f):
    """Kept-mode output (B,V,2Co,M) -> partial inverse over (t,h): (B,Co,T,V,H,mw).

    The remaining w-axis inverse transform is fused into the conv kernel,
    killing the full-field x_spec HBM round trip.
    """
    B, C, T, V, H, W = shape
    mt, mh, mw = modes
    Co = o_ri.shape[2] // 2
    P = 2 * mh * mw
    oc = lax.complex(o_ri[:, :, :Co, :], o_ri[:, :, Co:, :]).reshape(B, V, Co, 2 * mt, P)
    z1 = jnp.einsum('bvcjp,jt->bvctp', oc, f["Dt"], precision=_DFT_PREC)
    z1 = z1.reshape(B, V, Co, T, 2 * mh, mw)
    # output directly in 'bctvhq' order so the raw reshape below is a reinterpretation
    z2 = jnp.einsum('bvctkq,kh->bctvhq', z1, f["Dh"], precision=_DFT_PREC)
    return jnp.real(z2), jnp.imag(z2)


# ------------------------------ forward --------------------------------------

@partial(jax.jit, static_argnames=("modes", "exact_gelu"))
def fno_block_forward(x, params, modes, exact_gelu=True):
    """FNOBlocks.forward(x, index=0, conv_type='spatio')."""
    B, C, T, V, H, W = x.shape
    mw = modes[2]
    f = _dft_factors(T, H, W, *modes)

    # ---- spectral path: truncated forward DFT (XLA/MXU) + per-mode mixing (Pallas)
    sel_ri = _forward_modes(x, f)                                       # (B,V,2C,M)
    o_ri = spectral_mix(sel_ri, params["spec_wr"], params["spec_wi"])   # (B,V,2C,M)
    zr, zi = _inverse_to_z(o_ri, (B, C, T, V, H, W), modes, f)          # (B,C,T,V,H,mw)

    # ---- fused (inverse-DFT over w) + 1x1x1 conv + add + GELU (Pallas)
    # torch: x.reshape(b*v, c, t, h, w) is a raw row-major reinterpretation (free);
    # applying the same bijection to z keeps the fused add exact.
    BV, S = B * V, H * mw
    x4 = x.reshape(BV, C, T, H * W)
    zr3 = zr.reshape(BV, C * T, S)
    zi3 = zi.reshape(BV, C * T, S)
    y4 = conv_spec_gelu(x4, zr3, zi3, f["Gc"], f["Gs"],
                        params["conv_w"], params["conv_b"], exact_gelu)
    return y4.reshape(B, C, T, V, H, W)


# ------------------------ pure-JAX reference (FFT based) ---------------------

def _select_corner_modes(x_ft, mt, mh, mw):
    def take(a, axis, m):
        lo = lax.slice_in_dim(a, 0, m, axis=axis)
        hi = lax.slice_in_dim(a, a.shape[axis] - m, a.shape[axis], axis=axis)
        return jnp.concatenate([lo, hi], axis=axis)
    sel = take(x_ft, 2, mt)
    sel = take(sel, 4, mh)
    sel = lax.slice_in_dim(sel, 0, mw, axis=5)
    return sel


def _scatter_corner_modes(sel, full_shape, mt, mh, mw):
    B, C, T, V, H, Wr = full_shape
    out = jnp.zeros(full_shape, sel.dtype)
    t_lo, t_hi = sel[:, :, :mt], sel[:, :, mt:]
    for t_part, t0 in ((t_lo, 0), (t_hi, T - mt)):
        h_lo = t_part[:, :, :, :, :mh]
        h_hi = t_part[:, :, :, :, mh:]
        out = out.at[:, :, t0:t0 + mt, :, 0:mh, 0:mw].set(h_lo)
        out = out.at[:, :, t0:t0 + mt, :, H - mh:H, 0:mw].set(h_hi)
    return out


def reference_forward(x, params, modes, exact_gelu=True):
    B, C, T, V, H, W = x.shape
    mt, mh, mw = modes
    hp = lax.Precision.HIGHEST
    x_ft = jnp.fft.rfftn(x, axes=(2, 4, 5))
    sel = _select_corner_modes(x_ft, mt, mh, mw)
    M = (2 * mt) * (2 * mh) * mw
    sel = jnp.transpose(sel, (0, 3, 1, 2, 4, 5)).reshape(B, V, C, M)
    wc = params["spec_wr"] + 1j * params["spec_wi"]
    out = jnp.einsum("bvim,viom->bvom", sel, wc, precision=hp)
    out = out.reshape(B, V, C, 2 * mt, 2 * mh, mw)
    out = jnp.transpose(out, (0, 2, 3, 1, 4, 5))
    out_ft = _scatter_corner_modes(out, (B, C, T, V, H, x_ft.shape[-1]), mt, mh, mw)
    x_spec = jnp.fft.irfftn(out_ft, s=(T, H, W), axes=(2, 4, 5)).astype(x.dtype)

    x5 = x.reshape(B * V, C, T, H, W)
    conv = jnp.einsum("oi,nithw->nothw", params["conv_w"], x5, precision=hp)
    conv = conv + params["conv_b"][None, :, None, None, None]
    conv = conv.reshape(B, C, T, V, H, W)
    y = x_spec + conv
    return jax.nn.gelu(y, approximate=not exact_gelu)


# -------------------------------- main ---------------------------------------

if __name__ == "__main__":
    key = jax.random.PRNGKey(0)
    B, C, T, V, H, W = 2, 4, 8, 3, 16, 16      # in_channels == out_channels == C
    MT, MH, MW = 4, 4, 4                        # modes per FFT dim (n_dim = 3)
    M = (2 * MT) * (2 * MH) * MW

    k1, k2, k3, k4, k5 = jax.random.split(key, 5)
    x = jax.random.normal(k1, (B, C, T, V, H, W), jnp.float32)
    scale = 1.0 / (C * C)
    params = {
        "spec_wr": scale * jax.random.normal(k2, (V, C, C, M), jnp.float32),
        "spec_wi": scale * jax.random.normal(k3, (V, C, C, M), jnp.float32),
        "conv_w": (1.0 / C) * jax.random.normal(k4, (C, C), jnp.float32),
        "conv_b": 0.1 * jax.random.normal(k5, (C,), jnp.float32),
    }

    # torch F.gelu default is erf-based; feature-detect its Mosaic lowering once and
    # use the same flavor in both the kernel and the reference (explicit, not
    # exception-driven).
    exact = _erf_supported()

    y = jax.block_until_ready(
        fno_block_forward(x, params, (MT, MH, MW), exact_gelu=exact))
    y_ref = jax.block_until_ready(
        reference_forward(x, params, (MT, MH, MW), exact_gelu=exact))

    assert y.shape == (B, C, T, V, H, W), y.shape
    max_err = float(jnp.max(jnp.abs(y - y_ref)))
    assert jnp.allclose(y, y_ref, atol=1e-2, rtol=1e-2), max_err
    print("KERNEL_OK")
</pallas_src>

<mosaic_0001>
module attributes {stable_mosaic.version = 11 : i64} {
  func.func @_spectral_mix_kernel(%arg0: i32, %arg1: i32, %arg2: memref<2x3x8x256xf32, #tpu.memory_space<vmem>>, %arg3: memref<3x4x4x256xf32, #tpu.memory_space<vmem>>, %arg4: memref<3x4x4x256xf32, #tpu.memory_space<vmem>>, %arg5: memref<2x3x8x256xf32, #tpu.memory_space<vmem>>) attributes {dimension_semantics = [#tpu.dimension_semantics<parallel>, #tpu.dimension_semantics<parallel>], iteration_bounds = array<i64: 1, 1>, scalar_prefetch = 0 : i64, scratch_operands = 0 : i64, tpu.core_type = #tpu.core_type<tc>, window_params = [{transform_indices = @transform_0, window_bounds = array<i64: 2, 3, 8, 256>}, {transform_indices = @transform_1, window_bounds = array<i64: 3, 4, 4, 256>}, {transform_indices = @transform_2, window_bounds = array<i64: 3, 4, 4, 256>}, {transform_indices = @transform_3, window_bounds = array<i64: 2, 3, 8, 256>}]} {
    %cst = arith.constant 0.000000e+00 : f32
    %0 = vector.broadcast %cst : f32 to vector<4x256xf32>
    %cst_0 = arith.constant 0.000000e+00 : f32
    %1 = vector.broadcast %cst_0 : f32 to vector<4x256xf32>
    %c0 = arith.constant 0 : index
    %c0_1 = arith.constant 0 : index
    %c0_2 = arith.constant 0 : index
    %c0_3 = arith.constant 0 : index
    %2 = vector.load %arg2[%c0, %c0_1, %c0_2, %c0_3] : memref<2x3x8x256xf32, #tpu.memory_space<vmem>>, vector<1x1x1x256xf32>
    %3 = vector.shape_cast %2 : vector<1x1x1x256xf32> to vector<256xf32>
    %4 = vector.shape_cast %3 : vector<256xf32> to vector<1x256xf32>
    %5 = vector.broadcast %4 : vector<1x256xf32> to vector<4x256xf32>
    %c0_4 = arith.constant 0 : index
    %c0_5 = arith.constant 0 : index
    %c4 = arith.constant 4 : index
    %c0_6 = arith.constant 0 : index
    %6 = vector.load %arg2[%c0_4, %c0_5, %c4, %c0_6] : memref<2x3x8x256xf32, #tpu.memory_space<vmem>>, vector<1x1x1x256xf32>
    %7 = vector.shape_cast %6 : vector<1x1x1x256xf32> to vector<256xf32>
    %8 = vector.shape_cast %7 : vector<256xf32> to vector<1x256xf32>
    %9 = vector.broadcast %8 : vector<1x256xf32> to vector<4x256xf32>
    %c0_7 = arith.constant 0 : index
    %c0_8 = arith.constant 0 : index
    %c0_9 = arith.constant 0 : index
    %c0_10 = arith.constant 0 : index
    %10 = vector.load %arg3[%c0_7, %c0_8, %c0_9, %c0_10] : memref<3x4x4x256xf32, #tpu.memory_space<vmem>>, vector<1x1x4x256xf32>
    %11 = vector.shape_cast %10 : vector<1x1x4x256xf32> to vector<4x256xf32>
    %c0_11 = arith.constant 0 : index
    %c0_12 = arith.constant 0 : index
    %c0_13 = arith.constant 0 : index
    %c0_14 = arith.constant 0 : index
    %12 = vector.load %arg4[%c0_11, %c0_12, %c0_13, %c0_14] : memref<3x4x4x256xf32, #tpu.memory_space<vmem>>, vector<1x1x4x256xf32>
    %13 = vector.shape_cast %12 : vector<1x1x4x256xf32> to vector<4x256xf32>
    %14 = arith.mulf %5, %11 : vector<4x256xf32>
    %15 = arith.addf %0, %14 : vector<4x256xf32>
    %16 = arith.mulf %9, %13 : vector<4x256xf32>
    %17 = arith.subf %15, %16 : vector<4x256xf32>
    %18 = arith.mulf %5, %13 : vector<4x256xf32>
    %19 = arith.addf %1, %18 : vector<4x256xf32>
    %20 = arith.mulf %9, %11 : vector<4x256xf32>
    %21 = arith.addf %19, %20 : vector<4x256xf32>
    %c0_15 = arith.constant 0 : index
    %c0_16 = arith.constant 0 : index
    %c1 = arith.constant 1 : index
    %c0_17 = arith.constant 0 : index
    %22 = vector.load %arg2[%c0_15, %c0_16, %c1, %c0_17] : memref<2x3x8x256xf32, #tpu.memory_space<vmem>>, vector<1x1x1x256xf32>
    %23 = vector.shape_cast %22 : vector<1x1x1x256xf32> to vector<256xf32>
    %24 = vector.shape_cast %23 : vector<256xf32> to vector<1x256xf32>
    %25 = vector.broadcast %24 : vector<1x256xf32> to vector<4x256xf32>
    %c0_18 = arith.constant 0 : index
    %c0_19 = arith.constant 0 : index
    %c5 = arith.constant 5 : index
    %c0_20 = arith.constant 0 : index
    %26 = vector.load %arg2[%c0_18, %c0_19, %c5, %c0_20] : memref<2x3x8x256xf32, #tpu.memory_space<vmem>>, vector<1x1x1x256xf32>
    %27 = vector.shape_cast %26 : vector<1x1x1x256xf32> to vector<256xf32>
    %28 = vector.shape_cast %27 : vector<256xf32> to vector<1x256xf32>
    %29 = vector.broadcast %28 : vector<1x256xf32> to vector<4x256xf32>
    %c0_21 = arith.constant 0 : index
    %c1_22 = arith.constant 1 : index
    %c0_23 = arith.constant 0 : index
    %c0_24 = arith.constant 0 : index
    %30 = vector.load %arg3[%c0_21, %c1_22, %c0_23, %c0_24] : memref<3x4x4x256xf32, #tpu.memory_space<vmem>>, vector<1x1x4x256xf32>
    %31 = vector.shape_cast %30 : vector<1x1x4x256xf32> to vector<4x256xf32>
    %c0_25 = arith.constant 0 : index
    %c1_26 = arith.constant 1 : index
    %c0_27 = arith.constant 0 : index
    %c0_28 = arith.constant 0 : index
    %32 = vector.load %arg4[%c0_25, %c1_26, %c0_27, %c0_28] : memref<3x4x4x256xf32, #tpu.memory_space<vmem>>, vector<1x1x4x256xf32>
    %33 = vector.shape_cast %32 : vector<1x1x4x256xf32> to vector<4x256xf32>
    %34 = arith.mulf %25, %31 : vector<4x256xf32>
    %35 = arith.addf %17, %34 : vector<4x256xf32>
    %36 = arith.mulf %29, %33 : vector<4x256xf32>
    %37 = arith.subf %35, %36 : vector<4x256xf32>
    %38 = arith.mulf %25, %33 : vector<4x256xf32>
    %39 = arith.addf %21, %38 : vector<4x256xf32>
    %40 = arith.mulf %29, %31 : vector<4x256xf32>
    %41 = arith.addf %39, %40 : vector<4x256xf32>
    %c0_29 = arith.constant 0 : index
    %c0_30 = arith.constant 0 : index
    %c2 = arith.constant 2 : index
    %c0_31 = arith.constant 0 : index
    %42 = vector.load %arg2[%c0_29, %c0_30, %c2, %c0_31] : memref<2x3x8x256xf32, #tpu.memory_space<vmem>>, vector<1x1x1x256xf32>
    %43 = vector.shape_cast %42 : vector<1x1x1x256xf32> to vector<256xf32>
    %44 = vector.shape_cast %43 : vector<256xf32> to vector<1x256xf32>
    %45 = vector.broadcast %44 : vector<1x256xf32> to vector<4x256xf32>
    %c0_32 = arith.constant 0 : index
    %c0_33 = arith.constant 0 : index
    %c6 = arith.constant 6 : index
    %c0_34 = arith.constant 0 : index
    %46 = vector.load %arg2[%c0_32, %c0_33, %c6, %c0_34] : memref<2x3x8x256xf32, #tpu.memory_space<vmem>>, vector<1x1x1x256xf32>
    %47 = vector.shape_cast %46 : vector<1x1x1x256xf32> to vector<256xf32>
    %48 = vector.shape_cast %47 : vector<256xf32> to vector<1x256xf32>
    %49 = vector.broadcast %48 : vector<1x256xf32> to vector<4x256xf32>
    %c0_35 = arith.constant 0 : index
    %c2_36 = arith.constant 2 : index
    %c0_37 = arith.constant 0 : index
    %c0_38 = arith.constant 0 : index
    %50 = vector.load %arg3[%c0_35, %c2_36, %c0_37, %c0_38] : memref<3x4x4x256xf32, #tpu.memory_space<vmem>>, vector<1x1x4x256xf32>
    %51 = vector.shape_cast %50 : vector<1x1x4x256xf32> to vector<4x256xf32>
    %c0_39 = arith.constant 0 : index
    %c2_40 = arith.constant 2 : index
    %c0_41 = arith.constant 0 : index
    %c0_42 = arith.constant 0 : index
    %52 = vector.load %arg4[%c0_39, %c2_40, %c0_41, %c0_42] : memref<3x4x4x256xf32, #tpu.memory_space<vmem>>, vector<1x1x4x256xf32>
    %53 = vector.shape_cast %52 : vector<1x1x4x256xf32> to vector<4x256xf32>
    %54 = arith.mulf %45, %51 : vector<4x256xf32>
    %55 = arith.addf %37, %54 : vector<4x256xf32>
    %56 = arith.mulf %49, %53 : vector<4x256xf32>
    %57 = arith.subf %55, %56 : vector<4x256xf32>
    %58 = arith.mulf %45, %53 : vector<4x256xf32>
    %59 = arith.addf %41, %58 : vector<4x256xf32>
    %60 = arith.mulf %49, %51 : vector<4x256xf32>
    %61 = arith.addf %59, %60 : vector<4x256xf32>
    %c0_43 = arith.constant 0 : index
    %c0_44 = arith.constant 0 : index
    %c3 = arith.constant 3 : index
    %c0_45 = arith.constant 0 : index
    %62 = vector.load %arg2[%c0_43, %c0_44, %c3, %c0_45] : memref<2x3x8x256xf32, #tpu.memory_space<vmem>>, vector<1x1x1x256xf32>
    %63 = vector.shape_cast %62 : vector<1x1x1x256xf32> to vector<256xf32>
    %64 = vector.shape_cast %63 : vector<256xf32> to vector<1x256xf32>
    %65 = vector.broadcast %64 : vector<1x256xf32> to vector<4x256xf32>
    %c0_46 = arith.constant 0 : index
    %c0_47 = arith.constant 0 : index
    %c7 = arith.constant 7 : index
    %c0_48 = arith.constant 0 : index
    %66 = vector.load %arg2[%c0_46, %c0_47, %c7, %c0_48] : memref<2x3x8x256xf32, #tpu.memory_space<vmem>>, vector<1x1x1x256xf32>
    %67 = vector.shape_cast %66 : vector<1x1x1x256xf32> to vector<256xf32>
    %68 = vector.shape_cast %67 : vector<256xf32> to vector<1x256xf32>
    %69 = vector.broadcast %68 : vector<1x256xf32> to vector<4x256xf32>
    %c0_49 = arith.constant 0 : index
    %c3_50 = arith.constant 3 : index
    %c0_51 = arith.constant 0 : index
    %c0_52 = arith.constant 0 : index
    %70 = vector.load %arg3[%c0_49, %c3_50, %c0_51, %c0_52] : memref<3x4x4x256xf32, #tpu.memory_space<vmem>>, vector<1x1x4x256xf32>
    %71 = vector.shape_cast %70 : vector<1x1x4x256xf32> to vector<4x256xf32>
    %c0_53 = arith.constant 0 : index
    %c3_54 = arith.constant 3 : index
    %c0_55 = arith.constant 0 : index
    %c0_56 = arith.constant 0 : index
    %72 = vector.load %arg4[%c0_53, %c3_54, %c0_55, %c0_56] : memref<3x4x4x256xf32, #tpu.memory_space<vmem>>, vector<1x1x4x256xf32>
    %73 = vector.shape_cast %72 : vector<1x1x4x256xf32> to vector<4x256xf32>
    %74 = arith.mulf %65, %71 : vector<4x256xf32>
    %75 = arith.addf %57, %74 : vector<4x256xf32>
    %76 = arith.mulf %69, %73 : vector<4x256xf32>
    %77 = arith.subf %75, %76 : vector<4x256xf32>
    %78 = arith.mulf %65, %73 : vector<4x256xf32>
    %79 = arith.addf %61, %78 : vector<4x256xf32>
    %80 = arith.mulf %69, %71 : vector<4x256xf32>
    %81 = arith.addf %79, %80 : vector<4x256xf32>
    %c0_57 = arith.constant 0 : index
    %c0_58 = arith.constant 0 : index
    %c0_59 = arith.constant 0 : index
    %c0_60 = arith.constant 0 : index
    %82 = vector.load %arg5[%c0_57, %c0_58, %c0_59, %c0_60] : memref<2x3x8x256xf32, #tpu.memory_space<vmem>>, vector<1x1x4x256xf32>
    %83 = vector.shape_cast %82 : vector<1x1x4x256xf32> to vector<4x256xf32>
    %84 = vector.shape_cast %77 : vector<4x256xf32> to vector<1x1x4x256xf32>
    tpu.vector_store %arg5[%c0_57, %c0_58, %c0_59, %c0_60], %84 {strides = array<i32>} : memref<2x3x8x256xf32, #tpu.memory_space<vmem>>, vector<1x1x4x256xf32>,
    %c0_61 = arith.constant 0 : index
    %c0_62 = arith.constant 0 : index
    %c4_63 = arith.constant 4 : index
    %c0_64 = arith.constant 0 : index
    %85 = vector.load %arg5[%c0_61, %c0_62, %c4_63, %c0_64] : memref<2x3x8x256xf32, #tpu.memory_space<vmem>>, vector<1x1x4x256xf32>
    %86 = vector.shape_cast %85 : vector<1x1x4x256xf32> to vector<4x256xf32>
    %87 = vector.shape_cast %81 : vector<4x256xf32> to vector<1x1x4x256xf32>
    tpu.vector_store %arg5[%c0_61, %c0_62, %c4_63, %c0_64], %87 {strides = array<i32>} : memref<2x3x8x256xf32, #tpu.memory_space<vmem>>, vector<1x1x4x256xf32>,
    %cst_65 = arith.constant 0.000000e+00 : f32
    %88 = vector.broadcast %cst_65 : f32 to vector<4x256xf32>
    %cst_66 = arith.constant 0.000000e+00 : f32
    %89 = vector.broadcast %cst_66 : f32 to vector<4x256xf32>
    %c0_67 = arith.constant 0 : index
    %c1_68 = arith.constant 1 : index
    %c0_69 = arith.constant 0 : index
    %c0_70 = arith.constant 0 : index
    %90 = vector.load %arg2[%c0_67, %c1_68, %c0_69, %c0_70] : memref<2x3x8x256xf32, #tpu.memory_space<vmem>>, vector<1x1x1x256xf32>
    %91 = vector.shape_cast %90 : vector<1x1x1x256xf32> to vector<256xf32>
    %92 = vector.shape_cast %91 : vector<256xf32> to vector<1x256xf32>
    %93 = vector.broadcast %92 : vector<1x256xf32> to vector<4x256xf32>
    %c0_71 = arith.constant 0 : index
    %c1_72 = arith.constant 1 : index
    %c4_73 = arith.constant 4 : index
    %c0_74 = arith.constant 0 : index
    %94 = vector.load %arg2[%c0_71, %c1_72, %c4_73, %c0_74] : memref<2x3x8x256xf32, #tpu.memory_space<vmem>>, vector<1x1x1x256xf32>
    %95 = vector.shape_cast %94 : vector<1x1x1x256xf32> to vector<256xf32>
    %96 = vector.shape_cast %95 : vector<256xf32> to vector<1x256xf32>
    %97 = vector.broadcast %96 : vector<1x256xf32> to vector<4x256xf32>
    %c1_75 = arith.constant 1 : index
    %c0_76 = arith.constant 0 : index
    %c0_77 = arith.constant 0 : index
    %c0_78 = arith.constant 0 : index
    %98 = vector.load %arg3[%c1_75, %c0_76, %c0_77, %c0_78] : memref<3x4x4x256xf32, #tpu.memory_space<vmem>>, vector<1x1x4x256xf32>
    %99 = vector.shape_cast %98 : vector<1x1x4x256xf32> to vector<4x256xf32>
    %c1_79 = arith.constant 1 : index
    %c0_80 = arith.constant 0 : index
    %c0_81 = arith.constant 0 : index
    %c0_82 = arith.constant 0 : index
    %100 = vector.load %arg4[%c1_79, %c0_80, %c0_81, %c0_82] : memref<3x4x4x256xf32, #tpu.memory_space<vmem>>, vector<1x1x4x256xf32>
    %101 = vector.shape_cast %100 : vector<1x1x4x256xf32> to vector<4x256xf32>
    %102 = arith.mulf %93, %99 : vector<4x256xf32>
    %103 = arith.addf %88, %102 : vector<4x256xf32>
    %104 = arith.mulf %97, %101 : vector<4x256xf32>
    %105 = arith.subf %103, %104 : vector<4x256xf32>
    %106 = arith.mulf %93, %101 : vector<4x256xf32>
    %107 = arith.addf %89, %106 : vector<4x256xf32>
    %108 = arith.mulf %97, %99 : vector<4x256xf32>
    %109 = arith.addf %107, %108 : vector<4x256xf32>
    %c0_83 = arith.constant 0 : index
    %c1_84 = arith.constant 1 : index
    %c1_85 = arith.constant 1 : index
    %c0_86 = arith.constant 0 : index
    %110 = vector.load %arg2[%c0_83, %c1_84, %c1_85, %c0_86] : memref<2x3x8x256xf32, #tpu.memory_space<vmem>>, vector<1x1x1x256xf32>
    %111 = vector.shape_cast %110 : vector<1x1x1x256xf32> to vector<256xf32>
    %112 = vector.shape_cast %111 : vector<256xf32> to vector<1x256xf32>
    %113 = vector.broadcast %112 : vector<1x256xf32> to vector<4x256xf32>
    %c0_87 = arith.constant 0 : index
    %c1_88 = arith.constant 1 : index
    %c5_89 = arith.constant 5 : index
    %c0_90 = arith.constant 0 : index
    %114 = vector.load %arg2[%c0_87, %c1_88, %c5_89, %c0_90] : memref<2x3x8x256xf32, #tpu.memory_space<vmem>>, vector<1x1x1x256xf32>
    %115 = vector.shape_cast %114 : vector<1x1x1x256xf32> to vector<256xf32>
    %116 = vector.shape_cast %115 : vector<256xf32> to vector<1x256xf32>
    %117 = vector.broadcast %116 : vector<1x256xf32> to vector<4x256xf32>
    %c1_91 = arith.constant 1 : index
    %c1_92 = arith.constant 1 : index
    %c0_93 = arith.constant 0 : index
    %c0_94 = arith.constant 0 : index
    %118 = vector.load %arg3[%c1_91, %c1_92, %c0_93, %c0_94] : memref<3x4x4x256xf32, #tpu.memory_space<vmem>>, vector<1x1x4x256xf32>
    %119 = vector.shape_cast %118 : vector<1x1x4x256xf32> to vector<4x256xf32>
    %c1_95 = arith.constant 1 : index
    %c1_96 = arith.constant 1 : index
    %c0_97 = arith.constant 0 : index
    %c0_98 = arith.constant 0 : index
    %120 = vector.load %arg4[%c1_95, %c1_96, %c0_97, %c0_98] : memref<3x4x4x256xf32, #tpu.memory_space<vmem>>, vector<1x1x4x256xf32>
    %121 = vector.shape_cast %120 : vector<1x1x4x256xf32> to vector<4x256xf32>
    %122 = arith.mulf %113, %119 : vector<4x256xf32>
    %123 = arith.addf %105, %122 : vector<4x256xf32>
    %124 = arith.mulf %117, %121 : vector<4x256xf32>
    %125 = arith.subf %123, %124 : vector<4x256xf32>
    %126 = arith.mulf %113, %121 : vector<4x256xf32>
    %127 = arith.addf %109, %126 : vector<4x256xf32>
    %128 = arith.mulf %117, %119 : vector<4x256xf32>
    %129 = arith.addf %127, %128 : vector<4x256xf32>
    %c0_99 = arith.constant 0 : index
    %c1_100 = arith.constant 1 : index
    %c2_101 = arith.constant 2 : index
    %c0_102 = arith.constant 0 : index
    %130 = vector.load %arg2[%c0_99, %c1_100, %c2_101, %c0_102] : memref<2x3x8x256xf32, #tpu.memory_space<vmem>>, vector<1x1x1x256xf32>
    %131 = vector.shape_cast %130 : vector<1x1x1x256xf32> to vector<256xf32>
    %132 = vector.shape_cast %131 : vector<256xf32> to vector<1x256xf32>
    %133 = vector.broadcast %132 : vector<1x256xf32> to vector<4x256xf32>
    %c0_103 = arith.constant 0 : index
    %c1_104 = arith.constant 1 : index
    %c6_105 = arith.constant 6 : index
    %c0_106 = arith.constant 0 : index
    %134 = vector.load %arg2[%c0_103, %c1_104, %c6_105, %c0_106] : memref<2x3x8x256xf32, #tpu.memory_space<vmem>>, vector<1x1x1x256xf32>
    %135 = vector.shape_cast %134 : vector<1x1x1x256xf32> to vector<256xf32>
    %136 = vector.shape_cast %135 : vector<256xf32> to vector<1x256xf32>
    %137 = vector.broadcast %136 : vector<1x256xf32> to vector<4x256xf32>
    %c1_107 = arith.constant 1 : index
    %c2_108 = arith.constant 2 : index
    %c0_109 = arith.constant 0 : index
    %c0_110 = arith.constant 0 : index
    %138 = vector.load %arg3[%c1_107, %c2_108, %c0_109, %c0_110] : memref<3x4x4x256xf32, #tpu.memory_space<vmem>>, vector<1x1x4x256xf32>
    %139 = vector.shape_cast %138 : vector<1x1x4x256xf32> to vector<4x256xf32>
    %c1_111 = arith.constant 1 : index
    %c2_112 = arith.constant 2 : index
    %c0_113 = arith.constant 0 : index
    %c0_114 = arith.constant 0 : index
    %140 = vector.load %arg4[%c1_111, %c2_112, %c0_113, %c0_114] : memref<3x4x4x256xf32, #tpu.memory_space<vmem>>, vector<1x1x4x256xf32>
    %141 = vector.shape_cast %140 : vector<1x1x4x256xf32> to vector<4x256xf32>
    %142 = arith.mulf %133, %139 : vector<4x256xf32>
    %143 = arith.addf %125, %142 : vector<4x256xf32>
    %144 = arith.mulf %137, %141 : vector<4x256xf32>
    %145 = arith.subf %143, %144 : vector<4x256xf32>
    %146 = arith.mulf %133, %141 : vector<4x256xf32>
    %147 = arith.addf %129, %146 : vector<4x256xf32>
    %148 = arith.mulf %137, %139 : vector<4x256xf32>
    %149 = arith.addf %147, %148 : vector<4x256xf32>
    %c0_115 = arith.constant 0 : index
    %c1_116 = arith.constant 1 : index
    %c3_117 = arith.constant 3 : index
    %c0_118 = arith.constant 0 : index
    %150 = vector.load %arg2[%c0_115, %c1_116, %c3_117, %c0_118] : memref<2x3x8x256xf32, #tpu.memory_space<vmem>>, vector<1x1x1x256xf32>
    %151 = vector.shape_cast %150 : vector<1x1x1x256xf32> to vector<256xf32>
    %152 = vector.shape_cast %151 : vector<256xf32> to vector<1x256xf32>
    %153 = vector.broadcast %152 : vector<1x256xf32> to vector<4x256xf32>
    %c0_119 = arith.constant 0 : index
    %c1_120 = arith.constant 1 : index
    %c7_121 = arith.constant 7 : index
    %c0_122 = arith.constant 0 : index
    %154 = vector.load %arg2[%c0_119, %c1_120, %c7_121, %c0_122] : memref<2x3x8x256xf32, #tpu.memory_space<vmem>>, vector<1x1x1x256xf32>
    %155 = vector.shape_cast %154 : vector<1x1x1x256xf32> to vector<256xf32>
    %156 = vector.shape_cast %155 : vector<256xf32> to vector<1x256xf32>
    %157 = vector.broadcast %156 : vector<1x256xf32> to vector<4x256xf32>
    %c1_123 = arith.constant 1 : index
    %c3_124 = arith.constant 3 : index
    %c0_125 = arith.constant 0 : index
    %c0_126 = arith.constant 0 : index
    %158 = vector.load %arg3[%c1_123, %c3_124, %c0_125, %c0_126] : memref<3x4x4x256xf32, #tpu.memory_space<vmem>>, vector<1x1x4x256xf32>
    %159 = vector.shape_cast %158 : vector<1x1x4x256xf32> to vector<4x256xf32>
    %c1_127 = arith.constant 1 : index
    %c3_128 = arith.constant 3 : index
    %c0_129 = arith.constant 0 : index
    %c0_130 = arith.constant 0 : index
    %160 = vector.load %arg4[%c1_127, %c3_128, %c0_129, %c0_130] : memref<3x4x4x256xf32, #tpu.memory_space<vmem>>, vector<1x1x4x256xf32>
    %161 = vector.shape_cast %160 : vector<1x1x4x256xf32> to vector<4x256xf32>
    %162 = arith.mulf %153, %159 : vector<4x256xf32>
    %163 = arith.addf %145, %162 : vector<4x256xf32>
    %164 = arith.mulf %157, %161 : vector<4x256xf32>
    %165 = arith.subf %163, %164 : vector<4x256xf32>
    %166 = arith.mulf %153, %161 : vector<4x256xf32>
    %167 = arith.addf %149, %166 : vector<4x256xf32>
    %168 = arith.mulf %157, %159 : vector<4x256xf32>
    %169 = arith.addf %167, %168 : vector<4x256xf32>
    %c0_131 = arith.constant 0 : index
    %c1_132 = arith.constant 1 : index
    %c0_133 = arith.constant 0 : index
    %c0_134 = arith.constant 0 : index
    %170 = vector.load %arg5[%c0_131, %c1_132, %c0_133, %c0_134] : memref<2x3x8x256xf32, #tpu.memory_space<vmem>>, vector<1x1x4x256xf32>
    %171 = vector.shape_cast %170 : vector<1x1x4x256xf32> to vector<4x256xf32>
    %172 = vector.shape_cast %165 : vector<4x256xf32> to vector<1x1x4x256xf32>
    tpu.vector_store %arg5[%c0_131, %c1_132, %c0_133, %c0_134], %172 {strides = array<i32>} : memref<2x3x8x256xf32, #tpu.memory_space<vmem>>, vector<1x1x4x256xf32>,
    %c0_135 = arith.constant 0 : index
    %c1_136 = arith.constant 1 : index
    %c4_137 = arith.constant 4 : index
    %c0_138 = arith.constant 0 : index
    %173 = vector.load %arg5[%c0_135, %c1_136, %c4_137, %c0_138] : memref<2x3x8x256xf32, #tpu.memory_space<vmem>>, vector<1x1x4x256xf32>
    %174 = vector.shape_cast %173 : vector<1x1x4x256xf32> to vector<4x256xf32>
    %175 = vector.shape_cast %169 : vector<4x256xf32> to vector<1x1x4x256xf32>
    tpu.vector_store %arg5[%c0_135, %c1_136, %c4_137, %c0_138], %175 {strides = array<i32>} : memref<2x3x8x256xf32, #tpu.memory_space<vmem>>, vector<1x1x4x256xf32>,
    %cst_139 = arith.constant 0.000000e+00 : f32
    %176 = vector.broadcast %cst_139 : f32 to vector<4x256xf32>
    %cst_140 = arith.constant 0.000000e+00 : f32
    %177 = vector.broadcast %cst_140 : f32 to vector<4x256xf32>
    %c0_141 = arith.constant 0 : index
    %c2_142 = arith.constant 2 : index
    %c0_143 = arith.constant 0 : index
    %c0_144 = arith.constant 0 : index
    %178 = vector.load %arg2[%c0_141, %c2_142, %c0_143, %c0_144] : memref<2x3x8x256xf32, #tpu.memory_space<vmem>>, vector<1x1x1x256xf32>
    %179 = vector.shape_cast %178 : vector<1x1x1x256xf32> to vector<256xf32>
    %180 = vector.shape_cast %179 : vector<256xf32> to vector<1x256xf32>
    %181 = vector.broadcast %180 : vector<1x256xf32> to vector<4x256xf32>
    %c0_145 = arith.constant 0 : index
    %c2_146 = arith.constant 2 : index
    %c4_147 = arith.constant 4 : index
    %c0_148 = arith.constant 0 : index
    %182 = vector.load %arg2[%c0_145, %c2_146, %c4_147, %c0_148] : memref<2x3x8x256xf32, #tpu.memory_space<vmem>>, vector<1x1x1x256xf32>
    %183 = vector.shape_cast %182 : vector<1x1x1x256xf32> to vector<256xf32>
    %184 = vector.shape_cast %183 : vector<256xf32> to vector<1x256xf32>
    %185 = vector.broadcast %184 : vector<1x256xf32> to vector<4x256xf32>
    %c2_149 = arith.constant 2 : index
    %c0_150 = arith.constant 0 : index
    %c0_151 = arith.constant 0 : index
    %c0_152 = arith.constant 0 : index
    %186 = vector.load %arg3[%c2_149, %c0_150, %c0_151, %c0_152] : memref<3x4x4x256xf32, #tpu.memory_space<vmem>>, vector<1x1x4x256xf32>
    %187 = vector.shape_cast %186 : vector<1x1x4x256xf32> to vector<4x256xf32>
    %c2_153 = arith.constant 2 : index
    %c0_154 = arith.constant 0 : index
    %c0_155 = arith.constant 0 : index
    %c0_156 = arith.constant 0 : index
    %188 = vector.load %arg4[%c2_153, %c0_154, %c0_155, %c0_156] : memref<3x4x4x256xf32, #tpu.memory_space<vmem>>, vector<1x1x4x256xf32>
    %189 = vector.shape_cast %188 : vector<1x1x4x256xf32> to vector<4x256xf32>
    %190 = arith.mulf %181, %187 : vector<4x256xf32>
    %191 = arith.addf %176, %190 : vector<4x256xf32>
    %192 = arith.mulf %185, %189 : vector<4x256xf32>
    %193 = arith.subf %191, %192 : vector<4x256xf32>
    %194 = arith.mulf %181, %189 : vector<4x256xf32>
    %195 = arith.addf %177, %194 : vector<4x256xf32>
    %196 = arith.mulf %185, %187 : vector<4x256xf32>
    %197 = arith.addf %195, %196 : vector<4x256xf32>
    %c0_157 = arith.constant 0 : index
    %c2_158 = arith.constant 2 : index
    %c1_159 = arith.constant 1 : index
    %c0_160 = arith.constant 0 : index
    %198 = vector.load %arg2[%c0_157, %c2_158, %c1_159, %c0_160] : memref<2x3x8x256xf32, #tpu.memory_space<vmem>>, vector<1x1x1x256xf32>
    %199 = vector.shape_cast %198 : vector<1x1x1x256xf32> to vector<256xf32>
    %200 = vector.shape_cast %199 : vector<256xf32> to vector<1x256xf32>
    %201 = vector.broadcast %200 : vector<1x256xf32> to vector<4x256xf32>
    %c0_161 = arith.constant 0 : index
    %c2_162 = arith.constant 2 : index
    %c5_163 = arith.constant 5 : index
    %c0_164 = arith.constant 0 : index
    %202 = vector.load %arg2[%c0_161, %c2_162, %c5_163, %c0_164] : memref<2x3x8x256xf32, #tpu.memory_space<vmem>>, vector<1x1x1x256xf32>
    %203 = vector.shape_cast %202 : vector<1x1x1x256xf32> to vector<256xf32>
    %204 = vector.shape_cast %203 : vector<256xf32> to vector<1x256xf32>
    %205 = vector.broadcast %204 : vector<1x256xf32> to vector<4x256xf32>
    %c2_165 = arith.constant 2 : index
    %c1_166 = arith.constant 1 : index
    %c0_167 = arith.constant 0 : index
    %c0_168 = arith.constant 0 : index
    %206 = vector.load %arg3[%c2_165, %c1_166, %c0_167, %c0_168] : memref<3x4x4x256xf32, #tpu.memory_space<vmem>>, vector<1x1x4x256xf32>
    %207 = vector.shape_cast %206 : vector<1x1x4x256xf32> to vector<4x256xf32>
    %c2_169 = arith.constant 2 : index
    %c1_170 = arith.constant 1 : index
    %c0_171 = arith.constant 0 : index
    %c0_172 = arith.constant 0 : index
    %208 = vector.load %arg4[%c2_169, %c1_170, %c0_171, %c0_172] : memref<3x4x4x256xf32, #tpu.memory_space<vmem>>, vector<1x1x4x256xf32>
    %209 = vector.shape_cast %208 : vector<1x1x4x256xf32> to vector<4x256xf32>
    %210 = arith.mulf %201, %207 : vector<4x256xf32>
    %211 = arith.addf %193, %210 : vector<4x256xf32>
    %212 = arith.mulf %205, %209 : vector<4x256xf32>
    %213 = arith.subf %211, %212 : vector<4x256xf32>
    %214 = arith.mulf %201, %209 : vector<4x256xf32>
    %215 = arith.addf %197, %214 : vector<4x256xf32>
    %216 = arith.mulf %205, %207 : vector<4x256xf32>
    %217 = arith.addf %215, %216 : vector<4x256xf32>
    %c0_173 = arith.constant 0 : index
    %c2_174 = arith.constant 2 : index
    %c2_175 = arith.constant 2 : index
    %c0_176 = arith.constant 0 : index
    %218 = vector.load %arg2[%c0_173, %c2_174, %c2_175, %c0_176] : memref<2x3x8x256xf32, #tpu.memory_space<vmem>>, vector<1x1x1x256xf32>
    %219 = vector.shape_cast %218 : vector<1x1x1x256xf32> to vector<256xf32>
    %220 = vector.shape_cast %219 : vector<256xf32> to vector<1x256xf32>
    %221 = vector.broadcast %220 : vector<1x256xf32> to vector<4x256xf32>
    %c0_177 = arith.constant 0 : index
    %c2_178 = arith.constant 2 : index
    %c6_179 = arith.constant 6 : index
    %c0_180 = arith.constant 0 : index
    %222 = vector.load %arg2[%c0_177, %c2_178, %c6_179, %c0_180] : memref<2x3x8x256xf32, #tpu.memory_space<vmem>>, vector<1x1x1x256xf32>
    %223 = vector.shape_cast %222 : vector<1x1x1x256xf32> to vector<256xf32>
    %224 = vector.shape_cast %223 : vector<256xf32> to vector<1x256xf32>
    %225 = vector.broadcast %224 : vector<1x256xf32> to vector<4x256xf32>
    %c2_181 = arith.constant 2 : index
    %c2_182 = arith.constant 2 : index
    %c0_183 = arith.constant 0 : index
    %c0_184 = arith.constant 0 : index
    %226 = vector.load %arg3[%c2_181, %c2_182, %c0_183, %c0_184] : memref<3x4x4x256xf32, #tpu.memory_space<vmem>>, vector<1x1x4x256xf32>
    %227 = vector.shape_cast %226 : vector<1x1x4x256xf32> to vector<4x256xf32>
    %c2_185 = arith.constant 2 : index
    %c2_186 = arith.constant 2 : index
    %c0_187 = arith.constant 0 : index
    %c0_188 = arith.constant 0 : index
    %228 = vector.load %arg4[%c2_185, %c2_186, %c0_187, %c0_188] : memref<3x4x4x256xf32, #tpu.memory_space<vmem>>, vector<1x1x4x256xf32>
    %229 = vector.shape_cast %228 : vector<1x1x4x256xf32> to vector<4x256xf32>
    %230 = arith.mulf %221, %227 : vector<4x256xf32>
    %231 = arith.addf %213, %230 : vector<4x256xf32>
    %232 = arith.mulf %225, %229 : vector<4x256xf32>
    %233 = arith.subf %231, %232 : vector<4x256xf32>
    %234 = arith.mulf %221, %229 : vector<4x256xf32>
    %235 = arith.addf %217, %234 : vector<4x256xf32>
    %236 = arith.mulf %225, %227 : vector<4x256xf32>
    %237 = arith.addf %235, %236 : vector<4x256xf32>
    %c0_189 = arith.constant 0 : index
    %c2_190 = arith.constant 2 : index
    %c3_191 = arith.constant 3 : index
    %c0_192 = arith.constant 0 : index
    %238 = vector.load %arg2[%c0_189, %c2_190, %c3_191, %c0_192] : memref<2x3x8x256xf32, #tpu.memory_space<vmem>>, vector<1x1x1x256xf32>
    %239 = vector.shape_cast %238 : vector<1x1x1x256xf32> to vector<256xf32>
    %240 = vector.shape_cast %239 : vector<256xf32> to vector<1x256xf32>
    %241 = vector.broadcast %240 : vector<1x256xf32> to vector<4x256xf32>
    %c0_193 = arith.constant 0 : index
    %c2_194 = arith.constant 2 : index
    %c7_195 = arith.constant 7 : index
    %c0_196 = arith.constant 0 : index
    %242 = vector.load %arg2[%c0_193, %c2_194, %c7_195, %c0_196] : memref<2x3x8x256xf32, #tpu.memory_space<vmem>>, vector<1x1x1x256xf32>
    %243 = vector.shape_cast %242 : vector<1x1x1x256xf32> to vector<256xf32>
    %244 = vector.shape_cast %243 : vector<256xf32> to vector<1x256xf32>
    %245 = vector.broadcast %244 : vector<1x256xf32> to vector<4x256xf32>
    %c2_197 = arith.constant 2 : index
    %c3_198 = arith.constant 3 : index
    %c0_199 = arith.constant 0 : index
    %c0_200 = arith.constant 0 : index
    %246 = vector.load %arg3[%c2_197, %c3_198, %c0_199, %c0_200] : memref<3x4x4x256xf32, #tpu.memory_space<vmem>>, vector<1x1x4x256xf32>
    %247 = vector.shape_cast %246 : vector<1x1x4x256xf32> to vector<4x256xf32>
    %c2_201 = arith.constant 2 : index
    %c3_202 = arith.constant 3 : index
    %c0_203 = arith.constant 0 : index
    %c0_204 = arith.constant 0 : index
    %248 = vector.load %arg4[%c2_201, %c3_202, %c0_203, %c0_204] : memref<3x4x4x256xf32, #tpu.memory_space<vmem>>, vector<1x1x4x256xf32>
    %249 = vector.shape_cast %248 : vector<1x1x4x256xf32> to vector<4x256xf32>
    %250 = arith.mulf %241, %247 : vector<4x256xf32>
    %251 = arith.addf %233, %250 : vector<4x256xf32>
    %252 = arith.mulf %245, %249 : vector<4x256xf32>
    %253 = arith.subf %251, %252 : vector<4x256xf32>
    %254 = arith.mulf %241, %249 : vector<4x256xf32>
    %255 = arith.addf %237, %254 : vector<4x256xf32>
    %256 = arith.mulf %245, %247 : vector<4x256xf32>
    %257 = arith.addf %255, %256 : vector<4x256xf32>
    %c0_205 = arith.constant 0 : index
    %c2_206 = arith.constant 2 : index
    %c0_207 = arith.constant 0 : index
    %c0_208 = arith.constant 0 : index
    %258 = vector.load %arg5[%c0_205, %c2_206, %c0_207, %c0_208] : memref<2x3x8x256xf32, #tpu.memory_space<vmem>>, vector<1x1x4x256xf32>
    %259 = vector.shape_cast %258 : vector<1x1x4x256xf32> to vector<4x256xf32>
    %260 = vector.shape_cast %253 : vector<4x256xf32> to vector<1x1x4x256xf32>
    tpu.vector_store %arg5[%c0_205, %c2_206, %c0_207, %c0_208], %260 {strides = array<i32>} : memref<2x3x8x256xf32, #tpu.memory_space<vmem>>, vector<1x1x4x256xf32>,
    %c0_209 = arith.constant 0 : index
    %c2_210 = arith.constant 2 : index
    %c4_211 = arith.constant 4 : index
    %c0_212 = arith.constant 0 : index
    %261 = vector.load %arg5[%c0_209, %c2_210, %c4_211, %c0_212] : memref<2x3x8x256xf32, #tpu.memory_space<vmem>>, vector<1x1x4x256xf32>
    %262 = vector.shape_cast %261 : vector<1x1x4x256xf32> to vector<4x256xf32>
    %263 = vector.shape_cast %257 : vector<4x256xf32> to vector<1x1x4x256xf32>
    tpu.vector_store %arg5[%c0_209, %c2_210, %c4_211, %c0_212], %263 {strides = array<i32>} : memref<2x3x8x256xf32, #tpu.memory_space<vmem>>, vector<1x1x4x256xf32>,
    %cst_213 = arith.constant 0.000000e+00 : f32
    %264 = vector.broadcast %cst_213 : f32 to vector<4x256xf32>
    %cst_214 = arith.constant 0.000000e+00 : f32
    %265 = vector.broadcast %cst_214 : f32 to vector<4x256xf32>
    %c1_215 = arith.constant 1 : index
    %c0_216 = arith.constant 0 : index
    %c0_217 = arith.constant 0 : index
    %c0_218 = arith.constant 0 : index
    %266 = vector.load %arg2[%c1_215, %c0_216, %c0_217, %c0_218] : memref<2x3x8x256xf32, #tpu.memory_space<vmem>>, vector<1x1x1x256xf32>
    %267 = vector.shape_cast %266 : vector<1x1x1x256xf32> to vector<256xf32>
    %268 = vector.shape_cast %267 : vector<256xf32> to vector<1x256xf32>
    %269 = vector.broadcast %268 : vector<1x256xf32> to vector<4x256xf32>
    %c1_219 = arith.constant 1 : index
    %c0_220 = arith.constant 0 : index
    %c4_221 = arith.constant 4 : index
    %c0_222 = arith.constant 0 : index
    %270 = vector.load %arg2[%c1_219, %c0_220, %c4_221, %c0_222] : memref<2x3x8x256xf32, #tpu.memory_space<vmem>>, vector<1x1x1x256xf32>
    %271 = vector.shape_cast %270 : vector<1x1x1x256xf32> to vector<256xf32>
    %272 = vector.shape_cast %271 : vector<256xf32> to vector<1x256xf32>
    %273 = vector.broadcast %272 : vector<1x256xf32> to vector<4x256xf32>
    %c0_223 = arith.constant 0 : index
    %c0_224 = arith.constant 0 : index
    %c0_225 = arith.constant 0 : index
    %c0_226 = arith.constant 0 : index
    %274 = vector.load %arg3[%c0_223, %c0_224, %c0_225, %c0_226] : memref<3x4x4x256xf32, #tpu.memory_space<vmem>>, vector<1x1x4x256xf32>
    %275 = vector.shape_cast %274 : vector<1x1x4x256xf32> to vector<4x256xf32>
    %c0_227 = arith.constant 0 : index
    %c0_228 = arith.constant 0 : index
    %c0_229 = arith.constant 0 : index
    %c0_230 = arith.constant 0 : index
    %276 = vector.load %arg4[%c0_227, %c0_228, %c0_229, %c0_230] : memref<3x4x4x256xf32, #tpu.memory_space<vmem>>, vector<1x1x4x256xf32>
    %277 = vector.shape_cast %276 : vector<1x1x4x256xf32> to vector<4x256xf32>
    %278 = arith.mulf %269, %275 : vector<4x256xf32>
    %279 = arith.addf %264, %278 : vector<4x256xf32>
    %280 = arith.mulf %273, %277 : vector<4x256xf32>
    %281 = arith.subf %279, %280 : vector<4x256xf32>
    %282 = arith.mulf %269, %277 : vector<4x256xf32>
    %283 = arith.addf %265, %282 : vector<4x256xf32>
    %284 = arith.mulf %273, %275 : vector<4x256xf32>
    %285 = arith.addf %283, %284 : vector<4x256xf32>
    %c1_231 = arith.constant 1 : index
    %c0_232 = arith.constant 0 : index
    %c1_233 = arith.constant 1 : index
    %c0_234 = arith.constant 0 : index
    %286 = vector.load %arg2[%c1_231, %c0_232, %c1_233, %c0_234] : memref<2x3x8x256xf32, #tpu.memory_space<vmem>>, vector<1x1x1x256xf32>
    %287 = vector.shape_cast %286 : vector<1x1x1x256xf32> to vector<256xf32>
    %288 = vector.shape_cast %287 : vector<256xf32> to vector<1x256xf32>
    %289 = vector.broadcast %288 : vector<1x256xf32> to vector<4x256xf32>
    %c1_235 = arith.constant 1 : index
    %c0_236 = arith.constant 0 : index
    %c5_237 = arith.constant 5 : index
    %c0_238 = arith.constant 0 : index
    %290 = vector.load %arg2[%c1_235, %c0_236, %c5_237, %c0_238] : memref<2x3x8x256xf32, #tpu.memory_space<vmem>>, vector<1x1x1x256xf32>
    %291 = vector.shape_cast %290 : vector<1x1x1x256xf32> to vector<256xf32>
    %292 = vector.shape_cast %291 : vector<256xf32> to vector<1x256xf32>
    %293 = vector.broadcast %292 : vector<1x256xf32> to vector<4x256xf32>
    %c0_239 = arith.constant 0 : index
    %c1_240 = arith.constant 1 : index
    %c0_241 = arith.constant 0 : index
    %c0_242 = arith.constant 0 : index
    %294 = vector.load %arg3[%c0_239, %c1_240, %c0_241, %c0_242] : memref<3x4x4x256xf32, #tpu.memory_space<vmem>>, vector<1x1x4x256xf32>
    %295 = vector.shape_cast %294 : vector<1x1x4x256xf32> to vector<4x256xf32>
    %c0_243 = arith.constant 0 : index
    %c1_244 = arith.constant 1 : index
    %c0_245 = arith.constant 0 : index
    %c0_246 = arith.constant 0 : index
    %296 = vector.load %arg4[%c0_243, %c1_244, %c0_245, %c0_246] : memref<3x4x4x256xf32, #tpu.memory_space<vmem>>, vector<1x1x4x256xf32>
    %297 = vector.shape_cast %296 : vector<1x1x4x256xf32> to vector<4x256xf32>
    %298 = arith.mulf %289, %295 : vector<4x256xf32>
    %299 = arith.addf %281, %298 : vector<4x256xf32>
    %300 = arith.mulf %293, %297 : vector<4x256xf32>
    %301 = arith.subf %299, %300 : vector<4x256xf32>
    %302 = arith.mulf %289, %297 : vector<4x256xf32>
    %303 = arith.addf %285, %302 : vector<4x256xf32>
    %304 = arith.mulf %293, %295 : vector<4x256xf32>
    %305 = arith.addf %303, %304 : vector<4x256xf32>
    %c1_247 = arith.constant 1 : index
    %c0_248 = arith.constant 0 : index
    %c2_249 = arith.constant 2 : index
    %c0_250 = arith.constant 0 : index
    %306 = vector.load %arg2[%c1_247, %c0_248, %c2_249, %c0_250] : memref<2x3x8x256xf32, #tpu.memory_space<vmem>>, vector<1x1x1x256xf32>
    %307 = vector.shape_cast %306 : vector<1x1x1x256xf32> to vector<256xf32>
    %308 = vector.shape_cast %307 : vector<256xf32> to vector<1x256xf32>
    %309 = vector.broadcast %308 : vector<1x256xf32> to vector<4x256xf32>
    %c1_251 = arith.constant 1 : index
    %c0_252 = arith.constant 0 : index
    %c6_253 = arith.constant 6 : index
    %c0_254 = arith.constant 0 : index
    %310 = vector.load %arg2[%c1_251, %c0_252, %c6_253, %c0_254] : memref<2x3x8x256xf32, #tpu.memory_space<vmem>>, vector<1x1x1x256xf32>
    %311 = vector.shape_cast %310 : vector<1x1x1x256xf32> to vector<256xf32>
    %312 = vector.shape_cast %311 : vector<256xf32> to vector<1x256xf32>
    %313 = vector.broadcast %312 : vector<1x256xf32> to vector<4x256xf32>
    %c0_255 = arith.constant 0 : index
    %c2_256 = arith.constant 2 : index
    %c0_257 = arith.constant 0 : index
    %c0_258 = arith.constant 0 : index
    %314 = vector.load %arg3[%c0_255, %c2_256, %c0_257, %c0_258] : memref<3x4x4x256xf32, #tpu.memory_space<vmem>>, vector<1x1x4x256xf32>
    %315 = vector.shape_cast %314 : vector<1x1x4x256xf32> to vector<4x256xf32>
    %c0_259 = arith.constant 0 : index
    %c2_260 = arith.constant 2 : index
    %c0_261 = arith.constant 0 : index
    %c0_262 = arith.constant 0 : index
    %316 = vector.load %arg4[%c0_259, %c2_260, %c0_261, %c0_262] : memref<3x4x4x256xf32, #tpu.memory_space<vmem>>, vector<1x1x4x256xf32>
    %317 = vector.shape_cast %316 : vector<1x1x4x256xf32> to vector<4x256xf32>
    %318 = arith.mulf %309, %315 : vector<4x256xf32>
    %319 = arith.addf %301, %318 : vector<4x256xf32>
    %320 = arith.mulf %313, %317 : vector<4x256xf32>
    %321 = arith.subf %319, %320 : vector<4x256xf32>
    %322 = arith.mulf %309, %317 : vector<4x256xf32>
    %323 = arith.addf %305, %322 : vector<4x256xf32>
    %324 = arith.mulf %313, %315 : vector<4x256xf32>
    %325 = arith.addf %323, %324 : vector<4x256xf32>
    %c1_263 = arith.constant 1 : index
    %c0_264 = arith.constant 0 : index
    %c3_265 = arith.constant 3 : index
    %c0_266 = arith.constant 0 : index
    %326 = vector.load %arg2[%c1_263, %c0_264, %c3_265, %c0_266] : memref<2x3x8x256xf32, #tpu.memory_space<vmem>>, vector<1x1x1x256xf32>
    %327 = vector.shape_cast %326 : vector<1x1x1x256xf32> to vector<256xf32>
    %328 = vector.shape_cast %327 : vector<256xf32> to vector<1x256xf32>
    %329 = vector.broadcast %328 : vector<1x256xf32> to vector<4x256xf32>
    %c1_267 = arith.constant 1 : index
    %c0_268 = arith.constant 0 : index
    %c7_269 = arith.constant 7 : index
    %c0_270 = arith.constant 0 : index
    %330 = vector.load %arg2[%c1_267, %c0_268, %c7_269, %c0_270] : memref<2x3x8x256xf32, #tpu.memory_space<vmem>>, vector<1x1x1x256xf32>
    %331 = vector.shape_cast %330 : vector<1x1x1x256xf32> to vector<256xf32>
    %332 = vector.shape_cast %331 : vector<256xf32> to vector<1x256xf32>
    %333 = vector.broadcast %332 : vector<1x256xf32> to vector<4x256xf32>
    %c0_271 = arith.constant 0 : index
    %c3_272 = arith.constant 3 : index
    %c0_273 = arith.constant 0 : index
    %c0_274 = arith.constant 0 : index
    %334 = vector.load %arg3[%c0_271, %c3_272, %c0_273, %c0_274] : memref<3x4x4x256xf32, #tpu.memory_space<vmem>>, vector<1x1x4x256xf32>
    %335 = vector.shape_cast %334 : vector<1x1x4x256xf32> to vector<4x256xf32>
    %c0_275 = arith.constant 0 : index
    %c3_276 = arith.constant 3 : index
    %c0_277 = arith.constant 0 : index
    %c0_278 = arith.constant 0 : index
    %336 = vector.load %arg4[%c0_275, %c3_276, %c0_277, %c0_278] : memref<3x4x4x256xf32, #tpu.memory_space<vmem>>, vector<1x1x4x256xf32>
    %337 = vector.shape_cast %336 : vector<1x1x4x256xf32> to vector<4x256xf32>
    %338 = arith.mulf %329, %335 : vector<4x256xf32>
    %339 = arith.addf %321, %338 : vector<4x256xf32>
    %340 = arith.mulf %333, %337 : vector<4x256xf32>
    %341 = arith.subf %339, %340 : vector<4x256xf32>
    %342 = arith.mulf %329, %337 : vector<4x256xf32>
    %343 = arith.addf %325, %342 : vector<4x256xf32>
    %344 = arith.mulf %333, %335 : vector<4x256xf32>
    %345 = arith.addf %343, %344 : vector<4x256xf32>
    %c1_279 = arith.constant 1 : index
    %c0_280 = arith.constant 0 : index
    %c0_281 = arith.constant 0 : index
    %c0_282 = arith.constant 0 : index
    %346 = vector.load %arg5[%c1_279, %c0_280, %c0_281, %c0_282] : memref<2x3x8x256xf32, #tpu.memory_space<vmem>>, vector<1x1x4x256xf32>
    %347 = vector.shape_cast %346 : vector<1x1x4x256xf32> to vector<4x256xf32>
    %348 = vector.shape_cast %341 : vector<4x256xf32> to vector<1x1x4x256xf32>
    tpu.vector_store %arg5[%c1_279, %c0_280, %c0_281, %c0_282], %348 {strides = array<i32>} : memref<2x3x8x256xf32, #tpu.memory_space<vmem>>, vector<1x1x4x256xf32>,
    %c1_283 = arith.constant 1 : index
    %c0_284 = arith.constant 0 : index
    %c4_285 = arith.constant 4 : index
    %c0_286 = arith.constant 0 : index
    %349 = vector.load %arg5[%c1_283, %c0_284, %c4_285, %c0_286] : memref<2x3x8x256xf32, #tpu.memory_space<vmem>>, vector<1x1x4x256xf32>
    %350 = vector.shape_cast %349 : vector<1x1x4x256xf32> to vector<4x256xf32>
    %351 = vector.shape_cast %345 : vector<4x256xf32> to vector<1x1x4x256xf32>
    tpu.vector_store %arg5[%c1_283, %c0_284, %c4_285, %c0_286], %351 {strides = array<i32>} : memref<2x3x8x256xf32, #tpu.memory_space<vmem>>, vector<1x1x4x256xf32>,
    %cst_287 = arith.constant 0.000000e+00 : f32
    %352 = vector.broadcast %cst_287 : f32 to vector<4x256xf32>
    %cst_288 = arith.constant 0.000000e+00 : f32
    %353 = vector.broadcast %cst_288 : f32 to vector<4x256xf32>
    %c1_289 = arith.constant 1 : index
    %c1_290 = arith.constant 1 : index
    %c0_291 = arith.constant 0 : index
    %c0_292 = arith.constant 0 : index
    %354 = vector.load %arg2[%c1_289, %c1_290, %c0_291, %c0_292] : memref<2x3x8x256xf32, #tpu.memory_space<vmem>>, vector<1x1x1x256xf32>
    %355 = vector.shape_cast %354 : vector<1x1x1x256xf32> to vector<256xf32>
    %356 = vector.shape_cast %355 : vector<256xf32> to vector<1x256xf32>
    %357 = vector.broadcast %356 : vector<1x256xf32> to vector<4x256xf32>
    %c1_293 = arith.constant 1 : index
    %c1_294 = arith.constant 1 : index
    %c4_295 = arith.constant 4 : index
    %c0_296 = arith.constant 0 : index
    %358 = vector.load %arg2[%c1_293, %c1_294, %c4_295, %c0_296] : memref<2x3x8x256xf32, #tpu.memory_space<vmem>>, vector<1x1x1x256xf32>
    %359 = vector.shape_cast %358 : vector<1x1x1x256xf32> to vector<256xf32>
    %360 = vector.shape_cast %359 : vector<256xf32> to vector<1x256xf32>
    %361 = vector.broadcast %360 : vector<1x256xf32> to vector<4x256xf32>
    %c1_297 = arith.constant 1 : index
    %c0_298 = arith.constant 0 : index
    %c0_299 = arith.constant 0 : index
    %c0_300 = arith.constant 0 : index
    %362 = vector.load %arg3[%c1_297, %c0_298, %c0_299, %c0_300] : memref<3x4x4x256xf32, #tpu.memory_space<vmem>>, vector<1x1x4x256xf32>
    %363 = vector.shape_cast %362 : vector<1x1x4x256xf32> to vector<4x256xf32>
    %c1_301 = arith.constant 1 : index
    %c0_302 = arith.constant 0 : index
    %c0_303 = arith.constant 0 : index
    %c0_304 = arith.constant 0 : index
    %364 = vector.load %arg4[%c1_301, %c0_302, %c0_303, %c0_304] : memref<3x4x4x256xf32, #tpu.memory_space<vmem>>, vector<1x1x4x256xf32>
    %365 = vector.shape_cast %364 : vector<1x1x4x256xf32> to vector<4x256xf32>
    %366 = arith.mulf %357, %363 : vector<4x256xf32>
    %367 = arith.addf %352, %366 : vector<4x256xf32>
    %368 = arith.mulf %361, %365 : vector<4x256xf32>
    %369 = arith.subf %367, %368 : vector<4x256xf32>
    %370 = arith.mulf %357, %365 : vector<4x256xf32>
    %371 = arith.addf %353, %370 : vector<4x256xf32>
    %372 = arith.mulf %361, %363 : vector<4x256xf32>
    %373 = arith.addf %371, %372 : vector<4x256xf32>
    %c1_305 = arith.constant 1 : index
    %c1_306 = arith.constant 1 : index
    %c1_307 = arith.constant 1 : index
    %c0_308 = arith.constant 0 : index
    %374 = vector.load %arg2[%c1_305, %c1_306, %c1_307, %c0_308] : memref<2x3x8x256xf32, #tpu.memory_space<vmem>>, vector<1x1x1x256xf32>
    %375 = vector.shape_cast %374 : vector<1x1x1x256xf32> to vector<256xf32>
    %376 = vector.shape_cast %375 : vector<256xf32> to vector<1x256xf32>
    %377 = vector.broadcast %376 : vector<1x256xf32> to vector<4x256xf32>
    %c1_309 = arith.constant 1 : index
    %c1_310 = arith.constant 1 : index
    %c5_311 = arith.constant 5 : index
    %c0_312 = arith.constant 0 : index
    %378 = vector.load %arg2[%c1_309, %c1_310, %c5_311, %c0_312] : memref<2x3x8x256xf32, #tpu.memory_space<vmem>>, vector<1x1x1x256xf32>
    %379 = vector.shape_cast %378 : vector<1x1x1x256xf32> to vector<256xf32>
    %380 = vector.shape_cast %379 : vector<256xf32> to vector<1x256xf32>
    %381 = vector.broadcast %380 : vector<1x256xf32> to vector<4x256xf32>
    %c1_313 = arith.constant 1 : index
    %c1_314 = arith.constant 1 : index
    %c0_315 = arith.constant 0 : index
    %c0_316 = arith.constant 0 : index
    %382 = vector.load %arg3[%c1_313, %c1_314, %c0_315, %c0_316] : memref<3x4x4x256xf32, #tpu.memory_space<vmem>>, vector<1x1x4x256xf32>
    %383 = vector.shape_cast %382 : vector<1x1x4x256xf32> to vector<4x256xf32>
    %c1_317 = arith.constant 1 : index
    %c1_318 = arith.constant 1 : index
    %c0_319 = arith.constant 0 : index
    %c0_320 = arith.constant 0 : index
    %384 = vector.load %arg4[%c1_317, %c1_318, %c0_319, %c0_320] : memref<3x4x4x256xf32, #tpu.memory_space<vmem>>, vector<1x1x4x256xf32>
    %385 = vector.shape_cast %384 : vector<1x1x4x256xf32> to vector<4x256xf32>
    %386 = arith.mulf %377, %383 : vector<4x256xf32>
    %387 = arith.addf %369, %386 : vector<4x256xf32>
    %388 = arith.mulf %381, %385 : vector<4x256xf32>
    %389 = arith.subf %387, %388 : vector<4x256xf32>
    %390 = arith.mulf %377, %385 : vector<4x256xf32>
    %391 = arith.addf %373, %390 : vector<4x256xf32>
    %392 = arith.mulf %381, %383 : vector<4x256xf32>
    %393 = arith.addf %391, %392 : vector<4x256xf32>
    %c1_321 = arith.constant 1 : index
    %c1_322 = arith.constant 1 : index
    %c2_323 = arith.constant 2 : index
    %c0_324 = arith.constant 0 : index
    %394 = vector.load %arg2[%c1_321, %c1_322, %c2_323, %c0_324] : memref<2x3x8x256xf32, #tpu.memory_space<vmem>>, vector<1x1x1x256xf32>
    %395 = vector.shape_cast %394 : vector<1x1x1x256xf32> to vector<256xf32>
    %396 = vector.shape_cast %395 : vector<256xf32> to vector<1x256xf32>
    %397 = vector.broadcast %396 : vector<1x256xf32> to vector<4x256xf32>
    %c1_325 = arith.constant 1 : index
    %c1_326 = arith.constant 1 : index
    %c6_327 = arith.constant 6 : index
    %c0_328 = arith.constant 0 : index
    %398 = vector.load %arg2[%c1_325, %c1_326, %c6_327, %c0_328] : memref<2x3x8x256xf32, #tpu.memory_space<vmem>>, vector<1x1x1x256xf32>
    %399 = vector.shape_cast %398 : vector<1x1x1x256xf32> to vector<256xf32>
    %400 = vector.shape_cast %399 : vector<256xf32> to vector<1x256xf32>
    %401 = vector.broadcast %400 : vector<1x256xf32> to vector<4x256xf32>
    %c1_329 = arith.constant 1 : index
    %c2_330 = arith.constant 2 : index
    %c0_331 = arith.constant 0 : index
    %c0_332 = arith.constant 0 : index
    %402 = vector.load %arg3[%c1_329, %c2_330, %c0_331, %c0_332] : memref<3x4x4x256xf32, #tpu.memory_space<vmem>>, vector<1x1x4x256xf32>
    %403 = vector.shape_cast %402 : vector<1x1x4x256xf32> to vector<4x256xf32>
    %c1_333 = arith.constant 1 : index
    %c2_334 = arith.constant 2 : index
    %c0_335 = arith.constant 0 : index
    %c0_336 = arith.constant 0 : index
    %404 = vector.load %arg4[%c1_333, %c2_334, %c0_335, %c0_336] : memref<3x4x4x256xf32, #tpu.memory_space<vmem>>, vector<1x1x4x256xf32>
    %405 = vector.shape_cast %404 : vector<1x1x4x256xf32> to vector<4x256xf32>
    %406 = arith.mulf %397, %403 : vector<4x256xf32>
    %407 = arith.addf %389, %406 : vector<4x256xf32>
    %408 = arith.mulf %401, %405 : vector<4x256xf32>
    %409 = arith.subf %407, %408 : vector<4x256xf32>
    %410 = arith.mulf %397, %405 : vector<4x256xf32>
    %411 = arith.addf %393, %410 : vector<4x256xf32>
    %412 = arith.mulf %401, %403 : vector<4x256xf32>
    %413 = arith.addf %411, %412 : vector<4x256xf32>
    %c1_337 = arith.constant 1 : index
    %c1_338 = arith.constant 1 : index
    %c3_339 = arith.constant 3 : index
    %c0_340 = arith.constant 0 : index
    %414 = vector.load %arg2[%c1_337, %c1_338, %c3_339, %c0_340] : memref<2x3x8x256xf32, #tpu.memory_space<vmem>>, vector<1x1x1x256xf32>
    %415 = vector.shape_cast %414 : vector<1x1x1x256xf32> to vector<256xf32>
    %416 = vector.shape_cast %415 : vector<256xf32> to vector<1x256xf32>
    %417 = vector.broadcast %416 : vector<1x256xf32> to vector<4x256xf32>
    %c1_341 = arith.constant 1 : index
    %c1_342 = arith.constant 1 : index
    %c7_343 = arith.constant 7 : index
    %c0_344 = arith.constant 0 : index
    %418 = vector.load %arg2[%c1_341, %c1_342, %c7_343, %c0_344] : memref<2x3x8x256xf32, #tpu.memory_space<vmem>>, vector<1x1x1x256xf32>
    %419 = vector.shape_cast %418 : vector<1x1x1x256xf32> to vector<256xf32>
    %420 = vector.shape_cast %419 : vector<256xf32> to vector<1x256xf32>
    %421 = vector.broadcast %420 : vector<1x256xf32> to vector<4x256xf32>
    %c1_345 = arith.constant 1 : index
    %c3_346 = arith.constant 3 : index
    %c0_347 = arith.constant 0 : index
    %c0_348 = arith.constant 0 : index
    %422 = vector.load %arg3[%c1_345, %c3_346, %c0_347, %c0_348] : memref<3x4x4x256xf32, #tpu.memory_space<vmem>>, vector<1x1x4x256xf32>
    %423 = vector.shape_cast %422 : vector<1x1x4x256xf32> to vector<4x256xf32>
    %c1_349 = arith.constant 1 : index
    %c3_350 = arith.constant 3 : index
    %c0_351 = arith.constant 0 : index
    %c0_352 = arith.constant 0 : index
    %424 = vector.load %arg4[%c1_349, %c3_350, %c0_351, %c0_352] : memref<3x4x4x256xf32, #tpu.memory_space<vmem>>, vector<1x1x4x256xf32>
    %425 = vector.shape_cast %424 : vector<1x1x4x256xf32> to vector<4x256xf32>
    %426 = arith.mulf %417, %423 : vector<4x256xf32>
    %427 = arith.addf %409, %426 : vector<4x256xf32>
    %428 = arith.mulf %421, %425 : vector<4x256xf32>
    %429 = arith.subf %427, %428 : vector<4x256xf32>
    %430 = arith.mulf %417, %425 : vector<4x256xf32>
    %431 = arith.addf %413, %430 : vector<4x256xf32>
    %432 = arith.mulf %421, %423 : vector<4x256xf32>
    %433 = arith.addf %431, %432 : vector<4x256xf32>
    %c1_353 = arith.constant 1 : index
    %c1_354 = arith.constant 1 : index
    %c0_355 = arith.constant 0 : index
    %c0_356 = arith.constant 0 : index
    %434 = vector.load %arg5[%c1_353, %c1_354, %c0_355, %c0_356] : memref<2x3x8x256xf32, #tpu.memory_space<vmem>>, vector<1x1x4x256xf32>
    %435 = vector.shape_cast %434 : vector<1x1x4x256xf32> to vector<4x256xf32>
    %436 = vector.shape_cast %429 : vector<4x256xf32> to vector<1x1x4x256xf32>
    tpu.vector_store %arg5[%c1_353, %c1_354, %c0_355, %c0_356], %436 {strides = array<i32>} : memref<2x3x8x256xf32, #tpu.memory_space<vmem>>, vector<1x1x4x256xf32>,
    %c1_357 = arith.constant 1 : index
    %c1_358 = arith.constant 1 : index
    %c4_359 = arith.constant 4 : index
    %c0_360 = arith.constant 0 : index
    %437 = vector.load %arg5[%c1_357, %c1_358, %c4_359, %c0_360] : memref<2x3x8x256xf32, #tpu.memory_space<vmem>>, vector<1x1x4x256xf32>
    %438 = vector.shape_cast %437 : vector<1x1x4x256xf32> to vector<4x256xf32>
    %439 = vector.shape_cast %433 : vector<4x256xf32> to vector<1x1x4x256xf32>
    tpu.vector_store %arg5[%c1_357, %c1_358, %c4_359, %c0_360], %439 {strides = array<i32>} : memref<2x3x8x256xf32, #tpu.memory_space<vmem>>, vector<1x1x4x256xf32>,
    %cst_361 = arith.constant 0.000000e+00 : f32
    %440 = vector.broadcast %cst_361 : f32 to vector<4x256xf32>
    %cst_362 = arith.constant 0.000000e+00 : f32
    %441 = vector.broadcast %cst_362 : f32 to vector<4x256xf32>
    %c1_363 = arith.constant 1 : index
    %c2_364 = arith.constant 2 : index
    %c0_365 = arith.constant 0 : index
    %c0_366 = arith.constant 0 : index
    %442 = vector.load %arg2[%c1_363, %c2_364, %c0_365, %c0_366] : memref<2x3x8x256xf32, #tpu.memory_space<vmem>>, vector<1x1x1x256xf32>
    %443 = vector.shape_cast %442 : vector<1x1x1x256xf32> to vector<256xf32>
    %444 = vector.shape_cast %443 : vector<256xf32> to vector<1x256xf32>
    %445 = vector.broadcast %444 : vector<1x256xf32> to vector<4x256xf32>
    %c1_367 = arith.constant 1 : index
    %c2_368 = arith.constant 2 : index
    %c4_369 = arith.constant 4 : index
    %c0_370 = arith.constant 0 : index
    %446 = vector.load %arg2[%c1_367, %c2_368, %c4_369, %c0_370] : memref<2x3x8x256xf32, #tpu.memory_space<vmem>>, vector<1x1x1x256xf32>
    %447 = vector.shape_cast %446 : vector<1x1x1x256xf32> to vector<256xf32>
    %448 = vector.shape_cast %447 : vector<256xf32> to vector<1x256xf32>
    %449 = vector.broadcast %448 : vector<1x256xf32> to vector<4x256xf32>
    %c2_371 = arith.constant 2 : index
    %c0_372 = arith.constant 0 : index
    %c0_373 = arith.constant 0 : index
    %c0_374 = arith.constant 0 : index
    %450 = vector.load %arg3[%c2_371, %c0_372, %c0_373, %c0_374] : memref<3x4x4x256xf32, #tpu.memory_space<vmem>>, vector<1x1x4x256xf32>
    %451 = vector.shape_cast %450 : vector<1x1x4x256xf32> to vector<4x256xf32>
    %c2_375 = arith.constant 2 : index
    %c0_376 = arith.constant 0 : index
    %c0_377 = arith.constant 0 : index
    %c0_378 = arith.constant 0 : index
    %452 = vector.load %arg4[%c2_375, %c0_376, %c0_377, %c0_378] : memref<3x4x4x256xf32, #tpu.memory_space<vmem>>, vector<1x1x4x256xf32>
    %453 = vector.shape_cast %452 : vector<1x1x4x256xf32> to vector<4x256xf32>
    %454 = arith.mulf %445, %451 : vector<4x256xf32>
    %455 = arith.addf %440, %454 : vector<4x256xf32>
    %456 = arith.mulf %449, %453 : vector<4x256xf32>
    %457 = arith.subf %455, %456 : vector<4x256xf32>
    %458 = arith.mulf %445, %453 : vector<4x256xf32>
    %459 = arith.addf %441, %458 : vector<4x256xf32>
    %460 = arith.mulf %449, %451 : vector<4x256xf32>
    %461 = arith.addf %459, %460 : vector<4x256xf32>
    %c1_379 = arith.constant 1 : index
    %c2_380 = arith.constant 2 : index
    %c1_381 = arith.constant 1 : index
    %c0_382 = arith.constant 0 : index
    %462 = vector.load %arg2[%c1_379, %c2_380, %c1_381, %c0_382] : memref<2x3x8x256xf32, #tpu.memory_space<vmem>>, vector<1x1x1x256xf32>
    %463 = vector.shape_cast %462 : vector<1x1x1x256xf32> to vector<256xf32>
    %464 = vector.shape_cast %463 : vector<256xf32> to vector<1x256xf32>
    %465 = vector.broadcast %464 : vector<1x256xf32> to vector<4x256xf32>
    %c1_383 = arith.constant 1 : index
    %c2_384 = arith.constant 2 : index
    %c5_385 = arith.constant 5 : index
    %c0_386 = arith.constant 0 : index
    %466 = vector.load %arg2[%c1_383, %c2_384, %c5_385, %c0_386] : memref<2x3x8x256xf32, #tpu.memory_space<vmem>>, vector<1x1x1x256xf32>
    %467 = vector.shape_cast %466 : vector<1x1x1x256xf32> to vector<256xf32>
    %468 = vector.shape_cast %467 : vector<256xf32> to vector<1x256xf32>
    %469 = vector.broadcast %468 : vector<1x256xf32> to vector<4x256xf32>
    %c2_387 = arith.constant 2 : index
    %c1_388 = arith.constant 1 : index
    %c0_389 = arith.constant 0 : index
    %c0_390 = arith.constant 0 : index
    %470 = vector.load %arg3[%c2_387, %c1_388, %c0_389, %c0_390] : memref<3x4x4x256xf32, #tpu.memory_space<vmem>>, vector<1x1x4x256xf32>
    %471 = vector.shape_cast %470 : vector<1x1x4x256xf32> to vector<4x256xf32>
    %c2_391 = arith.constant 2 : index
    %c1_392 = arith.constant 1 : index
    %c0_393 = arith.constant 0 : index
    %c0_394 = arith.constant 0 : index
    %472 = vector.load %arg4[%c2_391, %c1_392, %c0_393, %c0_394] : memref<3x4x4x256xf32, #tpu.memory_space<vmem>>, vector<1x1x4x256xf32>
    %473 = vector.shape_cast %472 : vector<1x1x4x256xf32> to vector<4x256xf32>
    %474 = arith.mulf %465, %471 : vector<4x256xf32>
    %475 = arith.addf %457, %474 : vector<4x256xf32>
    %476 = arith.mulf %469, %473 : vector<4x256xf32>
    %477 = arith.subf %475, %476 : vector<4x256xf32>
    %478 = arith.mulf %465, %473 : vector<4x256xf32>
    %479 = arith.addf %461, %478 : vector<4x256xf32>
    %480 = arith.mulf %469, %471 : vector<4x256xf32>
    %481 = arith.addf %479, %480 : vector<4x256xf32>
    %c1_395 = arith.constant 1 : index
    %c2_396 = arith.constant 2 : index
    %c2_397 = arith.constant 2 : index
    %c0_398 = arith.constant 0 : index
    %482 = vector.load %arg2[%c1_395, %c2_396, %c2_397, %c0_398] : memref<2x3x8x256xf32, #tpu.memory_space<vmem>>, vector<1x1x1x256xf32>
    %483 = vector.shape_cast %482 : vector<1x1x1x256xf32> to vector<256xf32>
    %484 = vector.shape_cast %483 : vector<256xf32> to vector<1x256xf32>
    %485 = vector.broadcast %484 : vector<1x256xf32> to vector<4x256xf32>
    %c1_399 = arith.constant 1 : index
    %c2_400 = arith.constant 2 : index
    %c6_401 = arith.constant 6 : index
    %c0_402 = arith.constant 0 : index
    %486 = vector.load %arg2[%c1_399, %c2_400, %c6_401, %c0_402] : memref<2x3x8x256xf32, #tpu.memory_space<vmem>>, vector<1x1x1x256xf32>
    %487 = vector.shape_cast %486 : vector<1x1x1x256xf32> to vector<256xf32>
    %488 = vector.shape_cast %487 : vector<256xf32> to vector<1x256xf32>
    %489 = vector.broadcast %488 : vector<1x256xf32> to vector<4x256xf32>
    %c2_403 = arith.constant 2 : index
    %c2_404 = arith.constant 2 : index
    %c0_405 = arith.constant 0 : index
    %c0_406 = arith.constant 0 : index
    %490 = vector.load %arg3[%c2_403, %c2_404, %c0_405, %c0_406] : memref<3x4x4x256xf32, #tpu.memory_space<vmem>>, vector<1x1x4x256xf32>
    %491 = vector.shape_cast %490 : vector<1x1x4x256xf32> to vector<4x256xf32>
    %c2_407 = arith.constant 2 : index
    %c2_408 = arith.constant 2 : index
    %c0_409 = arith.constant 0 : index
    %c0_410 = arith.constant 0 : index
    %492 = vector.load %arg4[%c2_407, %c2_408, %c0_409, %c0_410] : memref<3x4x4x256xf32, #tpu.memory_space<vmem>>, vector<1x1x4x256xf32>
    %493 = vector.shape_cast %492 : vector<1x1x4x256xf32> to vector<4x256xf32>
    %494 = arith.mulf %485, %491 : vector<4x256xf32>
    %495 = arith.addf %477, %494 : vector<4x256xf32>
    %496 = arith.mulf %489, %493 : vector<4x256xf32>
    %497 = arith.subf %495, %496 : vector<4x256xf32>
    %498 = arith.mulf %485, %493 : vector<4x256xf32>
    %499 = arith.addf %481, %498 : vector<4x256xf32>
    %500 = arith.mulf %489, %491 : vector<4x256xf32>
    %501 = arith.addf %499, %500 : vector<4x256xf32>
    %c1_411 = arith.constant 1 : index
    %c2_412 = arith.constant 2 : index
    %c3_413 = arith.constant 3 : index
    %c0_414 = arith.constant 0 : index
    %502 = vector.load %arg2[%c1_411, %c2_412, %c3_413, %c0_414] : memref<2x3x8x256xf32, #tpu.memory_space<vmem>>, vector<1x1x1x256xf32>
    %503 = vector.shape_cast %502 : vector<1x1x1x256xf32> to vector<256xf32>
    %504 = vector.shape_cast %503 : vector<256xf32> to vector<1x256xf32>
    %505 = vector.broadcast %504 : vector<1x256xf32> to vector<4x256xf32>
    %c1_415 = arith.constant 1 : index
    %c2_416 = arith.constant 2 : index
    %c7_417 = arith.constant 7 : index
    %c0_418 = arith.constant 0 : index
    %506 = vector.load %arg2[%c1_415, %c2_416, %c7_417, %c0_418] : memref<2x3x8x256xf32, #tpu.memory_space<vmem>>, vector<1x1x1x256xf32>
    %507 = vector.shape_cast %506 : vector<1x1x1x256xf32> to vector<256xf32>
    %508 = vector.shape_cast %507 : vector<256xf32> to vector<1x256xf32>
    %509 = vector.broadcast %508 : vector<1x256xf32> to vector<4x256xf32>
    %c2_419 = arith.constant 2 : index
    %c3_420 = arith.constant 3 : index
    %c0_421 = arith.constant 0 : index
    %c0_422 = arith.constant 0 : index
    %510 = vector.load %arg3[%c2_419, %c3_420, %c0_421, %c0_422] : memref<3x4x4x256xf32, #tpu.memory_space<vmem>>, vector<1x1x4x256xf32>
    %511 = vector.shape_cast %510 : vector<1x1x4x256xf32> to vector<4x256xf32>
    %c2_423 = arith.constant 2 : index
    %c3_424 = arith.constant 3 : index
    %c0_425 = arith.constant 0 : index
    %c0_426 = arith.constant 0 : index
    %512 = vector.load %arg4[%c2_423, %c3_424, %c0_425, %c0_426] : memref<3x4x4x256xf32, #tpu.memory_space<vmem>>, vector<1x1x4x256xf32>
    %513 = vector.shape_cast %512 : vector<1x1x4x256xf32> to vector<4x256xf32>
    %514 = arith.mulf %505, %511 : vector<4x256xf32>
    %515 = arith.addf %497, %514 : vector<4x256xf32>
    %516 = arith.mulf %509, %513 : vector<4x256xf32>
    %517 = arith.subf %515, %516 : vector<4x256xf32>
    %518 = arith.mulf %505, %513 : vector<4x256xf32>
    %519 = arith.addf %501, %518 : vector<4x256xf32>
    %520 = arith.mulf %509, %511 : vector<4x256xf32>
    %521 = arith.addf %519, %520 : vector<4x256xf32>
    %c1_427 = arith.constant 1 : index
    %c2_428 = arith.constant 2 : index
    %c0_429 = arith.constant 0 : index
    %c0_430 = arith.constant 0 : index
    %522 = vector.load %arg5[%c1_427, %c2_428, %c0_429, %c0_430] : memref<2x3x8x256xf32, #tpu.memory_space<vmem>>, vector<1x1x4x256xf32>
    %523 = vector.shape_cast %522 : vector<1x1x4x256xf32> to vector<4x256xf32>
    %524 = vector.shape_cast %517 : vector<4x256xf32> to vector<1x1x4x256xf32>
    tpu.vector_store %arg5[%c1_427, %c2_428, %c0_429, %c0_430], %524 {strides = array<i32>} : memref<2x3x8x256xf32, #tpu.memory_space<vmem>>, vector<1x1x4x256xf32>,
    %c1_431 = arith.constant 1 : index
    %c2_432 = arith.constant 2 : index
    %c4_433 = arith.constant 4 : index
    %c0_434 = arith.constant 0 : index
    %525 = vector.load %arg5[%c1_431, %c2_432, %c4_433, %c0_434] : memref<2x3x8x256xf32, #tpu.memory_space<vmem>>, vector<1x1x4x256xf32>
    %526 = vector.shape_cast %525 : vector<1x1x4x256xf32> to vector<4x256xf32>
    %527 = vector.shape_cast %521 : vector<4x256xf32> to vector<1x1x4x256xf32>
    tpu.vector_store %arg5[%c1_431, %c2_432, %c4_433, %c0_434], %527 {strides = array<i32>} : memref<2x3x8x256xf32, #tpu.memory_space<vmem>>, vector<1x1x4x256xf32>,
    return
  }
  func.func @transform_0(%arg0: i32, %arg1: i32) -> (i32, i32, i32, i32) {
    %c0_i32 = arith.constant 0 : i32
    %c0_i32_0 = arith.constant 0 : i32
    %c0_i32_1 = arith.constant 0 : i32
    return %c0_i32, %arg0, %c0_i32_0, %arg1 : i32, i32, i32, i32
  }
  func.func @transform_1(%arg0: i32, %arg1: i32) -> (i32, i32, i32, i32) {
    %c0_i32 = arith.constant 0 : i32
    %c0_i32_0 = arith.constant 0 : i32
    %c0_i32_1 = arith.constant 0 : i32
    return %arg0, %c0_i32, %c0_i32_0, %arg1 : i32, i32, i32, i32
  }
  func.func @transform_2(%arg0: i32, %arg1: i32) -> (i32, i32, i32, i32) {
    %c0_i32 = arith.constant 0 : i32
    %c0_i32_0 = arith.constant 0 : i32
    %c0_i32_1 = arith.constant 0 : i32
    return %arg0, %c0_i32, %c0_i32_0, %arg1 : i32, i32, i32, i32
  }
  func.func @transform_3(%arg0: i32, %arg1: i32) -> (i32, i32, i32, i32) {
    %c0_i32 = arith.constant 0 : i32
    %c0_i32_0 = arith.constant 0 : i32
    %c0_i32_1 = arith.constant 0 : i32
    return %c0_i32, %arg0, %c0_i32_0, %arg1 : i32, i32, i32, i32
  }
}

module attributes {stable_mosaic.version = 11 : i64} {
  func.func @kernel(%arg0: i32, %arg1: memref<4x4xf32, #tpu.memory_space<smem>>, %arg2: memref<4xf32, #tpu.memory_space<smem>>, %arg3: memref<64x256xf32, #tpu.memory_space<vmem>>, %arg4: memref<64x256xf32, #tpu.memory_space<vmem>>, %arg5: memref<3x4x8x256xf32, #tpu.memory_space<vmem>>, %arg6: memref<3x32x64xf32, #tpu.memory_space<vmem>>, %arg7: memref<3x32x64xf32, #tpu.memory_space<vmem>>, %arg8: memref<3x4x8x256xf32, #tpu.memory_space<vmem>>) attributes {dimension_semantics = [#tpu.dimension_semantics<parallel>], iteration_bounds = array<i64: 2>, scalar_prefetch = 0 : i64, scratch_operands = 0 : i64, tpu.core_type = #tpu.core_type<tc>, window_params = [{transform_indices = @transform_0, window_bounds = array<i64: 4, 4>}, {transform_indices = @transform_1, window_bounds = array<i64: 4>}, {pipeline_mode = #tpu.pipeline_mode<synchronous>, transform_indices = @transform_2, window_bounds = array<i64: 64, 256>}, {pipeline_mode = #tpu.pipeline_mode<synchronous>, transform_indices = @transform_3, window_bounds = array<i64: 64, 256>}, {transform_indices = @transform_4, window_bounds = array<i64: 3, 4, 8, 256>}, {transform_indices = @transform_5, window_bounds = array<i64: 3, 32, 64>}, {transform_indices = @transform_6, window_bounds = array<i64: 3, 32, 64>}, {transform_indices = @transform_7, window_bounds = array<i64: 3, 4, 8, 256>}]} {
    %c0_i32 = arith.constant 0 : i32
    %0 = arith.index_cast %c0_i32 : i32 to index
    %c0 = arith.constant 0 : index
    %c0_0 = arith.constant 0 : index
    %1 = vector.load %arg6[%0, %c0, %c0_0] : memref<3x32x64xf32, #tpu.memory_space<vmem>>, vector<1x32x64xf32>
    %2 = vector.shape_cast %1 : vector<1x32x64xf32> to vector<32x64xf32>
    %c0_1 = arith.constant 0 : index
    %c0_2 = arith.constant 0 : index
    %3 = vector.load %arg3[%c0_1, %c0_2] : memref<64x256xf32, #tpu.memory_space<vmem>>, vector<64x256xf32>
    %cst = arith.constant dense<0.000000e+00> : vector<32x256xf32>
    %4 = tpu.matmul %2, %3, %cst {dimension_numbers = #tpu.dot_dimension_numbers<[1], [0], [0], [1], [0, 0, 1, 1], [], []>} : vector<32x64xf32>, vector<64x256xf32>, vector<32x256xf32> -> vector<32x256xf32>
    %5 = arith.index_cast %c0_i32 : i32 to index
    %c0_3 = arith.constant 0 : index
    %c0_4 = arith.constant 0 : index
    %6 = vector.load %arg7[%5, %c0_3, %c0_4] : memref<3x32x64xf32, #tpu.memory_space<vmem>>, vector<1x32x64xf32>
    %7 = vector.shape_cast %6 : vector<1x32x64xf32> to vector<32x64xf32>
    %c0_5 = arith.constant 0 : index
    %c0_6 = arith.constant 0 : index
    %8 = vector.load %arg4[%c0_5, %c0_6] : memref<64x256xf32, #tpu.memory_space<vmem>>, vector<64x256xf32>
    %cst_7 = arith.constant dense<0.000000e+00> : vector<32x256xf32>
    %9 = tpu.matmul %7, %8, %cst_7 {dimension_numbers = #tpu.dot_dimension_numbers<[1], [0], [0], [1], [0, 0, 1, 1], [], []>} : vector<32x64xf32>, vector<64x256xf32>, vector<32x256xf32> -> vector<32x256xf32>
    %10 = arith.addf %4, %9 : vector<32x256xf32>
    %11 = arith.index_cast %c0_i32 : i32 to index
    %c0_8 = arith.constant 0 : index
    %c0_9 = arith.constant 0 : index
    %c0_10 = arith.constant 0 : index
    %12 = vector.load %arg5[%11, %c0_8, %c0_9, %c0_10] : memref<3x4x8x256xf32, #tpu.memory_space<vmem>>, vector<1x1x8x256xf32>
    %13 = vector.shape_cast %12 : vector<1x1x8x256xf32> to vector<8x256xf32>
    %14 = arith.index_cast %c0_i32 : i32 to index
    %c1 = arith.constant 1 : index
    %c0_11 = arith.constant 0 : index
    %c0_12 = arith.constant 0 : index
    %15 = vector.load %arg5[%14, %c1, %c0_11, %c0_12] : memref<3x4x8x256xf32, #tpu.memory_space<vmem>>, vector<1x1x8x256xf32>
    %16 = vector.shape_cast %15 : vector<1x1x8x256xf32> to vector<8x256xf32>
    %17 = arith.index_cast %c0_i32 : i32 to index
    %c2 = arith.constant 2 : index
    %c0_13 = arith.constant 0 : index
    %c0_14 = arith.constant 0 : index
    %18 = vector.load %arg5[%17, %c2, %c0_13, %c0_14] : memref<3x4x8x256xf32, #tpu.memory_space<vmem>>, vector<1x1x8x256xf32>
    %19 = vector.shape_cast %18 : vector<1x1x8x256xf32> to vector<8x256xf32>
    %20 = arith.index_cast %c0_i32 : i32 to index
    %c3 = arith.constant 3 : index
    %c0_15 = arith.constant 0 : index
    %c0_16 = arith.constant 0 : index
    %21 = vector.load %arg5[%20, %c3, %c0_15, %c0_16] : memref<3x4x8x256xf32, #tpu.memory_space<vmem>>, vector<1x1x8x256xf32>
    %22 = vector.shape_cast %21 : vector<1x1x8x256xf32> to vector<8x256xf32>
    %23 = vector.extract_strided_slice %10 {offsets = [0, 0], sizes = [8, 256], strides = [1, 1]} : vector<32x256xf32> to vector<8x256xf32>
    %c0_17 = arith.constant 0 : index
    %24 = memref.load %arg2[%c0_17] : memref<4xf32, #tpu.memory_space<smem>>
    %25 = vector.broadcast %24 : f32 to vector<8x256xf32>
    %26 = arith.addf %23, %25 : vector<8x256xf32>
    %c0_18 = arith.constant 0 : index
    %c0_19 = arith.constant 0 : index
    %27 = memref.load %arg1[%c0_18, %c0_19] : memref<4x4xf32, #tpu.memory_space<smem>>
    %28 = vector.broadcast %27 : f32 to vector<8x256xf32>
    %29 = arith.mulf %28, %13 : vector<8x256xf32>
    %30 = arith.addf %26, %29 : vector<8x256xf32>
    %c0_20 = arith.constant 0 : index
    %c1_21 = arith.constant 1 : index
    %31 = memref.load %arg1[%c0_20, %c1_21] : memref<4x4xf32, #tpu.memory_space<smem>>
    %32 = vector.broadcast %31 : f32 to vector<8x256xf32>
    %33 = arith.mulf %32, %16 : vector<8x256xf32>
    %34 = arith.addf %30, %33 : vector<8x256xf32>
    %c0_22 = arith.constant 0 : index
    %c2_23 = arith.constant 2 : index
    %35 = memref.load %arg1[%c0_22, %c2_23] : memref<4x4xf32, #tpu.memory_space<smem>>
    %36 = vector.broadcast %35 : f32 to vector<8x256xf32>
    %37 = arith.mulf %36, %19 : vector<8x256xf32>
    %38 = arith.addf %34, %37 : vector<8x256xf32>
    %c0_24 = arith.constant 0 : index
    %c3_25 = arith.constant 3 : index
    %39 = memref.load %arg1[%c0_24, %c3_25] : memref<4x4xf32, #tpu.memory_space<smem>>
    %40 = vector.broadcast %39 : f32 to vector<8x256xf32>
    %41 = arith.mulf %40, %22 : vector<8x256xf32>
    %42 = arith.addf %38, %41 : vector<8x256xf32>
    %cst_26 = arith.constant 5.000000e-01 : f32
    %43 = vector.broadcast %cst_26 : f32 to vector<8x256xf32>
    %44 = arith.mulf %43, %42 : vector<8x256xf32>
    %cst_27 = arith.constant 4.471500e-02 : f32
    %45 = vector.broadcast %cst_27 : f32 to vector<8x256xf32>
    %46 = arith.mulf %45, %42 : vector<8x256xf32>
    %47 = arith.mulf %46, %42 : vector<8x256xf32>
    %48 = arith.mulf %47, %42 : vector<8x256xf32>
    %49 = arith.addf %42, %48 : vector<8x256xf32>
    %cst_28 = arith.constant 0.797884583 : f32
    %50 = vector.broadcast %cst_28 : f32 to vector<8x256xf32>
    %51 = arith.mulf %50, %49 : vector<8x256xf32>
    %52 = math.tanh %51 : vector<8x256xf32>
    %cst_29 = arith.constant 1.000000e+00 : f32
    %53 = vector.broadcast %cst_29 : f32 to vector<8x256xf32>
    %54 = arith.addf %53, %52 : vector<8x256xf32>
    %55 = arith.mulf %44, %54 : vector<8x256xf32>
    %56 = arith.index_cast %c0_i32 : i32 to index
    %c0_30 = arith.constant 0 : index
    %c0_31 = arith.constant 0 : index
    %c0_32 = arith.constant 0 : index
    %57 = vector.load %arg8[%56, %c0_30, %c0_31, %c0_32] : memref<3x4x8x256xf32, #tpu.memory_space<vmem>>, vector<1x1x8x256xf32>
    %58 = vector.shape_cast %57 : vector<1x1x8x256xf32> to vector<8x256xf32>
    %59 = vector.shape_cast %55 : vector<8x256xf32> to vector<1x1x8x256xf32>
    tpu.vector_store %arg8[%56, %c0_30, %c0_31, %c0_32], %59 {strides = array<i32>} : memref<3x4x8x256xf32, #tpu.memory_space<vmem>>, vector<1x1x8x256xf32>,
    %60 = vector.extract_strided_slice %10 {offsets = [8, 0], sizes = [8, 256], strides = [1, 1]} : vector<32x256xf32> to vector<8x256xf32>
    %c1_33 = arith.constant 1 : index
    %61 = memref.load %arg2[%c1_33] : memref<4xf32, #tpu.memory_space<smem>>
    %62 = vector.broadcast %61 : f32 to vector<8x256xf32>
    %63 = arith.addf %60, %62 : vector<8x256xf32>
    %c1_34 = arith.constant 1 : index
    %c0_35 = arith.constant 0 : index
    %64 = memref.load %arg1[%c1_34, %c0_35] : memref<4x4xf32, #tpu.memory_space<smem>>
    %65 = vector.broadcast %64 : f32 to vector<8x256xf32>
    %66 = arith.mulf %65, %13 : vector<8x256xf32>
    %67 = arith.addf %63, %66 : vector<8x256xf32>
    %c1_36 = arith.constant 1 : index
    %c1_37 = arith.constant 1 : index
    %68 = memref.load %arg1[%c1_36, %c1_37] : memref<4x4xf32, #tpu.memory_space<smem>>
    %69 = vector.broadcast %68 : f32 to vector<8x256xf32>
    %70 = arith.mulf %69, %16 : vector<8x256xf32>
    %71 = arith.addf %67, %70 : vector<8x256xf32>
    %c1_38 = arith.constant 1 : index
    %c2_39 = arith.constant 2 : index
    %72 = memref.load %arg1[%c1_38, %c2_39] : memref<4x4xf32, #tpu.memory_space<smem>>
    %73 = vector.broadcast %72 : f32 to vector<8x256xf32>
    %74 = arith.mulf %73, %19 : vector<8x256xf32>
    %75 = arith.addf %71, %74 : vector<8x256xf32>
    %c1_40 = arith.constant 1 : index
    %c3_41 = arith.constant 3 : index
    %76 = memref.load %arg1[%c1_40, %c3_41] : memref<4x4xf32, #tpu.memory_space<smem>>
    %77 = vector.broadcast %76 : f32 to vector<8x256xf32>
    %78 = arith.mulf %77, %22 : vector<8x256xf32>
    %79 = arith.addf %75, %78 : vector<8x256xf32>
    %cst_42 = arith.constant 5.000000e-01 : f32
    %80 = vector.broadcast %cst_42 : f32 to vector<8x256xf32>
    %81 = arith.mulf %80, %79 : vector<8x256xf32>
    %cst_43 = arith.constant 4.471500e-02 : f32
    %82 = vector.broadcast %cst_43 : f32 to vector<8x256xf32>
    %83 = arith.mulf %82, %79 : vector<8x256xf32>
    %84 = arith.mulf %83, %79 : vector<8x256xf32>
    %85 = arith.mulf %84, %79 : vector<8x256xf32>
    %86 = arith.addf %79, %85 : vector<8x256xf32>
    %cst_44 = arith.constant 0.797884583 : f32
    %87 = vector.broadcast %cst_44 : f32 to vector<8x256xf32>
    %88 = arith.mulf %87, %86 : vector<8x256xf32>
    %89 = math.tanh %88 : vector<8x256xf32>
    %cst_45 = arith.constant 1.000000e+00 : f32
    %90 = vector.broadcast %cst_45 : f32 to vector<8x256xf32>
    %91 = arith.addf %90, %89 : vector<8x256xf32>
    %92 = arith.mulf %81, %91 : vector<8x256xf32>
    %93 = arith.index_cast %c0_i32 : i32 to index
    %c1_46 = arith.constant 1 : index
    %c0_47 = arith.constant 0 : index
    %c0_48 = arith.constant 0 : index
    %94 = vector.load %arg8[%93, %c1_46, %c0_47, %c0_48] : memref<3x4x8x256xf32, #tpu.memory_space<vmem>>, vector<1x1x8x256xf32>
    %95 = vector.shape_cast %94 : vector<1x1x8x256xf32> to vector<8x256xf32>
    %96 = vector.shape_cast %92 : vector<8x256xf32> to vector<1x1x8x256xf32>
    tpu.vector_store %arg8[%93, %c1_46, %c0_47, %c0_48], %96 {strides = array<i32>} : memref<3x4x8x256xf32, #tpu.memory_space<vmem>>, vector<1x1x8x256xf32>,
    %97 = vector.extract_strided_slice %10 {offsets = [16, 0], sizes = [8, 256], strides = [1, 1]} : vector<32x256xf32> to vector<8x256xf32>
    %c2_49 = arith.constant 2 : index
    %98 = memref.load %arg2[%c2_49] : memref<4xf32, #tpu.memory_space<smem>>
    %99 = vector.broadcast %98 : f32 to vector<8x256xf32>
    %100 = arith.addf %97, %99 : vector<8x256xf32>
    %c2_50 = arith.constant 2 : index
    %c0_51 = arith.constant 0 : index
    %101 = memref.load %arg1[%c2_50, %c0_51] : memref<4x4xf32, #tpu.memory_space<smem>>
    %102 = vector.broadcast %101 : f32 to vector<8x256xf32>
    %103 = arith.mulf %102, %13 : vector<8x256xf32>
    %104 = arith.addf %100, %103 : vector<8x256xf32>
    %c2_52 = arith.constant 2 : index
    %c1_53 = arith.constant 1 : index
    %105 = memref.load %arg1[%c2_52, %c1_53] : memref<4x4xf32, #tpu.memory_space<smem>>
    %106 = vector.broadcast %105 : f32 to vector<8x256xf32>
    %107 = arith.mulf %106, %16 : vector<8x256xf32>
    %108 = arith.addf %104, %107 : vector<8x256xf32>
    %c2_54 = arith.constant 2 : index
    %c2_55 = arith.constant 2 : index
    %109 = memref.load %arg1[%c2_54, %c2_55] : memref<4x4xf32, #tpu.memory_space<smem>>
    %110 = vector.broadcast %109 : f32 to vector<8x256xf32>
    %111 = arith.mulf %110, %19 : vector<8x256xf32>
    %112 = arith.addf %108, %111 : vector<8x256xf32>
    %c2_56 = arith.constant 2 : index
    %c3_57 = arith.constant 3 : index
    %113 = memref.load %arg1[%c2_56, %c3_57] : memref<4x4xf32, #tpu.memory_space<smem>>
    %114 = vector.broadcast %113 : f32 to vector<8x256xf32>
    %115 = arith.mulf %114, %22 : vector<8x256xf32>
    %116 = arith.addf %112, %115 : vector<8x256xf32>
    %cst_58 = arith.constant 5.000000e-01 : f32
    %117 = vector.broadcast %cst_58 : f32 to vector<8x256xf32>
    %118 = arith.mulf %117, %116 : vector<8x256xf32>
    %cst_59 = arith.constant 4.471500e-02 : f32
    %119 = vector.broadcast %cst_59 : f32 to vector<8x256xf32>
    %120 = arith.mulf %119, %116 : vector<8x256xf32>
    %121 = arith.mulf %120, %116 : vector<8x256xf32>
    %122 = arith.mulf %121, %116 : vector<8x256xf32>
    %123 = arith.addf %116, %122 : vector<8x256xf32>
    %cst_60 = arith.constant 0.797884583 : f32
    %124 = vector.broadcast %cst_60 : f32 to vector<8x256xf32>
    %125 = arith.mulf %124, %123 : vector<8x256xf32>
    %126 = math.tanh %125 : vector<8x256xf32>
    %cst_61 = arith.constant 1.000000e+00 : f32
    %127 = vector.broadcast %cst_61 : f32 to vector<8x256xf32>
    %128 = arith.addf %127, %126 : vector<8x256xf32>
    %129 = arith.mulf %118, %128 : vector<8x256xf32>
    %130 = arith.index_cast %c0_i32 : i32 to index
    %c2_62 = arith.constant 2 : index
    %c0_63 = arith.constant 0 : index
    %c0_64 = arith.constant 0 : index
    %131 = vector.load %arg8[%130, %c2_62, %c0_63, %c0_64] : memref<3x4x8x256xf32, #tpu.memory_space<vmem>>, vector<1x1x8x256xf32>
    %132 = vector.shape_cast %131 : vector<1x1x8x256xf32> to vector<8x256xf32>
    %133 = vector.shape_cast %129 : vector<8x256xf32> to vector<1x1x8x256xf32>
    tpu.vector_store %arg8[%130, %c2_62, %c0_63, %c0_64], %133 {strides = array<i32>} : memref<3x4x8x256xf32, #tpu.memory_space<vmem>>, vector<1x1x8x256xf32>,
    %134 = vector.extract_strided_slice %10 {offsets = [24, 0], sizes = [8, 256], strides = [1, 1]} : vector<32x256xf32> to vector<8x256xf32>
    %c3_65 = arith.constant 3 : index
    %135 = memref.load %arg2[%c3_65] : memref<4xf32, #tpu.memory_space<smem>>
    %136 = vector.broadcast %135 : f32 to vector<8x256xf32>
    %137 = arith.addf %134, %136 : vector<8x256xf32>
    %c3_66 = arith.constant 3 : index
    %c0_67 = arith.constant 0 : index
    %138 = memref.load %arg1[%c3_66, %c0_67] : memref<4x4xf32, #tpu.memory_space<smem>>
    %139 = vector.broadcast %138 : f32 to vector<8x256xf32>
    %140 = arith.mulf %139, %13 : vector<8x256xf32>
    %141 = arith.addf %137, %140 : vector<8x256xf32>
    %c3_68 = arith.constant 3 : index
    %c1_69 = arith.constant 1 : index
    %142 = memref.load %arg1[%c3_68, %c1_69] : memref<4x4xf32, #tpu.memory_space<smem>>
    %143 = vector.broadcast %142 : f32 to vector<8x256xf32>
    %144 = arith.mulf %143, %16 : vector<8x256xf32>
    %145 = arith.addf %141, %144 : vector<8x256xf32>
    %c3_70 = arith.constant 3 : index
    %c2_71 = arith.constant 2 : index
    %146 = memref.load %arg1[%c3_70, %c2_71] : memref<4x4xf32, #tpu.memory_space<smem>>
    %147 = vector.broadcast %146 : f32 to vector<8x256xf32>
    %148 = arith.mulf %147, %19 : vector<8x256xf32>
    %149 = arith.addf %145, %148 : vector<8x256xf32>
    %c3_72 = arith.constant 3 : index
    %c3_73 = arith.constant 3 : index
    %150 = memref.load %arg1[%c3_72, %c3_73] : memref<4x4xf32, #tpu.memory_space<smem>>
    %151 = vector.broadcast %150 : f32 to vector<8x256xf32>
    %152 = arith.mulf %151, %22 : vector<8x256xf32>
    %153 = arith.addf %149, %152 : vector<8x256xf32>
    %cst_74 = arith.constant 5.000000e-01 : f32
    %154 = vector.broadcast %cst_74 : f32 to vector<8x256xf32>
    %155 = arith.mulf %154, %153 : vector<8x256xf32>
    %cst_75 = arith.constant 4.471500e-02 : f32
    %156 = vector.broadcast %cst_75 : f32 to vector<8x256xf32>
    %157 = arith.mulf %156, %153 : vector<8x256xf32>
    %158 = arith.mulf %157, %153 : vector<8x256xf32>
    %159 = arith.mulf %158, %153 : vector<8x256xf32>
    %160 = arith.addf %153, %159 : vector<8x256xf32>
    %cst_76 = arith.constant 0.797884583 : f32
    %161 = vector.broadcast %cst_76 : f32 to vector<8x256xf32>
    %162 = arith.mulf %161, %160 : vector<8x256xf32>
    %163 = math.tanh %162 : vector<8x256xf32>
    %cst_77 = arith.constant 1.000000e+00 : f32
    %164 = vector.broadcast %cst_77 : f32 to vector<8x256xf32>
    %165 = arith.addf %164, %163 : vector<8x256xf32>
    %166 = arith.mulf %155, %165 : vector<8x256xf32>
    %167 = arith.index_cast %c0_i32 : i32 to index
    %c3_78 = arith.constant 3 : index
    %c0_79 = arith.constant 0 : index
    %c0_80 = arith.constant 0 : index
    %168 = vector.load %arg8[%167, %c3_78, %c0_79, %c0_80] : memref<3x4x8x256xf32, #tpu.memory_space<vmem>>, vector<1x1x8x256xf32>
    %169 = vector.shape_cast %168 : vector<1x1x8x256xf32> to vector<8x256xf32>
    %170 = vector.shape_cast %166 : vector<8x256xf32> to vector<1x1x8x256xf32>
    tpu.vector_store %arg8[%167, %c3_78, %c0_79, %c0_80], %170 {strides = array<i32>} : memref<3x4x8x256xf32, #tpu.memory_space<vmem>>, vector<1x1x8x256xf32>,
    %c1_i32 = arith.constant 1 : i32
    %171 = arith.index_cast %c1_i32 : i32 to index
    %c0_81 = arith.constant 0 : index
    %c0_82 = arith.constant 0 : index
    %172 = vector.load %arg6[%171, %c0_81, %c0_82] : memref<3x32x64xf32, #tpu.memory_space<vmem>>, vector<1x32x64xf32>
    %173 = vector.shape_cast %172 : vector<1x32x64xf32> to vector<32x64xf32>
    %c0_83 = arith.constant 0 : index
    %c0_84 = arith.constant 0 : index
    %174 = vector.load %arg3[%c0_83, %c0_84] : memref<64x256xf32, #tpu.memory_space<vmem>>, vector<64x256xf32>
    %cst_85 = arith.constant dense<0.000000e+00> : vector<32x256xf32>
    %175 = tpu.matmul %173, %174, %cst_85 {dimension_numbers = #tpu.dot_dimension_numbers<[1], [0], [0], [1], [0, 0, 1, 1], [], []>} : vector<32x64xf32>, vector<64x256xf32>, vector<32x256xf32> -> vector<32x256xf32>
    %176 = arith.index_cast %c1_i32 : i32 to index
    %c0_86 = arith.constant 0 : index
    %c0_87 = arith.constant 0 : index
    %177 = vector.load %arg7[%176, %c0_86, %c0_87] : memref<3x32x64xf32, #tpu.memory_space<vmem>>, vector<1x32x64xf32>
    %178 = vector.shape_cast %177 : vector<1x32x64xf32> to vector<32x64xf32>
    %c0_88 = arith.constant 0 : index
    %c0_89 = arith.constant 0 : index
    %179 = vector.load %arg4[%c0_88, %c0_89] : memref<64x256xf32, #tpu.memory_space<vmem>>, vector<64x256xf32>
    %cst_90 = arith.constant dense<0.000000e+00> : vector<32x256xf32>
    %180 = tpu.matmul %178, %179, %cst_90 {dimension_numbers = #tpu.dot_dimension_numbers<[1], [0], [0], [1], [0, 0, 1, 1], [], []>} : vector<32x64xf32>, vector<64x256xf32>, vector<32x256xf32> -> vector<32x256xf32>
    %181 = arith.addf %175, %180 : vector<32x256xf32>
    %182 = arith.index_cast %c1_i32 : i32 to index
    %c0_91 = arith.constant 0 : index
    %c0_92 = arith.constant 0 : index
    %c0_93 = arith.constant 0 : index
    %183 = vector.load %arg5[%182, %c0_91, %c0_92, %c0_93] : memref<3x4x8x256xf32, #tpu.memory_space<vmem>>, vector<1x1x8x256xf32>
    %184 = vector.shape_cast %183 : vector<1x1x8x256xf32> to vector<8x256xf32>
    %185 = arith.index_cast %c1_i32 : i32 to index
    %c1_94 = arith.constant 1 : index
    %c0_95 = arith.constant 0 : index
    %c0_96 = arith.constant 0 : index
    %186 = vector.load %arg5[%185, %c1_94, %c0_95, %c0_96] : memref<3x4x8x256xf32, #tpu.memory_space<vmem>>, vector<1x1x8x256xf32>
    %187 = vector.shape_cast %186 : vector<1x1x8x256xf32> to vector<8x256xf32>
    %188 = arith.index_cast %c1_i32 : i32 to index
    %c2_97 = arith.constant 2 : index
    %c0_98 = arith.constant 0 : index
    %c0_99 = arith.constant 0 : index
    %189 = vector.load %arg5[%188, %c2_97, %c0_98, %c0_99] : memref<3x4x8x256xf32, #tpu.memory_space<vmem>>, vector<1x1x8x256xf32>
    %190 = vector.shape_cast %189 : vector<1x1x8x256xf32> to vector<8x256xf32>
    %191 = arith.index_cast %c1_i32 : i32 to index
    %c3_100 = arith.constant 3 : index
    %c0_101 = arith.constant 0 : index
    %c0_102 = arith.constant 0 : index
    %192 = vector.load %arg5[%191, %c3_100, %c0_101, %c0_102] : memref<3x4x8x256xf32, #tpu.memory_space<vmem>>, vector<1x1x8x256xf32>
    %193 = vector.shape_cast %192 : vector<1x1x8x256xf32> to vector<8x256xf32>
    %194 = vector.extract_strided_slice %181 {offsets = [0, 0], sizes = [8, 256], strides = [1, 1]} : vector<32x256xf32> to vector<8x256xf32>
    %c0_103 = arith.constant 0 : index
    %195 = memref.load %arg2[%c0_103] : memref<4xf32, #tpu.memory_space<smem>>
    %196 = vector.broadcast %195 : f32 to vector<8x256xf32>
    %197 = arith.addf %194, %196 : vector<8x256xf32>
    %c0_104 = arith.constant 0 : index
    %c0_105 = arith.constant 0 : index
    %198 = memref.load %arg1[%c0_104, %c0_105] : memref<4x4xf32, #tpu.memory_space<smem>>
    %199 = vector.broadcast %198 : f32 to vector<8x256xf32>
    %200 = arith.mulf %199, %184 : vector<8x256xf32>
    %201 = arith.addf %197, %200 : vector<8x256xf32>
    %c0_106 = arith.constant 0 : index
    %c1_107 = arith.constant 1 : index
    %202 = memref.load %arg1[%c0_106, %c1_107] : memref<4x4xf32, #tpu.memory_space<smem>>
    %203 = vector.broadcast %202 : f32 to vector<8x256xf32>
    %204 = arith.mulf %203, %187 : vector<8x256xf32>
    %205 = arith.addf %201, %204 : vector<8x256xf32>
    %c0_108 = arith.constant 0 : index
    %c2_109 = arith.constant 2 : index
    %206 = memref.load %arg1[%c0_108, %c2_109] : memref<4x4xf32, #tpu.memory_space<smem>>
    %207 = vector.broadcast %206 : f32 to vector<8x256xf32>
    %208 = arith.mulf %207, %190 : vector<8x256xf32>
    %209 = arith.addf %205, %208 : vector<8x256xf32>
    %c0_110 = arith.constant 0 : index
    %c3_111 = arith.constant 3 : index
    %210 = memref.load %arg1[%c0_110, %c3_111] : memref<4x4xf32, #tpu.memory_space<smem>>
    %211 = vector.broadcast %210 : f32 to vector<8x256xf32>
    %212 = arith.mulf %211, %193 : vector<8x256xf32>
    %213 = arith.addf %209, %212 : vector<8x256xf32>
    %cst_112 = arith.constant 5.000000e-01 : f32
    %214 = vector.broadcast %cst_112 : f32 to vector<8x256xf32>
    %215 = arith.mulf %214, %213 : vector<8x256xf32>
    %cst_113 = arith.constant 4.471500e-02 : f32
    %216 = vector.broadcast %cst_113 : f32 to vector<8x256xf32>
    %217 = arith.mulf %216, %213 : vector<8x256xf32>
    %218 = arith.mulf %217, %213 : vector<8x256xf32>
    %219 = arith.mulf %218, %213 : vector<8x256xf32>
    %220 = arith.addf %213, %219 : vector<8x256xf32>
    %cst_114 = arith.constant 0.797884583 : f32
    %221 = vector.broadcast %cst_114 : f32 to vector<8x256xf32>
    %222 = arith.mulf %221, %220 : vector<8x256xf32>
    %223 = math.tanh %222 : vector<8x256xf32>
    %cst_115 = arith.constant 1.000000e+00 : f32
    %224 = vector.broadcast %cst_115 : f32 to vector<8x256xf32>
    %225 = arith.addf %224, %223 : vector<8x256xf32>
    %226 = arith.mulf %215, %225 : vector<8x256xf32>
    %227 = arith.index_cast %c1_i32 : i32 to index
    %c0_116 = arith.constant 0 : index
    %c0_117 = arith.constant 0 : index
    %c0_118 = arith.constant 0 : index
    %228 = vector.load %arg8[%227, %c0_116, %c0_117, %c0_118] : memref<3x4x8x256xf32, #tpu.memory_space<vmem>>, vector<1x1x8x256xf32>
    %229 = vector.shape_cast %228 : vector<1x1x8x256xf32> to vector<8x256xf32>
    %230 = vector.shape_cast %226 : vector<8x256xf32> to vector<1x1x8x256xf32>
    tpu.vector_store %arg8[%227, %c0_116, %c0_117, %c0_118], %230 {strides = array<i32>} : memref<3x4x8x256xf32, #tpu.memory_space<vmem>>, vector<1x1x8x256xf32>,
    %231 = vector.extract_strided_slice %181 {offsets = [8, 0], sizes = [8, 256], strides = [1, 1]} : vector<32x256xf32> to vector<8x256xf32>
    %c1_119 = arith.constant 1 : index
    %232 = memref.load %arg2[%c1_119] : memref<4xf32, #tpu.memory_space<smem>>
    %233 = vector.broadcast %232 : f32 to vector<8x256xf32>
    %234 = arith.addf %231, %233 : vector<8x256xf32>
    %c1_120 = arith.constant 1 : index
    %c0_121 = arith.constant 0 : index
    %235 = memref.load %arg1[%c1_120, %c0_121] : memref<4x4xf32, #tpu.memory_space<smem>>
    %236 = vector.broadcast %235 : f32 to vector<8x256xf32>
    %237 = arith.mulf %236, %184 : vector<8x256xf32>
    %238 = arith.addf %234, %237 : vector<8x256xf32>
    %c1_122 = arith.constant 1 : index
    %c1_123 = arith.constant 1 : index
    %239 = memref.load %arg1[%c1_122, %c1_123] : memref<4x4xf32, #tpu.memory_space<smem>>
    %240 = vector.broadcast %239 : f32 to vector<8x256xf32>
    %241 = arith.mulf %240, %187 : vector<8x256xf32>
    %242 = arith.addf %238, %241 : vector<8x256xf32>
    %c1_124 = arith.constant 1 : index
    %c2_125 = arith.constant 2 : index
    %243 = memref.load %arg1[%c1_124, %c2_125] : memref<4x4xf32, #tpu.memory_space<smem>>
    %244 = vector.broadcast %243 : f32 to vector<8x256xf32>
    %245 = arith.mulf %244, %190 : vector<8x256xf32>
    %246 = arith.addf %242, %245 : vector<8x256xf32>
    %c1_126 = arith.constant 1 : index
    %c3_127 = arith.constant 3 : index
    %247 = memref.load %arg1[%c1_126, %c3_127] : memref<4x4xf32, #tpu.memory_space<smem>>
    %248 = vector.broadcast %247 : f32 to vector<8x256xf32>
    %249 = arith.mulf %248, %193 : vector<8x256xf32>
    %250 = arith.addf %246, %249 : vector<8x256xf32>
    %cst_128 = arith.constant 5.000000e-01 : f32
    %251 = vector.broadcast %cst_128 : f32 to vector<8x256xf32>
    %252 = arith.mulf %251, %250 : vector<8x256xf32>
    %cst_129 = arith.constant 4.471500e-02 : f32
    %253 = vector.broadcast %cst_129 : f32 to vector<8x256xf32>
    %254 = arith.mulf %253, %250 : vector<8x256xf32>
    %255 = arith.mulf %254, %250 : vector<8x256xf32>
    %256 = arith.mulf %255, %250 : vector<8x256xf32>
    %257 = arith.addf %250, %256 : vector<8x256xf32>
    %cst_130 = arith.constant 0.797884583 : f32
    %258 = vector.broadcast %cst_130 : f32 to vector<8x256xf32>
    %259 = arith.mulf %258, %257 : vector<8x256xf32>
    %260 = math.tanh %259 : vector<8x256xf32>
    %cst_131 = arith.constant 1.000000e+00 : f32
    %261 = vector.broadcast %cst_131 : f32 to vector<8x256xf32>
    %262 = arith.addf %261, %260 : vector<8x256xf32>
    %263 = arith.mulf %252, %262 : vector<8x256xf32>
    %264 = arith.index_cast %c1_i32 : i32 to index
    %c1_132 = arith.constant 1 : index
    %c0_133 = arith.constant 0 : index
    %c0_134 = arith.constant 0 : index
    %265 = vector.load %arg8[%264, %c1_132, %c0_133, %c0_134] : memref<3x4x8x256xf32, #tpu.memory_space<vmem>>, vector<1x1x8x256xf32>
    %266 = vector.shape_cast %265 : vector<1x1x8x256xf32> to vector<8x256xf32>
    %267 = vector.shape_cast %263 : vector<8x256xf32> to vector<1x1x8x256xf32>
    tpu.vector_store %arg8[%264, %c1_132, %c0_133, %c0_134], %267 {strides = array<i32>} : memref<3x4x8x256xf32, #tpu.memory_space<vmem>>, vector<1x1x8x256xf32>,
    %268 = vector.extract_strided_slice %181 {offsets = [16, 0], sizes = [8, 256], strides = [1, 1]} : vector<32x256xf32> to vector<8x256xf32>
    %c2_135 = arith.constant 2 : index
    %269 = memref.load %arg2[%c2_135] : memref<4xf32, #tpu.memory_space<smem>>
    %270 = vector.broadcast %269 : f32 to vector<8x256xf32>
    %271 = arith.addf %268, %270 : vector<8x256xf32>
    %c2_136 = arith.constant 2 : index
    %c0_137 = arith.constant 0 : index
    %272 = memref.load %arg1[%c2_136, %c0_137] : memref<4x4xf32, #tpu.memory_space<smem>>
    %273 = vector.broadcast %272 : f32 to vector<8x256xf32>
    %274 = arith.mulf %273, %184 : vector<8x256xf32>
    %275 = arith.addf %271, %274 : vector<8x256xf32>
    %c2_138 = arith.constant 2 : index
    %c1_139 = arith.constant 1 : index
    %276 = memref.load %arg1[%c2_138, %c1_139] : memref<4x4xf32, #tpu.memory_space<smem>>
    %277 = vector.broadcast %276 : f32 to vector<8x256xf32>
    %278 = arith.mulf %277, %187 : vector<8x256xf32>
    %279 = arith.addf %275, %278 : vector<8x256xf32>
    %c2_140 = arith.constant 2 : index
    %c2_141 = arith.constant 2 : index
    %280 = memref.load %arg1[%c2_140, %c2_141] : memref<4x4xf32, #tpu.memory_space<smem>>
    %281 = vector.broadcast %280 : f32 to vector<8x256xf32>
    %282 = arith.mulf %281, %190 : vector<8x256xf32>
    %283 = arith.addf %279, %282 : vector<8x256xf32>
    %c2_142 = arith.constant 2 : index
    %c3_143 = arith.constant 3 : index
    %284 = memref.load %arg1[%c2_142, %c3_143] : memref<4x4xf32, #tpu.memory_space<smem>>
    %285 = vector.broadcast %284 : f32 to vector<8x256xf32>
    %286 = arith.mulf %285, %193 : vector<8x256xf32>
    %287 = arith.addf %283, %286 : vector<8x256xf32>
    %cst_144 = arith.constant 5.000000e-01 : f32
    %288 = vector.broadcast %cst_144 : f32 to vector<8x256xf32>
    %289 = arith.mulf %288, %287 : vector<8x256xf32>
    %cst_145 = arith.constant 4.471500e-02 : f32
    %290 = vector.broadcast %cst_145 : f32 to vector<8x256xf32>
    %291 = arith.mulf %290, %287 : vector<8x256xf32>
    %292 = arith.mulf %291, %287 : vector<8x256xf32>
    %293 = arith.mulf %292, %287 : vector<8x256xf32>
    %294 = arith.addf %287, %293 : vector<8x256xf32>
    %cst_146 = arith.constant 0.797884583 : f32
    %295 = vector.broadcast %cst_146 : f32 to vector<8x256xf32>
    %296 = arith.mulf %295, %294 : vector<8x256xf32>
    %297 = math.tanh %296 : vector<8x256xf32>
    %cst_147 = arith.constant 1.000000e+00 : f32
    %298 = vector.broadcast %cst_147 : f32 to vector<8x256xf32>
    %299 = arith.addf %298, %297 : vector<8x256xf32>
    %300 = arith.mulf %289, %299 : vector<8x256xf32>
    %301 = arith.index_cast %c1_i32 : i32 to index
    %c2_148 = arith.constant 2 : index
    %c0_149 = arith.constant 0 : index
    %c0_150 = arith.constant 0 : index
    %302 = vector.load %arg8[%301, %c2_148, %c0_149, %c0_150] : memref<3x4x8x256xf32, #tpu.memory_space<vmem>>, vector<1x1x8x256xf32>
    %303 = vector.shape_cast %302 : vector<1x1x8x256xf32> to vector<8x256xf32>
    %304 = vector.shape_cast %300 : vector<8x256xf32> to vector<1x1x8x256xf32>
    tpu.vector_store %arg8[%301, %c2_148, %c0_149, %c0_150], %304 {strides = array<i32>} : memref<3x4x8x256xf32, #tpu.memory_space<vmem>>, vector<1x1x8x256xf32>,
    %305 = vector.extract_strided_slice %181 {offsets = [24, 0], sizes = [8, 256], strides = [1, 1]} : vector<32x256xf32> to vector<8x256xf32>
    %c3_151 = arith.constant 3 : index
    %306 = memref.load %arg2[%c3_151] : memref<4xf32, #tpu.memory_space<smem>>
    %307 = vector.broadcast %306 : f32 to vector<8x256xf32>
    %308 = arith.addf %305, %307 : vector<8x256xf32>
    %c3_152 = arith.constant 3 : index
    %c0_153 = arith.constant 0 : index
    %309 = memref.load %arg1[%c3_152, %c0_153] : memref<4x4xf32, #tpu.memory_space<smem>>
    %310 = vector.broadcast %309 : f32 to vector<8x256xf32>
    %311 = arith.mulf %310, %184 : vector<8x256xf32>
    %312 = arith.addf %308, %311 : vector<8x256xf32>
    %c3_154 = arith.constant 3 : index
    %c1_155 = arith.constant 1 : index
    %313 = memref.load %arg1[%c3_154, %c1_155] : memref<4x4xf32, #tpu.memory_space<smem>>
    %314 = vector.broadcast %313 : f32 to vector<8x256xf32>
    %315 = arith.mulf %314, %187 : vector<8x256xf32>
    %316 = arith.addf %312, %315 : vector<8x256xf32>
    %c3_156 = arith.constant 3 : index
    %c2_157 = arith.constant 2 : index
    %317 = memref.load %arg1[%c3_156, %c2_157] : memref<4x4xf32, #tpu.memory_space<smem>>
    %318 = vector.broadcast %317 : f32 to vector<8x256xf32>
    %319 = arith.mulf %318, %190 : vector<8x256xf32>
    %320 = arith.addf %316, %319 : vector<8x256xf32>
    %c3_158 = arith.constant 3 : index
    %c3_159 = arith.constant 3 : index
    %321 = memref.load %arg1[%c3_158, %c3_159] : memref<4x4xf32, #tpu.memory_space<smem>>
    %322 = vector.broadcast %321 : f32 to vector<8x256xf32>
    %323 = arith.mulf %322, %193 : vector<8x256xf32>
    %324 = arith.addf %320, %323 : vector<8x256xf32>
    %cst_160 = arith.constant 5.000000e-01 : f32
    %325 = vector.broadcast %cst_160 : f32 to vector<8x256xf32>
    %326 = arith.mulf %325, %324 : vector<8x256xf32>
    %cst_161 = arith.constant 4.471500e-02 : f32
    %327 = vector.broadcast %cst_161 : f32 to vector<8x256xf32>
    %328 = arith.mulf %327, %324 : vector<8x256xf32>
    %329 = arith.mulf %328, %324 : vector<8x256xf32>
    %330 = arith.mulf %329, %324 : vector<8x256xf32>
    %331 = arith.addf %324, %330 : vector<8x256xf32>
    %cst_162 = arith.constant 0.797884583 : f32
    %332 = vector.broadcast %cst_162 : f32 to vector<8x256xf32>
    %333 = arith.mulf %332, %331 : vector<8x256xf32>
    %334 = math.tanh %333 : vector<8x256xf32>
    %cst_163 = arith.constant 1.000000e+00 : f32
    %335 = vector.broadcast %cst_163 : f32 to vector<8x256xf32>
    %336 = arith.addf %335, %334 : vector<8x256xf32>
    %337 = arith.mulf %326, %336 : vector<8x256xf32>
    %338 = arith.index_cast %c1_i32 : i32 to index
    %c3_164 = arith.constant 3 : index
    %c0_165 = arith.constant 0 : index
    %c0_166 = arith.constant 0 : index
    %339 = vector.load %arg8[%338, %c3_164, %c0_165, %c0_166] : memref<3x4x8x256xf32, #tpu.memory_space<vmem>>, vector<1x1x8x256xf32>
    %340 = vector.shape_cast %339 : vector<1x1x8x256xf32> to vector<8x256xf32>
    %341 = vector.shape_cast %337 : vector<8x256xf32> to vector<1x1x8x256xf32>
    tpu.vector_store %arg8[%338, %c3_164, %c0_165, %c0_166], %341 {strides = array<i32>} : memref<3x4x8x256xf32, #tpu.memory_space<vmem>>, vector<1x1x8x256xf32>,
    %c2_i32 = arith.constant 2 : i32
    %342 = arith.index_cast %c2_i32 : i32 to index
    %c0_167 = arith.constant 0 : index
    %c0_168 = arith.constant 0 : index
    %343 = vector.load %arg6[%342, %c0_167, %c0_168] : memref<3x32x64xf32, #tpu.memory_space<vmem>>, vector<1x32x64xf32>
    %344 = vector.shape_cast %343 : vector<1x32x64xf32> to vector<32x64xf32>
    %c0_169 = arith.constant 0 : index
    %c0_170 = arith.constant 0 : index
    %345 = vector.load %arg3[%c0_169, %c0_170] : memref<64x256xf32, #tpu.memory_space<vmem>>, vector<64x256xf32>
    %cst_171 = arith.constant dense<0.000000e+00> : vector<32x256xf32>
    %346 = tpu.matmul %344, %345, %cst_171 {dimension_numbers = #tpu.dot_dimension_numbers<[1], [0], [0], [1], [0, 0, 1, 1], [], []>} : vector<32x64xf32>, vector<64x256xf32>, vector<32x256xf32> -> vector<32x256xf32>
    %347 = arith.index_cast %c2_i32 : i32 to index
    %c0_172 = arith.constant 0 : index
    %c0_173 = arith.constant 0 : index
    %348 = vector.load %arg7[%347, %c0_172, %c0_173] : memref<3x32x64xf32, #tpu.memory_space<vmem>>, vector<1x32x64xf32>
    %349 = vector.shape_cast %348 : vector<1x32x64xf32> to vector<32x64xf32>
    %c0_174 = arith.constant 0 : index
    %c0_175 = arith.constant 0 : index
    %350 = vector.load %arg4[%c0_174, %c0_175] : memref<64x256xf32, #tpu.memory_space<vmem>>, vector<64x256xf32>
    %cst_176 = arith.constant dense<0.000000e+00> : vector<32x256xf32>
    %351 = tpu.matmul %349, %350, %cst_176 {dimension_numbers = #tpu.dot_dimension_numbers<[1], [0], [0], [1], [0, 0, 1, 1], [], []>} : vector<32x64xf32>, vector<64x256xf32>, vector<32x256xf32> -> vector<32x256xf32>
    %352 = arith.addf %346, %351 : vector<32x256xf32>
    %353 = arith.index_cast %c2_i32 : i32 to index
    %c0_177 = arith.constant 0 : index
    %c0_178 = arith.constant 0 : index
    %c0_179 = arith.constant 0 : index
    %354 = vector.load %arg5[%353, %c0_177, %c0_178, %c0_179] : memref<3x4x8x256xf32, #tpu.memory_space<vmem>>, vector<1x1x8x256xf32>
    %355 = vector.shape_cast %354 : vector<1x1x8x256xf32> to vector<8x256xf32>
    %356 = arith.index_cast %c2_i32 : i32 to index
    %c1_180 = arith.constant 1 : index
    %c0_181 = arith.constant 0 : index
    %c0_182 = arith.constant 0 : index
    %357 = vector.load %arg5[%356, %c1_180, %c0_181, %c0_182] : memref<3x4x8x256xf32, #tpu.memory_space<vmem>>, vector<1x1x8x256xf32>
    %358 = vector.shape_cast %357 : vector<1x1x8x256xf32> to vector<8x256xf32>
    %359 = arith.index_cast %c2_i32 : i32 to index
    %c2_183 = arith.constant 2 : index
    %c0_184 = arith.constant 0 : index
    %c0_185 = arith.constant 0 : index
    %360 = vector.load %arg5[%359, %c2_183, %c0_184, %c0_185] : memref<3x4x8x256xf32, #tpu.memory_space<vmem>>, vector<1x1x8x256xf32>
    %361 = vector.shape_cast %360 : vector<1x1x8x256xf32> to vector<8x256xf32>
    %362 = arith.index_cast %c2_i32 : i32 to index
    %c3_186 = arith.constant 3 : index
    %c0_187 = arith.constant 0 : index
    %c0_188 = arith.constant 0 : index
    %363 = vector.load %arg5[%362, %c3_186, %c0_187, %c0_188] : memref<3x4x8x256xf32, #tpu.memory_space<vmem>>, vector<1x1x8x256xf32>
    %364 = vector.shape_cast %363 : vector<1x1x8x256xf32> to vector<8x256xf32>
    %365 = vector.extract_strided_slice %352 {offsets = [0, 0], sizes = [8, 256], strides = [1, 1]} : vector<32x256xf32> to vector<8x256xf32>
    %c0_189 = arith.constant 0 : index
    %366 = memref.load %arg2[%c0_189] : memref<4xf32, #tpu.memory_space<smem>>
    %367 = vector.broadcast %366 : f32 to vector<8x256xf32>
    %368 = arith.addf %365, %367 : vector<8x256xf32>
    %c0_190 = arith.constant 0 : index
    %c0_191 = arith.constant 0 : index
    %369 = memref.load %arg1[%c0_190, %c0_191] : memref<4x4xf32, #tpu.memory_space<smem>>
    %370 = vector.broadcast %369 : f32 to vector<8x256xf32>
    %371 = arith.mulf %370, %355 : vector<8x256xf32>
    %372 = arith.addf %368, %371 : vector<8x256xf32>
    %c0_192 = arith.constant 0 : index
    %c1_193 = arith.constant 1 : index
    %373 = memref.load %arg1[%c0_192, %c1_193] : memref<4x4xf32, #tpu.memory_space<smem>>
    %374 = vector.broadcast %373 : f32 to vector<8x256xf32>
    %375 = arith.mulf %374, %358 : vector<8x256xf32>
    %376 = arith.addf %372, %375 : vector<8x256xf32>
    %c0_194 = arith.constant 0 : index
    %c2_195 = arith.constant 2 : index
    %377 = memref.load %arg1[%c0_194, %c2_195] : memref<4x4xf32, #tpu.memory_space<smem>>
    %378 = vector.broadcast %377 : f32 to vector<8x256xf32>
    %379 = arith.mulf %378, %361 : vector<8x256xf32>
    %380 = arith.addf %376, %379 : vector<8x256xf32>
    %c0_196 = arith.constant 0 : index
    %c3_197 = arith.constant 3 : index
    %381 = memref.load %arg1[%c0_196, %c3_197] : memref<4x4xf32, #tpu.memory_space<smem>>
    %382 = vector.broadcast %381 : f32 to vector<8x256xf32>
    %383 = arith.mulf %382, %364 : vector<8x256xf32>
    %384 = arith.addf %380, %383 : vector<8x256xf32>
    %cst_198 = arith.constant 5.000000e-01 : f32
    %385 = vector.broadcast %cst_198 : f32 to vector<8x256xf32>
    %386 = arith.mulf %385, %384 : vector<8x256xf32>
    %cst_199 = arith.constant 4.471500e-02 : f32
    %387 = vector.broadcast %cst_199 : f32 to vector<8x256xf32>
    %388 = arith.mulf %387, %384 : vector<8x256xf32>
    %389 = arith.mulf %388, %384 : vector<8x256xf32>
    %390 = arith.mulf %389, %384 : vector<8x256xf32>
    %391 = arith.addf %384, %390 : vector<8x256xf32>
    %cst_200 = arith.constant 0.797884583 : f32
    %392 = vector.broadcast %cst_200 : f32 to vector<8x256xf32>
    %393 = arith.mulf %392, %391 : vector<8x256xf32>
    %394 = math.tanh %393 : vector<8x256xf32>
    %cst_201 = arith.constant 1.000000e+00 : f32
    %395 = vector.broadcast %cst_201 : f32 to vector<8x256xf32>
    %396 = arith.addf %395, %394 : vector<8x256xf32>
    %397 = arith.mulf %386, %396 : vector<8x256xf32>
    %398 = arith.index_cast %c2_i32 : i32 to index
    %c0_202 = arith.constant 0 : index
    %c0_203 = arith.constant 0 : index
    %c0_204 = arith.constant 0 : index
    %399 = vector.load %arg8[%398, %c0_202, %c0_203, %c0_204] : memref<3x4x8x256xf32, #tpu.memory_space<vmem>>, vector<1x1x8x256xf32>
    %400 = vector.shape_cast %399 : vector<1x1x8x256xf32> to vector<8x256xf32>
    %401 = vector.shape_cast %397 : vector<8x256xf32> to vector<1x1x8x256xf32>
    tpu.vector_store %arg8[%398, %c0_202, %c0_203, %c0_204], %401 {strides = array<i32>} : memref<3x4x8x256xf32, #tpu.memory_space<vmem>>, vector<1x1x8x256xf32>,
    %402 = vector.extract_strided_slice %352 {offsets = [8, 0], sizes = [8, 256], strides = [1, 1]} : vector<32x256xf32> to vector<8x256xf32>
    %c1_205 = arith.constant 1 : index
    %403 = memref.load %arg2[%c1_205] : memref<4xf32, #tpu.memory_space<smem>>
    %404 = vector.broadcast %403 : f32 to vector<8x256xf32>
    %405 = arith.addf %402, %404 : vector<8x256xf32>
    %c1_206 = arith.constant 1 : index
    %c0_207 = arith.constant 0 : index
    %406 = memref.load %arg1[%c1_206, %c0_207] : memref<4x4xf32, #tpu.memory_space<smem>>
    %407 = vector.broadcast %406 : f32 to vector<8x256xf32>
    %408 = arith.mulf %407, %355 : vector<8x256xf32>
    %409 = arith.addf %405, %408 : vector<8x256xf32>
    %c1_208 = arith.constant 1 : index
    %c1_209 = arith.constant 1 : index
    %410 = memref.load %arg1[%c1_208, %c1_209] : memref<4x4xf32, #tpu.memory_space<smem>>
    %411 = vector.broadcast %410 : f32 to vector<8x256xf32>
    %412 = arith.mulf %411, %358 : vector<8x256xf32>
    %413 = arith.addf %409, %412 : vector<8x256xf32>
    %c1_210 = arith.constant 1 : index
    %c2_211 = arith.constant 2 : index
    %414 = memref.load %arg1[%c1_210, %c2_211] : memref<4x4xf32, #tpu.memory_space<smem>>
    %415 = vector.broadcast %414 : f32 to vector<8x256xf32>
    %416 = arith.mulf %415, %361 : vector<8x256xf32>
    %417 = arith.addf %413, %416 : vector<8x256xf32>
    %c1_212 = arith.constant 1 : index
    %c3_213 = arith.constant 3 : index
    %418 = memref.load %arg1[%c1_212, %c3_213] : memref<4x4xf32, #tpu.memory_space<smem>>
    %419 = vector.broadcast %418 : f32 to vector<8x256xf32>
    %420 = arith.mulf %419, %364 : vector<8x256xf32>
    %421 = arith.addf %417, %420 : vector<8x256xf32>
    %cst_214 = arith.constant 5.000000e-01 : f32
    %422 = vector.broadcast %cst_214 : f32 to vector<8x256xf32>
    %423 = arith.mulf %422, %421 : vector<8x256xf32>
    %cst_215 = arith.constant 4.471500e-02 : f32
    %424 = vector.broadcast %cst_215 : f32 to vector<8x256xf32>
    %425 = arith.mulf %424, %421 : vector<8x256xf32>
    %426 = arith.mulf %425, %421 : vector<8x256xf32>
    %427 = arith.mulf %426, %421 : vector<8x256xf32>
    %428 = arith.addf %421, %427 : vector<8x256xf32>
    %cst_216 = arith.constant 0.797884583 : f32
    %429 = vector.broadcast %cst_216 : f32 to vector<8x256xf32>
    %430 = arith.mulf %429, %428 : vector<8x256xf32>
    %431 = math.tanh %430 : vector<8x256xf32>
    %cst_217 = arith.constant 1.000000e+00 : f32
    %432 = vector.broadcast %cst_217 : f32 to vector<8x256xf32>
    %433 = arith.addf %432, %431 : vector<8x256xf32>
    %434 = arith.mulf %423, %433 : vector<8x256xf32>
    %435 = arith.index_cast %c2_i32 : i32 to index
    %c1_218 = arith.constant 1 : index
    %c0_219 = arith.constant 0 : index
    %c0_220 = arith.constant 0 : index
    %436 = vector.load %arg8[%435, %c1_218, %c0_219, %c0_220] : memref<3x4x8x256xf32, #tpu.memory_space<vmem>>, vector<1x1x8x256xf32>
    %437 = vector.shape_cast %436 : vector<1x1x8x256xf32> to vector<8x256xf32>
    %438 = vector.shape_cast %434 : vector<8x256xf32> to vector<1x1x8x256xf32>
    tpu.vector_store %arg8[%435, %c1_218, %c0_219, %c0_220], %438 {strides = array<i32>} : memref<3x4x8x256xf32, #tpu.memory_space<vmem>>, vector<1x1x8x256xf32>,
    %439 = vector.extract_strided_slice %352 {offsets = [16, 0], sizes = [8, 256], strides = [1, 1]} : vector<32x256xf32> to vector<8x256xf32>
    %c2_221 = arith.constant 2 : index
    %440 = memref.load %arg2[%c2_221] : memref<4xf32, #tpu.memory_space<smem>>
    %441 = vector.broadcast %440 : f32 to vector<8x256xf32>
    %442 = arith.addf %439, %441 : vector<8x256xf32>
    %c2_222 = arith.constant 2 : index
    %c0_223 = arith.constant 0 : index
    %443 = memref.load %arg1[%c2_222, %c0_223] : memref<4x4xf32, #tpu.memory_space<smem>>
    %444 = vector.broadcast %443 : f32 to vector<8x256xf32>
    %445 = arith.mulf %444, %355 : vector<8x256xf32>
    %446 = arith.addf %442, %445 : vector<8x256xf32>
    %c2_224 = arith.constant 2 : index
    %c1_225 = arith.constant 1 : index
    %447 = memref.load %arg1[%c2_224, %c1_225] : memref<4x4xf32, #tpu.memory_space<smem>>
    %448 = vector.broadcast %447 : f32 to vector<8x256xf32>
    %449 = arith.mulf %448, %358 : vector<8x256xf32>
    %450 = arith.addf %446, %449 : vector<8x256xf32>
    %c2_226 = arith.constant 2 : index
    %c2_227 = arith.constant 2 : index
    %451 = memref.load %arg1[%c2_226, %c2_227] : memref<4x4xf32, #tpu.memory_space<smem>>
    %452 = vector.broadcast %451 : f32 to vector<8x256xf32>
    %453 = arith.mulf %452, %361 : vector<8x256xf32>
    %454 = arith.addf %450, %453 : vector<8x256xf32>
    %c2_228 = arith.constant 2 : index
    %c3_229 = arith.constant 3 : index
    %455 = memref.load %arg1[%c2_228, %c3_229] : memref<4x4xf32, #tpu.memory_space<smem>>
    %456 = vector.broadcast %455 : f32 to vector<8x256xf32>
    %457 = arith.mulf %456, %364 : vector<8x256xf32>
    %458 = arith.addf %454, %457 : vector<8x256xf32>
    %cst_230 = arith.constant 5.000000e-01 : f32
    %459 = vector.broadcast %cst_230 : f32 to vector<8x256xf32>
    %460 = arith.mulf %459, %458 : vector<8x256xf32>
    %cst_231 = arith.constant 4.471500e-02 : f32
    %461 = vector.broadcast %cst_231 : f32 to vector<8x256xf32>
    %462 = arith.mulf %461, %458 : vector<8x256xf32>
    %463 = arith.mulf %462, %458 : vector<8x256xf32>
    %464 = arith.mulf %463, %458 : vector<8x256xf32>
    %465 = arith.addf %458, %464 : vector<8x256xf32>
    %cst_232 = arith.constant 0.797884583 : f32
    %466 = vector.broadcast %cst_232 : f32 to vector<8x256xf32>
    %467 = arith.mulf %466, %465 : vector<8x256xf32>
    %468 = math.tanh %467 : vector<8x256xf32>
    %cst_233 = arith.constant 1.000000e+00 : f32
    %469 = vector.broadcast %cst_233 : f32 to vector<8x256xf32>
    %470 = arith.addf %469, %468 : vector<8x256xf32>
    %471 = arith.mulf %460, %470 : vector<8x256xf32>
    %472 = arith.index_cast %c2_i32 : i32 to index
    %c2_234 = arith.constant 2 : index
    %c0_235 = arith.constant 0 : index
    %c0_236 = arith.constant 0 : index
    %473 = vector.load %arg8[%472, %c2_234, %c0_235, %c0_236] : memref<3x4x8x256xf32, #tpu.memory_space<vmem>>, vector<1x1x8x256xf32>
    %474 = vector.shape_cast %473 : vector<1x1x8x256xf32> to vector<8x256xf32>
    %475 = vector.shape_cast %471 : vector<8x256xf32> to vector<1x1x8x256xf32>
    tpu.vector_store %arg8[%472, %c2_234, %c0_235, %c0_236], %475 {strides = array<i32>} : memref<3x4x8x256xf32, #tpu.memory_space<vmem>>, vector<1x1x8x256xf32>,
    %476 = vector.extract_strided_slice %352 {offsets = [24, 0], sizes = [8, 256], strides = [1, 1]} : vector<32x256xf32> to vector<8x256xf32>
    %c3_237 = arith.constant 3 : index
    %477 = memref.load %arg2[%c3_237] : memref<4xf32, #tpu.memory_space<smem>>
    %478 = vector.broadcast %477 : f32 to vector<8x256xf32>
    %479 = arith.addf %476, %478 : vector<8x256xf32>
    %c3_238 = arith.constant 3 : index
    %c0_239 = arith.constant 0 : index
    %480 = memref.load %arg1[%c3_238, %c0_239] : memref<4x4xf32, #tpu.memory_space<smem>>
    %481 = vector.broadcast %480 : f32 to vector<8x256xf32>
    %482 = arith.mulf %481, %355 : vector<8x256xf32>
    %483 = arith.addf %479, %482 : vector<8x256xf32>
    %c3_240 = arith.constant 3 : index
    %c1_241 = arith.constant 1 : index
    %484 = memref.load %arg1[%c3_240, %c1_241] : memref<4x4xf32, #tpu.memory_space<smem>>
    %485 = vector.broadcast %484 : f32 to vector<8x256xf32>
    %486 = arith.mulf %485, %358 : vector<8x256xf32>
    %487 = arith.addf %483, %486 : vector<8x256xf32>
    %c3_242 = arith.constant 3 : index
    %c2_243 = arith.constant 2 : index
    %488 = memref.load %arg1[%c3_242, %c2_243] : memref<4x4xf32, #tpu.memory_space<smem>>
    %489 = vector.broadcast %488 : f32 to vector<8x256xf32>
    %490 = arith.mulf %489, %361 : vector<8x256xf32>
    %491 = arith.addf %487, %490 : vector<8x256xf32>
    %c3_244 = arith.constant 3 : index
    %c3_245 = arith.constant 3 : index
    %492 = memref.load %arg1[%c3_244, %c3_245] : memref<4x4xf32, #tpu.memory_space<smem>>
    %493 = vector.broadcast %492 : f32 to vector<8x256xf32>
    %494 = arith.mulf %493, %364 : vector<8x256xf32>
    %495 = arith.addf %491, %494 : vector<8x256xf32>
    %cst_246 = arith.constant 5.000000e-01 : f32
    %496 = vector.broadcast %cst_246 : f32 to vector<8x256xf32>
    %497 = arith.mulf %496, %495 : vector<8x256xf32>
    %cst_247 = arith.constant 4.471500e-02 : f32
    %498 = vector.broadcast %cst_247 : f32 to vector<8x256xf32>
    %499 = arith.mulf %498, %495 : vector<8x256xf32>
    %500 = arith.mulf %499, %495 : vector<8x256xf32>
    %501 = arith.mulf %500, %495 : vector<8x256xf32>
    %502 = arith.addf %495, %501 : vector<8x256xf32>
    %cst_248 = arith.constant 0.797884583 : f32
    %503 = vector.broadcast %cst_248 : f32 to vector<8x256xf32>
    %504 = arith.mulf %503, %502 : vector<8x256xf32>
    %505 = math.tanh %504 : vector<8x256xf32>
    %cst_249 = arith.constant 1.000000e+00 : f32
    %506 = vector.broadcast %cst_249 : f32 to vector<8x256xf32>
    %507 = arith.addf %506, %505 : vector<8x256xf32>
    %508 = arith.mulf %497, %507 : vector<8x256xf32>
    %509 = arith.index_cast %c2_i32 : i32 to index
    %c3_250 = arith.constant 3 : index
    %c0_251 = arith.constant 0 : index
    %c0_252 = arith.constant 0 : index
    %510 = vector.load %arg8[%509, %c3_250, %c0_251, %c0_252] : memref<3x4x8x256xf32, #tpu.memory_space<vmem>>, vector<1x1x8x256xf32>
    %511 = vector.shape_cast %510 : vector<1x1x8x256xf32> to vector<8x256xf32>
    %512 = vector.shape_cast %508 : vector<8x256xf32> to vector<1x1x8x256xf32>
    tpu.vector_store %arg8[%509, %c3_250, %c0_251, %c0_252], %512 {strides = array<i32>} : memref<3x4x8x256xf32, #tpu.memory_space<vmem>>, vector<1x1x8x256xf32>,
    %c3_i32 = arith.constant 3 : i32
    return
  }
  func.func @transform_0(%arg0: i32) -> (i32, i32) {
    %c0_i32 = arith.constant 0 : i32
    %c0_i32_0 = arith.constant 0 : i32
    %c0_i32_1 = arith.constant 0 : i32
    return %c0_i32, %c0_i32_0 : i32, i32
  }
  func.func @transform_1(%arg0: i32) -> i32 {
    %c0_i32 = arith.constant 0 : i32
    %c0_i32_0 = arith.constant 0 : i32
    return %c0_i32 : i32
  }
  func.func @transform_2(%arg0: i32) -> (i32, i32) {
    %c0_i32 = arith.constant 0 : i32
    %c0_i32_0 = arith.constant 0 : i32
    %c0_i32_1 = arith.constant 0 : i32
    return %c0_i32, %c0_i32_0 : i32, i32
  }
  func.func @transform_3(%arg0: i32) -> (i32, i32) {
    %c0_i32 = arith.constant 0 : i32
    %c0_i32_0 = arith.constant 0 : i32
    %c0_i32_1 = arith.constant 0 : i32
    return %c0_i32, %c0_i32_0 : i32, i32
  }
  func.func @transform_4(%arg0: i32) -> (i32, i32, i32, i32) {
    %c0_i32 = arith.constant 0 : i32
    %c0_i32_0 = arith.constant 0 : i32
    %c0_i32_1 = arith.constant 0 : i32
    %c0_i32_2 = arith.constant 0 : i32
    return %arg0, %c0_i32, %c0_i32_0, %c0_i32_1 : i32, i32, i32, i32
  }
  func.func @transform_5(%arg0: i32) -> (i32, i32, i32) {
    %c0_i32 = arith.constant 0 : i32
    %c0_i32_0 = arith.constant 0 : i32
    %c0_i32_1 = arith.constant 0 : i32
    return %arg0, %c0_i32, %c0_i32_0 : i32, i32, i32
  }
  func.func @transform_6(%arg0: i32) -> (i32, i32, i32) {
    %c0_i32 = arith.constant 0 : i32
    %c0_i32_0 = arith.constant 0 : i32
    %c0_i32_1 = arith.constant 0 : i32
    return %arg0, %c0_i32, %c0_i32_0 : i32, i32, i32
  }
  func.func @transform_7(%arg0: i32) -> (i32, i32, i32, i32) {
    %c0_i32 = arith.constant 0 : i32
    %c0_i32_0 = arith.constant 0 : i32
    %c0_i32_1 = arith.constant 0 : i32
    %c0_i32_2 = arith.constant 0 : i32
    return %arg0, %c0_i32, %c0_i32_0, %c0_i32_1 : i32, i32, i32, i32
  }
}

</mosaic_0001>

<llo_original>
// kernel: fno_block_forward.2
$region0: #{fno_block_forward.2}
  #allocation0 [shape = 'u32[]', space=smem, size = 0x4, offset = 0x4, fixed_abs, tag = 'smem constant byte address 0x4 - core index']
  #allocation1 [shape = 'u32[144,128]{1,0:T(1,128)}', space=vmem, size = 0x12000, scoped, tag = 'internal scratch']
  %s0 = inlined_call_operand.vmem [shape: f32[2,3,8,256], index: 0, kind: input, shape index: {}]
  %s1 = inlined_call_operand.vmem [shape: f32[3,4,4,256], index: 1, kind: input, shape index: {}]
  %s2 = inlined_call_operand.vmem [shape: f32[3,4,4,256], index: 2, kind: input, shape index: {}]
  %s3 = inlined_call_operand.vmem [shape: f32[2,3,8,256], index: 3, kind: output, shape index: {}]
  %s4 = sld [smem:[#allocation0]]
  $region22: #{fno_block_forward.2} parent=0
    _
  %s6 = ssub.s32 1, %s4
  %s7 = scalar_select 0, %s6, %s4
  // Predicated region
  $region2: #{fno_block_forward.2} parent=0 // pred_check
    _
  $region3: #{fno_block_forward.2} parent=0 // pred_check_branch
    %9 = sbr.rel (0) target = $region5
  $region4: #{fno_block_forward.2} parent=0 // pred_region
    _
  $region5: #{fno_block_forward.2} parent=0 // pred_fallthru
    _
  // Predicated region
  $region6: #{fno_block_forward.2} parent=0 // pred_check
    _
  $region7: #{fno_block_forward.2} parent=0 // pred_check_branch
    %11 = sbr.rel (0) target = $region9
  $region8: #{fno_block_forward.2} parent=0 // pred_region
    _
  $region9: #{fno_block_forward.2} parent=0 // pred_fallthru
    _
  // Predicated region
  $region10: #{fno_block_forward.2} parent=0 // pred_check
    _
  $region11: #{fno_block_forward.2} parent=0 // pred_check_branch
    %13 = sbr.rel (0) target = $region13
  $region12: #{fno_block_forward.2} parent=0 // pred_region
    _
  $region13: #{fno_block_forward.2} parent=0 // pred_fallthru
    _
  %v14 = vld [vmem:[%s0] ss:$8 sm:$0x3]
  %v16 = vlaneseq
  %v17 = vshrl.u32 %v16, 7
  %v18 = vsub.s32 0, %v17
  %v19 = vrot.slane %v14, %v18
  %v20 = vlaneseq
  %v21 = vshrl.u32 %v20, 7
  %v22 = vsub.s32 1, %v21
  %v23 = vrot.slane %v14, %v22
  %s26 = scalar_lea.vmem %s0, 4
  %v27 = vld [vmem:[%s26] ss:$8 sm:$0x3]
  %v29 = vlaneseq
  %v30 = vshrl.u32 %v29, 7
  %v31 = vsub.s32 0, %v30
  %v32 = vrot.slane %v27, %v31
  %v33 = vlaneseq
  %v34 = vshrl.u32 %v33, 7
  %v35 = vsub.s32 1, %v34
  %v36 = vrot.slane %v27, %v35
  %v39 = vld [vmem:[%s1] sm:$0xff]
  %v40 = vld [vmem:[%s2] sm:$0xff]
  %v42 = vcombine.high %v39, %v39
  %v44 = vmul.f32 %v19, %v39
  %v45 = vmul.f32 %v23, %v42
  %v46 = vadd.f32 %v44, 0.0
  %v47 = vadd.f32 %v45, 0.0
  %v49 = vcombine.high %v40, %v40
  %v51 = vmul.f32 %v32, %v40
  %v52 = vmul.f32 %v36, %v49
  %v53 = vsub.f32 %v46, %v51
  %v54 = vsub.f32 %v47, %v52
  %v55 = vmul.f32 %v19, %v40
  %v56 = vmul.f32 %v23, %v49
  %v57 = vadd.f32 %v55, 0.0
  %v58 = vadd.f32 %v56, 0.0
  %v59 = vmul.f32 %v32, %v39
  %v60 = vmul.f32 %v36, %v42
  %v61 = vadd.f32 %v57, %v59
  %v62 = vadd.f32 %v58, %v60
  %s63 = scalar_lea.vmem %s0, 1
  %v64 = vld [vmem:[%s63] ss:$8 sm:$0x3]
  %v66 = vlaneseq
  %v67 = vshrl.u32 %v66, 7
  %v68 = vsub.s32 0, %v67
  %v69 = vrot.slane %v64, %v68
  %v70 = vlaneseq
  %v71 = vshrl.u32 %v70, 7
  %v72 = vsub.s32 1, %v71
  %v73 = vrot.slane %v64, %v72
  %s76 = scalar_lea.vmem %s0, 5
  %v77 = vld [vmem:[%s76] ss:$8 sm:$0x3]
  %v79 = vlaneseq
  %v80 = vshrl.u32 %v79, 7
  %v81 = vsub.s32 0, %v80
  %v82 = vrot.slane %v77, %v81
  %v83 = vlaneseq
  %v84 = vshrl.u32 %v83, 7
  %v85 = vsub.s32 1, %v84
  %v86 = vrot.slane %v77, %v85
  %s89 = scalar_lea.vmem %s1, 8
  %v90 = vld [vmem:[%s89] sm:$0xff]
  %s91 = scalar_lea.vmem %s2, 8
  %v92 = vld [vmem:[%s91] sm:$0xff]
  %v94 = vcombine.high %v90, %v90
  %v96 = vmul.f32 %v69, %v90
  %v97 = vmul.f32 %v73, %v94
  %v98 = vadd.f32 %v53, %v96
  %v99 = vadd.f32 %v54, %v97
  %v101 = vcombine.high %v92, %v92
  %v103 = vmul.f32 %v82, %v92
  %v104 = vmul.f32 %v86, %v101
  %v105 = vsub.f32 %v98, %v103
  %v106 = vsub.f32 %v99, %v104
  %v107 = vmul.f32 %v69, %v92
  %v108 = vmul.f32 %v73, %v101
  %v109 = vadd.f32 %v61, %v107
  %v110 = vadd.f32 %v62, %v108
  %v111 = vmul.f32 %v82, %v90
  %v112 = vmul.f32 %v86, %v94
  %v113 = vadd.f32 %v109, %v111
  %v114 = vadd.f32 %v110, %v112
  %s115 = scalar_lea.vmem %s0, 2
  %v116 = vld [vmem:[%s115] ss:$8 sm:$0x3]
  %v118 = vlaneseq
  %v119 = vshrl.u32 %v118, 7
  %v120 = vsub.s32 0, %v119
  %v121 = vrot.slane %v116, %v120
  %v122 = vlaneseq
  %v123 = vshrl.u32 %v122, 7
  %v124 = vsub.s32 1, %v123
  %v125 = vrot.slane %v116, %v124
  %s128 = scalar_lea.vmem %s0, 6
  %v129 = vld [vmem:[%s128] ss:$8 sm:$0x3]
  %v131 = vlaneseq
  %v132 = vshrl.u32 %v131, 7
  %v133 = vsub.s32 0, %v132
  %v134 = vrot.slane %v129, %v133
  %v135 = vlaneseq
  %v136 = vshrl.u32 %v135, 7
  %v137 = vsub.s32 1, %v136
  %v138 = vrot.slane %v129, %v137
  %s141 = scalar_lea.vmem %s1, 16
  %v142 = vld [vmem:[%s141] sm:$0xff]
  %s143 = scalar_lea.vmem %s2, 16
  %v144 = vld [vmem:[%s143] sm:$0xff]
  %v146 = vcombine.high %v142, %v142
  %v148 = vmul.f32 %v121, %v142
  %v149 = vmul.f32 %v125, %v146
  %v150 = vadd.f32 %v105, %v148
  %v151 = vadd.f32 %v106, %v149
  %v153 = vcombine.high %v144, %v144
  %v155 = vmul.f32 %v134, %v144
  %v156 = vmul.f32 %v138, %v153
  %v157 = vsub.f32 %v150, %v155
  %v158 = vsub.f32 %v151, %v156
  %v159 = vmul.f32 %v121, %v144
  %v160 = vmul.f32 %v125, %v153
  %v161 = vadd.f32 %v113, %v159
  %v162 = vadd.f32 %v114, %v160
  %v163 = vmul.f32 %v134, %v142
  %v164 = vmul.f32 %v138, %v146
  %v165 = vadd.f32 %v161, %v163
  %v166 = vadd.f32 %v162, %v164
  %s167 = scalar_lea.vmem %s0, 3
  %v168 = vld [vmem:[%s167] ss:$8 sm:$0x3]
  %v170 = vlaneseq
  %v171 = vshrl.u32 %v170, 7
  %v172 = vsub.s32 0, %v171
  %v173 = vrot.slane %v168, %v172
  %v174 = vlaneseq
  %v175 = vshrl.u32 %v174, 7
  %v176 = vsub.s32 1, %v175
  %v177 = vrot.slane %v168, %v176
  %s180 = scalar_lea.vmem %s0, 7
  %v181 = vld [vmem:[%s180] ss:$8 sm:$0x3]
  %v183 = vlaneseq
  %v184 = vshrl.u32 %v183, 7
  %v185 = vsub.s32 0, %v184
  %v186 = vrot.slane %v181, %v185
  %v187 = vlaneseq
  %v188 = vshrl.u32 %v187, 7
  %v189 = vsub.s32 1, %v188
  %v190 = vrot.slane %v181, %v189
  %s193 = scalar_lea.vmem %s1, 24
  %v194 = vld [vmem:[%s193] sm:$0xff]
  %s195 = scalar_lea.vmem %s2, 24
  %v196 = vld [vmem:[%s195] sm:$0xff]
  %v198 = vcombine.high %v194, %v194
  %v200 = vmul.f32 %v173, %v194
  %v201 = vmul.f32 %v177, %v198
  %v202 = vadd.f32 %v157, %v200
  %v203 = vadd.f32 %v158, %v201
  %v205 = vcombine.high %v196, %v196
  %v207 = vmul.f32 %v186, %v196
  %v208 = vmul.f32 %v190, %v205
  %v209 = vsub.f32 %v202, %v207
  %v210 = vsub.f32 %v203, %v208
  %v211 = vmul.f32 %v173, %v196
  %v212 = vmul.f32 %v177, %v205
  %v213 = vadd.f32 %v165, %v211
  %v214 = vadd.f32 %v166, %v212
  %v215 = vmul.f32 %v186, %v194
  %v216 = vmul.f32 %v190, %v198
  %v217 = vadd.f32 %v213, %v215
  %v218 = vadd.f32 %v214, %v216
  %219 = vst [vmem:[%s3] sm:$0xf] %v209
  %220 = vst [vmem:[%s3 + $0x8] sm:$0xf] %v210
  %v223 = vrot.slane %v217, 4
  %v224 = vrot.slane %v218, 4
  %227 = vst [vmem:[%s3] sm:$0xf0] %v223
  %228 = vst [vmem:[%s3 + $0x8] sm:$0xf0] %v224
  %s229 = scalar_lea.vmem %s0, 16
  %v230 = vld [vmem:[%s229] ss:$8 sm:$0x3]
  %v232 = vlaneseq
  %v233 = vshrl.u32 %v232, 7
  %v234 = vsub.s32 0, %v233
  %v235 = vrot.slane %v230, %v234
  %v236 = vlaneseq
  %v237 = vshrl.u32 %v236, 7
  %v238 = vsub.s32 1, %v237
  %v239 = vrot.slane %v230, %v238
  %s242 = scalar_lea.vmem %s229, 4
  %v243 = vld [vmem:[%s242] ss:$8 sm:$0x3]
  %v245 = vlaneseq
  %v246 = vshrl.u32 %v245, 7
  %v247 = vsub.s32 0, %v246
  %v248 = vrot.slane %v243, %v247
  %v249 = vlaneseq
  %v250 = vshrl.u32 %v249, 7
  %v251 = vsub.s32 1, %v250
  %v252 = vrot.slane %v243, %v251
  %s255 = scalar_lea.vmem %s1, 32
  %v256 = vld [vmem:[%s255] sm:$0xff]
  %s257 = scalar_lea.vmem %s2, 32
  %v258 = vld [vmem:[%s257] sm:$0xff]
  %v260 = vcombine.high %v256, %v256
  %v262 = vmul.f32 %v235, %v256
  %v263 = vmul.f32 %v239, %v260
  %v264 = vadd.f32 %v262, 0.0
  %v265 = vadd.f32 %v263, 0.0
  %v267 = vcombine.high %v258, %v258
  %v269 = vmul.f32 %v248, %v258
  %v270 = vmul.f32 %v252, %v267
  %v271 = vsub.f32 %v264, %v269
  %v272 = vsub.f32 %v265, %v270
  %v273 = vmul.f32 %v235, %v258
  %v274 = vmul.f32 %v239, %v267
  %v275 = vadd.f32 %v273, 0.0
  %v276 = vadd.f32 %v274, 0.0
  %v277 = vmul.f32 %v248, %v256
  %v278 = vmul.f32 %v252, %v260
  %v279 = vadd.f32 %v275, %v277
  %v280 = vadd.f32 %v276, %v278
  %s281 = scalar_lea.vmem %s229, 1
  %v282 = vld [vmem:[%s281] ss:$8 sm:$0x3]
  %v284 = vlaneseq
  %v285 = vshrl.u32 %v284, 7
  %v286 = vsub.s32 0, %v285
  %v287 = vrot.slane %v282, %v286
  %v288 = vlaneseq
  %v289 = vshrl.u32 %v288, 7
  %v290 = vsub.s32 1, %v289
  %v291 = vrot.slane %v282, %v290
  %s294 = scalar_lea.vmem %s229, 5
  %v295 = vld [vmem:[%s294] ss:$8 sm:$0x3]
  %v297 = vlaneseq
  %v298 = vshrl.u32 %v297, 7
  %v299 = vsub.s32 0, %v298
  %v300 = vrot.slane %v295, %v299
  %v301 = vlaneseq
  %v302 = vshrl.u32 %v301, 7
  %v303 = vsub.s32 1, %v302
  %v304 = vrot.slane %v295, %v303
  %s307 = scalar_lea.vmem %s1, 40
  %v308 = vld [vmem:[%s307] sm:$0xff]
  %s309 = scalar_lea.vmem %s2, 40
  %v310 = vld [vmem:[%s309] sm:$0xff]
  %v312 = vcombine.high %v308, %v308
  %v314 = vmul.f32 %v287, %v308
  %v315 = vmul.f32 %v291, %v312
  %v316 = vadd.f32 %v271, %v314
  %v317 = vadd.f32 %v272, %v315
  %v319 = vcombine.high %v310, %v310
  %v321 = vmul.f32 %v300, %v310
  %v322 = vmul.f32 %v304, %v319
  %v323 = vsub.f32 %v316, %v321
  %v324 = vsub.f32 %v317, %v322
  %v325 = vmul.f32 %v287, %v310
  %v326 = vmul.f32 %v291, %v319
  %v327 = vadd.f32 %v279, %v325
  %v328 = vadd.f32 %v280, %v326
  %v329 = vmul.f32 %v300, %v308
  %v330 = vmul.f32 %v304, %v312
  %v331 = vadd.f32 %v327, %v329
  %v332 = vadd.f32 %v328, %v330
  %s333 = scalar_lea.vmem %s229, 2
  %v334 = vld [vmem:[%s333] ss:$8 sm:$0x3]
  %v336 = vlaneseq
  %v337 = vshrl.u32 %v336, 7
  %v338 = vsub.s32 0, %v337
  %v339 = vrot.slane %v334, %v338
  %v340 = vlaneseq
  %v341 = vshrl.u32 %v340, 7
  %v342 = vsub.s32 1, %v341
  %v343 = vrot.slane %v334, %v342
  %s346 = scalar_lea.vmem %s229, 6
  %v347 = vld [vmem:[%s346] ss:$8 sm:$0x3]
  %v349 = vlaneseq
  %v350 = vshrl.u32 %v349, 7
  %v351 = vsub.s32 0, %v350
  %v352 = vrot.slane %v347, %v351
  %v353 = vlaneseq
  %v354 = vshrl.u32 %v353, 7
  %v355 = vsub.s32 1, %v354
  %v356 = vrot.slane %v347, %v355
  %s359 = scalar_lea.vmem %s1, 48
  %v360 = vld [vmem:[%s359] sm:$0xff]
  %s361 = scalar_lea.vmem %s2, 48
  %v362 = vld [vmem:[%s361] sm:$0xff]
  %v364 = vcombine.high %v360, %v360
  %v366 = vmul.f32 %v339, %v360
  %v367 = vmul.f32 %v343, %v364
  %v368 = vadd.f32 %v323, %v366
  %v369 = vadd.f32 %v324, %v367
  %v371 = vcombine.high %v362, %v362
  %v373 = vmul.f32 %v352, %v362
  %v374 = vmul.f32 %v356, %v371
  %v375 = vsub.f32 %v368, %v373
  %v376 = vsub.f32 %v369, %v374
  %v377 = vmul.f32 %v339, %v362
  %v378 = vmul.f32 %v343, %v371
  %v379 = vadd.f32 %v331, %v377
  %v380 = vadd.f32 %v332, %v378
  %v381 = vmul.f32 %v352, %v360
  %v382 = vmul.f32 %v356, %v364
  %v383 = vadd.f32 %v379, %v381
  %v384 = vadd.f32 %v380, %v382
  %s385 = scalar_lea.vmem %s229, 3
  %v386 = vld [vmem:[%s385] ss:$8 sm:$0x3]
  %v388 = vlaneseq
  %v389 = vshrl.u32 %v388, 7
  %v390 = vsub.s32 0, %v389
  %v391 = vrot.slane %v386, %v390
  %v392 = vlaneseq
  %v393 = vshrl.u32 %v392, 7
  %v394 = vsub.s32 1, %v393
  %v395 = vrot.slane %v386, %v394
  %s398 = scalar_lea.vmem %s229, 7
  %v399 = vld [vmem:[%s398] ss:$8 sm:$0x3]
  %v401 = vlaneseq
  %v402 = vshrl.u32 %v401, 7
  %v403 = vsub.s32 0, %v402
  %v404 = vrot.slane %v399, %v403
  %v405 = vlaneseq
  %v406 = vshrl.u32 %v405, 7
  %v407 = vsub.s32 1, %v406
  %v408 = vrot.slane %v399, %v407
  %s411 = scalar_lea.vmem %s1, 56
  %v412 = vld [vmem:[%s411] sm:$0xff]
  %s413 = scalar_lea.vmem %s2, 56
  %v414 = vld [vmem:[%s413] sm:$0xff]
  %v416 = vcombine.high %v412, %v412
  %v418 = vmul.f32 %v391, %v412
  %v419 = vmul.f32 %v395, %v416
  %v420 = vadd.f32 %v375, %v418
  %v421 = vadd.f32 %v376, %v419
  %v423 = vcombine.high %v414, %v414
  %v425 = vmul.f32 %v404, %v414
  %v426 = vmul.f32 %v408, %v423
  %v427 = vsub.f32 %v420, %v425
  %v428 = vsub.f32 %v421, %v426
  %v429 = vmul.f32 %v391, %v414
  %v430 = vmul.f32 %v395, %v423
  %v431 = vadd.f32 %v383, %v429
  %v432 = vadd.f32 %v384, %v430
  %v433 = vmul.f32 %v404, %v412
  %v434 = vmul.f32 %v408, %v416
  %v435 = vadd.f32 %v431, %v433
  %v436 = vadd.f32 %v432, %v434
  %s437 = scalar_lea.vmem %s3, 16
  %438 = vst [vmem:[%s437] sm:$0xf] %v427
  %439 = vst [vmem:[%s437 + $0x8] sm:$0xf] %v428
  %v442 = vrot.slane %v435, 4
  %v443 = vrot.slane %v436, 4
  %446 = vst [vmem:[%s437] sm:$0xf0] %v442
  %447 = vst [vmem:[%s437 + $0x8] sm:$0xf0] %v443
  %s448 = scalar_lea.vmem %s0, 32
  %v449 = vld [vmem:[%s448] ss:$8 sm:$0x3]
  %v451 = vlaneseq
  %v452 = vshrl.u32 %v451, 7
  %v453 = vsub.s32 0, %v452
  %v454 = vrot.slane %v449, %v453
  %v455 = vlaneseq
  %v456 = vshrl.u32 %v455, 7
  %v457 = vsub.s32 1, %v456
  %v458 = vrot.slane %v449, %v457
  %s461 = scalar_lea.vmem %s448, 4
  %v462 = vld [vmem:[%s461] ss:$8 sm:$0x3]
  %v464 = vlaneseq
  %v465 = vshrl.u32 %v464, 7
  %v466 = vsub.s32 0, %v465
  %v467 = vrot.slane %v462, %v466
  %v468 = vlaneseq
  %v469 = vshrl.u32 %v468, 7
  %v470 = vsub.s32 1, %v469
  %v471 = vrot.slane %v462, %v470
  %s474 = scalar_lea.vmem %s1, 64
  %v475 = vld [vmem:[%s474] sm:$0xff]
  %s476 = scalar_lea.vmem %s2, 64
  %v477 = vld [vmem:[%s476] sm:$0xff]
  %v479 = vcombine.high %v475, %v475
  %v481 = vmul.f32 %v454, %v475
  %v482 = vmul.f32 %v458, %v479
  %v483 = vadd.f32 %v481, 0.0
  %v484 = vadd.f32 %v482, 0.0
  %v486 = vcombine.high %v477, %v477
  %v488 = vmul.f32 %v467, %v477
  %v489 = vmul.f32 %v471, %v486
  %v490 = vsub.f32 %v483, %v488
  %v491 = vsub.f32 %v484, %v489
  %v492 = vmul.f32 %v454, %v477
  %v493 = vmul.f32 %v458, %v486
  %v494 = vadd.f32 %v492, 0.0
  %v495 = vadd.f32 %v493, 0.0
  %v496 = vmul.f32 %v467, %v475
  %v497 = vmul.f32 %v471, %v479
  %v498 = vadd.f32 %v494, %v496
  %v499 = vadd.f32 %v495, %v497
  %s500 = scalar_lea.vmem %s448, 1
  %v501 = vld [vmem:[%s500] ss:$8 sm:$0x3]
  %v503 = vlaneseq
  %v504 = vshrl.u32 %v503, 7
  %v505 = vsub.s32 0, %v504
  %v506 = vrot.slane %v501, %v505
  %v507 = vlaneseq
  %v508 = vshrl.u32 %v507, 7
  %v509 = vsub.s32 1, %v508
  %v510 = vrot.slane %v501, %v509
  %s513 = scalar_lea.vmem %s448, 5
  %v514 = vld [vmem:[%s513] ss:$8 sm:$0x3]
  %v516 = vlaneseq
  %v517 = vshrl.u32 %v516, 7
  %v518 = vsub.s32 0, %v517
  %v519 = vrot.slane %v514, %v518
  %v520 = vlaneseq
  %v521 = vshrl.u32 %v520, 7
  %v522 = vsub.s32 1, %v521
  %v523 = vrot.slane %v514, %v522
  %s526 = scalar_lea.vmem %s1, 72
  %v527 = vld [vmem:[%s526] sm:$0xff]
  %s528 = scalar_lea.vmem %s2, 72
  %v529 = vld [vmem:[%s528] sm:$0xff]
  %v531 = vcombine.high %v527, %v527
  %v533 = vmul.f32 %v506, %v527
  %v534 = vmul.f32 %v510, %v531
  %v535 = vadd.f32 %v490, %v533
  %v536 = vadd.f32 %v491, %v534
  %v538 = vcombine.high %v529, %v529
  %v540 = vmul.f32 %v519, %v529
  %v541 = vmul.f32 %v523, %v538
  %v542 = vsub.f32 %v535, %v540
  %v543 = vsub.f32 %v536, %v541
  %v544 = vmul.f32 %v506, %v529
  %v545 = vmul.f32 %v510, %v538
  %v546 = vadd.f32 %v498, %v544
  %v547 = vadd.f32 %v499, %v545
  %v548 = vmul.f32 %v519, %v527
  %v549 = vmul.f32 %v523, %v531
  %v550 = vadd.f32 %v546, %v548
  %v551 = vadd.f32 %v547, %v549
  %s552 = scalar_lea.vmem %s448, 2
  %v553 = vld [vmem:[%s552] ss:$8 sm:$0x3]
  %v555 = vlaneseq
  %v556 = vshrl.u32 %v555, 7
  %v557 = vsub.s32 0, %v556
  %v558 = vrot.slane %v553, %v557
  %v559 = vlaneseq
  %v560 = vshrl.u32 %v559, 7
  %v561 = vsub.s32 1, %v560
  %v562 = vrot.slane %v553, %v561
  %s565 = scalar_lea.vmem %s448, 6
  %v566 = vld [vmem:[%s565] ss:$8 sm:$0x3]
  %v568 = vlaneseq
  %v569 = vshrl.u32 %v568, 7
  %v570 = vsub.s32 0, %v569
  %v571 = vrot.slane %v566, %v570
  %v572 = vlaneseq
  %v573 = vshrl.u32 %v572, 7
  %v574 = vsub.s32 1, %v573
  %v575 = vrot.slane %v566, %v574
  %s578 = scalar_lea.vmem %s1, 80
  %v579 = vld [vmem:[%s578] sm:$0xff]
  %s580 = scalar_lea.vmem %s2, 80
  %v581 = vld [vmem:[%s580] sm:$0xff]
  %v583 = vcombine.high %v579, %v579
  %v585 = vmul.f32 %v558, %v579
  %v586 = vmul.f32 %v562, %v583
  %v587 = vadd.f32 %v542, %v585
  %v588 = vadd.f32 %v543, %v586
  %v590 = vcombine.high %v581, %v581
  %v592 = vmul.f32 %v571, %v581
  %v593 = vmul.f32 %v575, %v590
  %v594 = vsub.f32 %v587, %v592
  %v595 = vsub.f32 %v588, %v593
  %v596 = vmul.f32 %v558, %v581
  %v597 = vmul.f32 %v562, %v590
  %v598 = vadd.f32 %v550, %v596
  %v599 = vadd.f32 %v551, %v597
  %v600 = vmul.f32 %v571, %v579
  %v601 = vmul.f32 %v575, %v583
  %v602 = vadd.f32 %v598, %v600
  %v603 = vadd.f32 %v599, %v601
  %s604 = scalar_lea.vmem %s448, 3
  %v605 = vld [vmem:[%s604] ss:$8 sm:$0x3]
  %v607 = vlaneseq
  %v608 = vshrl.u32 %v607, 7
  %v609 = vsub.s32 0, %v608
  %v610 = vrot.slane %v605, %v609
  %v611 = vlaneseq
  %v612 = vshrl.u32 %v611, 7
  %v613 = vsub.s32 1, %v612
  %v614 = vrot.slane %v605, %v613
  %s617 = scalar_lea.vmem %s448, 7
  %v618 = vld [vmem:[%s617] ss:$8 sm:$0x3]
  %v620 = vlaneseq
  %v621 = vshrl.u32 %v620, 7
  %v622 = vsub.s32 0, %v621
  %v623 = vrot.slane %v618, %v622
  %v624 = vlaneseq
  %v625 = vshrl.u32 %v624, 7
  %v626 = vsub.s32 1, %v625
  %v627 = vrot.slane %v618, %v626
  %s630 = scalar_lea.vmem %s1, 88
  %v631 = vld [vmem:[%s630] sm:$0xff]
  %s632 = scalar_lea.vmem %s2, 88
  %v633 = vld [vmem:[%s632] sm:$0xff]
  %v635 = vcombine.high %v631, %v631
  %v637 = vmul.f32 %v610, %v631
  %v638 = vmul.f32 %v614, %v635
  %v639 = vadd.f32 %v594, %v637
  %v640 = vadd.f32 %v595, %v638
  %v642 = vcombine.high %v633, %v633
  %v644 = vmul.f32 %v623, %v633
  %v645 = vmul.f32 %v627, %v642
  %v646 = vsub.f32 %v639, %v644
  %v647 = vsub.f32 %v640, %v645
  %v648 = vmul.f32 %v610, %v633
  %v649 = vmul.f32 %v614, %v642
  %v650 = vadd.f32 %v602, %v648
  %v651 = vadd.f32 %v603, %v649
  %v652 = vmul.f32 %v623, %v631
  %v653 = vmul.f32 %v627, %v635
  %v654 = vadd.f32 %v650, %v652
  %v655 = vadd.f32 %v651, %v653
  %s656 = scalar_lea.vmem %s3, 32
  %657 = vst [vmem:[%s656] sm:$0xf] %v646
  %658 = vst [vmem:[%s656 + $0x8] sm:$0xf] %v647
  %v661 = vrot.slane %v654, 4
  %v662 = vrot.slane %v655, 4
  %665 = vst [vmem:[%s656] sm:$0xf0] %v661
  %666 = vst [vmem:[%s656 + $0x8] sm:$0xf0] %v662
  %s667 = scalar_lea.vmem %s0, 48
  %v668 = vld [vmem:[%s667] ss:$8 sm:$0x3]
  %v670 = vlaneseq
  %v671 = vshrl.u32 %v670, 7
  %v672 = vsub.s32 0, %v671
  %v673 = vrot.slane %v668, %v672
  %v674 = vlaneseq
  %v675 = vshrl.u32 %v674, 7
  %v676 = vsub.s32 1, %v675
  %v677 = vrot.slane %v668, %v676
  %s680 = scalar_lea.vmem %s667, 4
  %v681 = vld [vmem:[%s680] ss:$8 sm:$0x3]
  %v683 = vlaneseq
  %v684 = vshrl.u32 %v683, 7
  %v685 = vsub.s32 0, %v684
  %v686 = vrot.slane %v681, %v685
  %v687 = vlaneseq
  %v688 = vshrl.u32 %v687, 7
  %v689 = vsub.s32 1, %v688
  %v690 = vrot.slane %v681, %v689
  %v693 = vld [vmem:[%s1] sm:$0xff]
  %v694 = vld [vmem:[%s2] sm:$0xff]
  %v696 = vcombine.high %v693, %v693
  %v698 = vmul.f32 %v673, %v693
  %v699 = vmul.f32 %v677, %v696
  %v700 = vadd.f32 %v698, 0.0
  %v701 = vadd.f32 %v699, 0.0
  %v703 = vcombine.high %v694, %v694
  %v705 = vmul.f32 %v686, %v694
  %v706 = vmul.f32 %v690, %v703
  %v707 = vsub.f32 %v700, %v705
  %v708 = vsub.f32 %v701, %v706
  %v709 = vmul.f32 %v673, %v694
  %v710 = vmul.f32 %v677, %v703
  %v711 = vadd.f32 %v709, 0.0
  %v712 = vadd.f32 %v710, 0.0
  %v713 = vmul.f32 %v686, %v693
  %v714 = vmul.f32 %v690, %v696
  %v715 = vadd.f32 %v711, %v713
  %v716 = vadd.f32 %v712, %v714
  %s717 = scalar_lea.vmem %s667, 1
  %v718 = vld [vmem:[%s717] ss:$8 sm:$0x3]
  %v720 = vlaneseq
  %v721 = vshrl.u32 %v720, 7
  %v722 = vsub.s32 0, %v721
  %v723 = vrot.slane %v718, %v722
  %v724 = vlaneseq
  %v725 = vshrl.u32 %v724, 7
  %v726 = vsub.s32 1, %v725
  %v727 = vrot.slane %v718, %v726
  %s730 = scalar_lea.vmem %s667, 5
  %v731 = vld [vmem:[%s730] ss:$8 sm:$0x3]
  %v733 = vlaneseq
  %v734 = vshrl.u32 %v733, 7
  %v735 = vsub.s32 0, %v734
  %v736 = vrot.slane %v731, %v735
  %v737 = vlaneseq
  %v738 = vshrl.u32 %v737, 7
  %v739 = vsub.s32 1, %v738
  %v740 = vrot.slane %v731, %v739
  %v743 = vld [vmem:[%s89] sm:$0xff]
  %v744 = vld [vmem:[%s91] sm:$0xff]
  %v746 = vcombine.high %v743, %v743
  %v748 = vmul.f32 %v723, %v743
  %v749 = vmul.f32 %v727, %v746
  %v750 = vadd.f32 %v707, %v748
  %v751 = vadd.f32 %v708, %v749
  %v753 = vcombine.high %v744, %v744
  %v755 = vmul.f32 %v736, %v744
  %v756 = vmul.f32 %v740, %v753
  %v757 = vsub.f32 %v750, %v755
  %v758 = vsub.f32 %v751, %v756
  %v759 = vmul.f32 %v723, %v744
  %v760 = vmul.f32 %v727, %v753
  %v761 = vadd.f32 %v715, %v759
  %v762 = vadd.f32 %v716, %v760
  %v763 = vmul.f32 %v736, %v743
  %v764 = vmul.f32 %v740, %v746
  %v765 = vadd.f32 %v761, %v763
  %v766 = vadd.f32 %v762, %v764
  %s767 = scalar_lea.vmem %s667, 2
  %v768 = vld [vmem:[%s767] ss:$8 sm:$0x3]
  %v770 = vlaneseq
  %v771 = vshrl.u32 %v770, 7
  %v772 = vsub.s32 0, %v771
  %v773 = vrot.slane %v768, %v772
  %v774 = vlaneseq
  %v775 = vshrl.u32 %v774, 7
  %v776 = vsub.s32 1, %v775
  %v777 = vrot.slane %v768, %v776
  %s780 = scalar_lea.vmem %s667, 6
  %v781 = vld [vmem:[%s780] ss:$8 sm:$0x3]
  %v783 = vlaneseq
  %v784 = vshrl.u32 %v783, 7
  %v785 = vsub.s32 0, %v784
  %v786 = vrot.slane %v781, %v785
  %v787 = vlaneseq
  %v788 = vshrl.u32 %v787, 7
  %v789 = vsub.s32 1, %v788
  %v790 = vrot.slane %v781, %v789
  %v793 = vld [vmem:[%s141] sm:$0xff]
  %v794 = vld [vmem:[%s143] sm:$0xff]
  %v796 = vcombine.high %v793, %v793
  %v798 = vmul.f32 %v773, %v793
  %v799 = vmul.f32 %v777, %v796
  %v800 = vadd.f32 %v757, %v798
  %v801 = vadd.f32 %v758, %v799
  %v803 = vcombine.high %v794, %v794
  %v805 = vmul.f32 %v786, %v794
  %v806 = vmul.f32 %v790, %v803
  %v807 = vsub.f32 %v800, %v805
  %v808 = vsub.f32 %v801, %v806
  %v809 = vmul.f32 %v773, %v794
  %v810 = vmul.f32 %v777, %v803
  %v811 = vadd.f32 %v765, %v809
  %v812 = vadd.f32 %v766, %v810
  %v813 = vmul.f32 %v786, %v793
  %v814 = vmul.f32 %v790, %v796
  %v815 = vadd.f32 %v811, %v813
  %v816 = vadd.f32 %v812, %v814
  %s817 = scalar_lea.vmem %s667, 3
  %v818 = vld [vmem:[%s817] ss:$8 sm:$0x3]
  %v820 = vlaneseq
  %v821 = vshrl.u32 %v820, 7
  %v822 = vsub.s32 0, %v821
  %v823 = vrot.slane %v818, %v822
  %v824 = vlaneseq
  %v825 = vshrl.u32 %v824, 7
  %v826 = vsub.s32 1, %v825
  %v827 = vrot.slane %v818, %v826
  %s830 = scalar_lea.vmem %s667, 7
  %v831 = vld [vmem:[%s830] ss:$8 sm:$0x3]
  %v833 = vlaneseq
  %v834 = vshrl.u32 %v833, 7
  %v835 = vsub.s32 0, %v834
  %v836 = vrot.slane %v831, %v835
  %v837 = vlaneseq
  %v838 = vshrl.u32 %v837, 7
  %v839 = vsub.s32 1, %v838
  %v840 = vrot.slane %v831, %v839
  %v843 = vld [vmem:[%s193] sm:$0xff]
  %v844 = vld [vmem:[%s195] sm:$0xff]
  %v846 = vcombine.high %v843, %v843
  %v848 = vmul.f32 %v823, %v843
  %v849 = vmul.f32 %v827, %v846
  %v850 = vadd.f32 %v807, %v848
  %v851 = vadd.f32 %v808, %v849
  %v853 = vcombine.high %v844, %v844
  %v855 = vmul.f32 %v836, %v844
  %v856 = vmul.f32 %v840, %v853
  %v857 = vsub.f32 %v850, %v855
  %v858 = vsub.f32 %v851, %v856
  %v859 = vmul.f32 %v823, %v844
  %v860 = vmul.f32 %v827, %v853
  %v861 = vadd.f32 %v815, %v859
  %v862 = vadd.f32 %v816, %v860
  %v863 = vmul.f32 %v836, %v843
  %v864 = vmul.f32 %v840, %v846
  %v865 = vadd.f32 %v861, %v863
  %v866 = vadd.f32 %v862, %v864
  %s867 = scalar_lea.vmem %s3, 48
  %868 = vst [vmem:[%s867] sm:$0xf] %v857
  %869 = vst [vmem:[%s867 + $0x8] sm:$0xf] %v858
  %v872 = vrot.slane %v865, 4
  %v873 = vrot.slane %v866, 4
  %876 = vst [vmem:[%s867] sm:$0xf0] %v872
  %877 = vst [vmem:[%s867 + $0x8] sm:$0xf0] %v873
  %s878 = scalar_lea.vmem %s0, 64
  %v879 = vld [vmem:[%s878] ss:$8 sm:$0x3]
  %v881 = vlaneseq
  %v882 = vshrl.u32 %v881, 7
  %v883 = vsub.s32 0, %v882
  %v884 = vrot.slane %v879, %v883
  %v885 = vlaneseq
  %v886 = vshrl.u32 %v885, 7
  %v887 = vsub.s32 1, %v886
  %v888 = vrot.slane %v879, %v887
  %s891 = scalar_lea.vmem %s878, 4
  %v892 = vld [vmem:[%s891] ss:$8 sm:$0x3]
  %v894 = vlaneseq
  %v895 = vshrl.u32 %v894, 7
  %v896 = vsub.s32 0, %v895
  %v897 = vrot.slane %v892, %v896
  %v898 = vlaneseq
  %v899 = vshrl.u32 %v898, 7
  %v900 = vsub.s32 1, %v899
  %v901 = vrot.slane %v892, %v900
  %v904 = vld [vmem:[%s255] sm:$0xff]
  %v905 = vld [vmem:[%s257] sm:$0xff]
  %v907 = vcombine.high %v904, %v904
  %v909 = vmul.f32 %v884, %v904
  %v910 = vmul.f32 %v888, %v907
  %v911 = vadd.f32 %v909, 0.0
  %v912 = vadd.f32 %v910, 0.0
  %v914 = vcombine.high %v905, %v905
  %v916 = vmul.f32 %v897, %v905
  %v917 = vmul.f32 %v901, %v914
  %v918 = vsub.f32 %v911, %v916
  %v919 = vsub.f32 %v912, %v917
  %v920 = vmul.f32 %v884, %v905
  %v921 = vmul.f32 %v888, %v914
  %v922 = vadd.f32 %v920, 0.0
  %v923 = vadd.f32 %v921, 0.0
  %v924 = vmul.f32 %v897, %v904
  %v925 = vmul.f32 %v901, %v907
  %v926 = vadd.f32 %v922, %v924
  %v927 = vadd.f32 %v923, %v925
  %s928 = scalar_lea.vmem %s878, 1
  %v929 = vld [vmem:[%s928] ss:$8 sm:$0x3]
  %v931 = vlaneseq
  %v932 = vshrl.u32 %v931, 7
  %v933 = vsub.s32 0, %v932
  %v934 = vrot.slane %v929, %v933
  %v935 = vlaneseq
  %v936 = vshrl.u32 %v935, 7
  %v937 = vsub.s32 1, %v936
  %v938 = vrot.slane %v929, %v937
  %s941 = scalar_lea.vmem %s878, 5
  %v942 = vld [vmem:[%s941] ss:$8 sm:$0x3]
  %v944 = vlaneseq
  %v945 = vshrl.u32 %v944, 7
  %v946 = vsub.s32 0, %v945
  %v947 = vrot.slane %v942, %v946
  %v948 = vlaneseq
  %v949 = vshrl.u32 %v948, 7
  %v950 = vsub.s32 1, %v949
  %v951 = vrot.slane %v942, %v950
  %v954 = vld [vmem:[%s307] sm:$0xff]
  %v955 = vld [vmem:[%s309] sm:$0xff]
  %v957 = vcombine.high %v954, %v954
  %v959 = vmul.f32 %v934, %v954
  %v960 = vmul.f32 %v938, %v957
  %v961 = vadd.f32 %v918, %v959
  %v962 = vadd.f32 %v919, %v960
  %v964 = vcombine.high %v955, %v955
  %v966 = vmul.f32 %v947, %v955
  %v967 = vmul.f32 %v951, %v964
  %v968 = vsub.f32 %v961, %v966
  %v969 = vsub.f32 %v962, %v967
  %v970 = vmul.f32 %v934, %v955
  %v971 = vmul.f32 %v938, %v964
  %v972 = vadd.f32 %v926, %v970
  %v973 = vadd.f32 %v927, %v971
  %v974 = vmul.f32 %v947, %v954
  %v975 = vmul.f32 %v951, %v957
  %v976 = vadd.f32 %v972, %v974
  %v977 = vadd.f32 %v973, %v975
  %s978 = scalar_lea.vmem %s878, 2
  %v979 = vld [vmem:[%s978] ss:$8 sm:$0x3]
  %v981 = vlaneseq
  %v982 = vshrl.u32 %v981, 7
  %v983 = vsub.s32 0, %v982
  %v984 = vrot.slane %v979, %v983
  %v985 = vlaneseq
  %v986 = vshrl.u32 %v985, 7
  %v987 = vsub.s32 1, %v986
  %v988 = vrot.slane %v979, %v987
  %s991 = scalar_lea.vmem %s878, 6
  %v992 = vld [vmem:[%s991] ss:$8 sm:$0x3]
  %v994 = vlaneseq
  %v995 = vshrl.u32 %v994, 7
  %v996 = vsub.s32 0, %v995
  %v997 = vrot.slane %v992, %v996
  %v998 = vlaneseq
  %v999 = vshrl.u32 %v998, 7
  %v1000 = vsub.s32 1, %v999
  %v1001 = vrot.slane %v992, %v1000
  %v1004 = vld [vmem:[%s359] sm:$0xff]
  %v1005 = vld [vmem:[%s361] sm:$0xff]
  %v1007 = vcombine.high %v1004, %v1004
  %v1009 = vmul.f32 %v984, %v1004
  %v1010 = vmul.f32 %v988, %v1007
  %v1011 = vadd.f32 %v968, %v1009
  %v1012 = vadd.f32 %v969, %v1010
  %v1014 = vcombine.high %v1005, %v1005
  %v1016 = vmul.f32 %v997, %v1005
  %v1017 = vmul.f32 %v1001, %v1014
  %v1018 = vsub.f32 %v1011, %v1016
  %v1019 = vsub.f32 %v1012, %v1017
  %v1020 = vmul.f32 %v984, %v1005
  %v1021 = vmul.f32 %v988, %v1014
  %v1022 = vadd.f32 %v976, %v1020
  %v1023 = vadd.f32 %v977, %v1021
  %v1024 = vmul.f32 %v997, %v1004
  %v1025 = vmul.f32 %v1001, %v1007
  %v1026 = vadd.f32 %v1022, %v1024
  %v1027 = vadd.f32 %v1023, %v1025
  %s1028 = scalar_lea.vmem %s878, 3
  %v1029 = vld [vmem:[%s1028] ss:$8 sm:$0x3]
  %v1031 = vlaneseq
  %v1032 = vshrl.u32 %v1031, 7
  %v1033 = vsub.s32 0, %v1032
  %v1034 = vrot.slane %v1029, %v1033
  %v1035 = vlaneseq
  %v1036 = vshrl.u32 %v1035, 7
  %v1037 = vsub.s32 1, %v1036
  %v1038 = vrot.slane %v1029, %v1037
  %s1041 = scalar_lea.vmem %s878, 7
  %v1042 = vld [vmem:[%s1041] ss:$8 sm:$0x3]
  %v1044 = vlaneseq
  %v1045 = vshrl.u32 %v1044, 7
  %v1046 = vsub.s32 0, %v1045
  %v1047 = vrot.slane %v1042, %v1046
  %v1048 = vlaneseq
  %v1049 = vshrl.u32 %v1048, 7
  %v1050 = vsub.s32 1, %v1049
  %v1051 = vrot.slane %v1042, %v1050
  %v1054 = vld [vmem:[%s411] sm:$0xff]
  %v1055 = vld [vmem:[%s413] sm:$0xff]
  %v1057 = vcombine.high %v1054, %v1054
  %v1059 = vmul.f32 %v1034, %v1054
  %v1060 = vmul.f32 %v1038, %v1057
  %v1061 = vadd.f32 %v1018, %v1059
  %v1062 = vadd.f32 %v1019, %v1060
  %v1064 = vcombine.high %v1055, %v1055
  %v1066 = vmul.f32 %v1047, %v1055
  %v1067 = vmul.f32 %v1051, %v1064
  %v1068 = vsub.f32 %v1061, %v1066
  %v1069 = vsub.f32 %v1062, %v1067
  %v1070 = vmul.f32 %v1034, %v1055
  %v1071 = vmul.f32 %v1038, %v1064
  %v1072 = vadd.f32 %v1026, %v1070
  %v1073 = vadd.f32 %v1027, %v1071
  %v1074 = vmul.f32 %v1047, %v1054
  %v1075 = vmul.f32 %v1051, %v1057
  %v1076 = vadd.f32 %v1072, %v1074
  %v1077 = vadd.f32 %v1073, %v1075
  %s1078 = scalar_lea.vmem %s3, 64
  %1079 = vst [vmem:[%s1078] sm:$0xf] %v1068
  %1080 = vst [vmem:[%s1078 + $0x8] sm:$0xf] %v1069
  %v1083 = vrot.slane %v1076, 4
  %v1084 = vrot.slane %v1077, 4
  %1087 = vst [vmem:[%s1078] sm:$0xf0] %v1083
  %1088 = vst [vmem:[%s1078 + $0x8] sm:$0xf0] %v1084
  %s1089 = scalar_lea.vmem %s0, 80
  %v1090 = vld [vmem:[%s1089] ss:$8 sm:$0x3]
  %v1092 = vlaneseq
  %v1093 = vshrl.u32 %v1092, 7
  %v1094 = vsub.s32 0, %v1093
  %v1095 = vrot.slane %v1090, %v1094
  %v1096 = vlaneseq
  %v1097 = vshrl.u32 %v1096, 7
  %v1098 = vsub.s32 1, %v1097
  %v1099 = vrot.slane %v1090, %v1098
  %s1102 = scalar_lea.vmem %s1089, 4
  %v1103 = vld [vmem:[%s1102] ss:$8 sm:$0x3]
  %v1105 = vlaneseq
  %v1106 = vshrl.u32 %v1105, 7
  %v1107 = vsub.s32 0, %v1106
  %v1108 = vrot.slane %v1103, %v1107
  %v1109 = vlaneseq
  %v1110 = vshrl.u32 %v1109, 7
  %v1111 = vsub.s32 1, %v1110
  %v1112 = vrot.slane %v1103, %v1111
  %v1115 = vld [vmem:[%s474] sm:$0xff]
  %v1116 = vld [vmem:[%s476] sm:$0xff]
  %v1118 = vcombine.high %v1115, %v1115
  %v1120 = vmul.f32 %v1095, %v1115
  %v1121 = vmul.f32 %v1099, %v1118
  %v1122 = vadd.f32 %v1120, 0.0
  %v1123 = vadd.f32 %v1121, 0.0
  %v1125 = vcombine.high %v1116, %v1116
  %v1127 = vmul.f32 %v1108, %v1116
  %v1128 = vmul.f32 %v1112, %v1125
  %v1129 = vsub.f32 %v1122, %v1127
  %v1130 = vsub.f32 %v1123, %v1128
  %v1131 = vmul.f32 %v1095, %v1116
  %v1132 = vmul.f32 %v1099, %v1125
  %v1133 = vadd.f32 %v1131, 0.0
  %v1134 = vadd.f32 %v1132, 0.0
  %v1135 = vmul.f32 %v1108, %v1115
  %v1136 = vmul.f32 %v1112, %v1118
  %v1137 = vadd.f32 %v1133, %v1135
  %v1138 = vadd.f32 %v1134, %v1136
  %s1139 = scalar_lea.vmem %s1089, 1
  %v1140 = vld [vmem:[%s1139] ss:$8 sm:$0x3]
  %v1142 = vlaneseq
  %v1143 = vshrl.u32 %v1142, 7
  %v1144 = vsub.s32 0, %v1143
  %v1145 = vrot.slane %v1140, %v1144
  %v1146 = vlaneseq
  %v1147 = vshrl.u32 %v1146, 7
  %v1148 = vsub.s32 1, %v1147
  %v1149 = vrot.slane %v1140, %v1148
  %s1152 = scalar_lea.vmem %s1089, 5
  %v1153 = vld [vmem:[%s1152] ss:$8 sm:$0x3]
  %v1155 = vlaneseq
  %v1156 = vshrl.u32 %v1155, 7
  %v1157 = vsub.s32 0, %v1156
  %v1158 = vrot.slane %v1153, %v1157
  %v1159 = vlaneseq
  %v1160 = vshrl.u32 %v1159, 7
  %v1161 = vsub.s32 1, %v1160
  %v1162 = vrot.slane %v1153, %v1161
  %v1165 = vld [vmem:[%s526] sm:$0xff]
  %v1166 = vld [vmem:[%s528] sm:$0xff]
  %v1168 = vcombine.high %v1165, %v1165
  %v1170 = vmul.f32 %v1145, %v1165
  %v1171 = vmul.f32 %v1149, %v1168
  %v1172 = vadd.f32 %v1129, %v1170
  %v1173 = vadd.f32 %v1130, %v1171
  %v1175 = vcombine.high %v1166, %v1166
  %v1177 = vmul.f32 %v1158, %v1166
  %v1178 = vmul.f32 %v1162, %v1175
  %v1179 = vsub.f32 %v1172, %v1177
  %v1180 = vsub.f32 %v1173, %v1178
  %v1181 = vmul.f32 %v1145, %v1166
  %v1182 = vmul.f32 %v1149, %v1175
  %v1183 = vadd.f32 %v1137, %v1181
  %v1184 = vadd.f32 %v1138, %v1182
  %v1185 = vmul.f32 %v1158, %v1165
  %v1186 = vmul.f32 %v1162, %v1168
  %v1187 = vadd.f32 %v1183, %v1185
  %v1188 = vadd.f32 %v1184, %v1186
  %s1189 = scalar_lea.vmem %s1089, 2
  %v1190 = vld [vmem:[%s1189] ss:$8 sm:$0x3]
  %v1192 = vlaneseq
  %v1193 = vshrl.u32 %v1192, 7
  %v1194 = vsub.s32 0, %v1193
  %v1195 = vrot.slane %v1190, %v1194
  %v1196 = vlaneseq
  %v1197 = vshrl.u32 %v1196, 7
  %v1198 = vsub.s32 1, %v1197
  %v1199 = vrot.slane %v1190, %v1198
  %s1202 = scalar_lea.vmem %s1089, 6
  %v1203 = vld [vmem:[%s1202] ss:$8 sm:$0x3]
  %v1205 = vlaneseq
  %v1206 = vshrl.u32 %v1205, 7
  %v1207 = vsub.s32 0, %v1206
  %v1208 = vrot.slane %v1203, %v1207
  %v1209 = vlaneseq
  %v1210 = vshrl.u32 %v1209, 7
  %v1211 = vsub.s32 1, %v1210
  %v1212 = vrot.slane %v1203, %v1211
  %v1215 = vld [vmem:[%s578] sm:$0xff]
  %v1216 = vld [vmem:[%s580] sm:$0xff]
  %v1218 = vcombine.high %v1215, %v1215
  %v1220 = vmul.f32 %v1195, %v1215
  %v1221 = vmul.f32 %v1199, %v1218
  %v1222 = vadd.f32 %v1179, %v1220
  %v1223 = vadd.f32 %v1180, %v1221
  %v1225 = vcombine.high %v1216, %v1216
  %v1227 = vmul.f32 %v1208, %v1216
  %v1228 = vmul.f32 %v1212, %v1225
  %v1229 = vsub.f32 %v1222, %v1227
  %v1230 = vsub.f32 %v1223, %v1228
  %v1231 = vmul.f32 %v1195, %v1216
  %v1232 = vmul.f32 %v1199, %v1225
  %v1233 = vadd.f32 %v1187, %v1231
  %v1234 = vadd.f32 %v1188, %v1232
  %v1235 = vmul.f32 %v1208, %v1215
  %v1236 = vmul.f32 %v1212, %v1218
  %v1237 = vadd.f32 %v1233, %v1235
  %v1238 = vadd.f32 %v1234, %v1236
  %s1239 = scalar_lea.vmem %s1089, 3
  %v1240 = vld [vmem:[%s1239] ss:$8 sm:$0x3]
  %v1242 = vlaneseq
  %v1243 = vshrl.u32 %v1242, 7
  %v1244 = vsub.s32 0, %v1243
  %v1245 = vrot.slane %v1240, %v1244
  %v1246 = vlaneseq
  %v1247 = vshrl.u32 %v1246, 7
  %v1248 = vsub.s32 1, %v1247
  %v1249 = vrot.slane %v1240, %v1248
  %s1252 = scalar_lea.vmem %s1089, 7
  %v1253 = vld [vmem:[%s1252] ss:$8 sm:$0x3]
  %v1255 = vlaneseq
  %v1256 = vshrl.u32 %v1255, 7
  %v1257 = vsub.s32 0, %v1256
  %v1258 = vrot.slane %v1253, %v1257
  %v1259 = vlaneseq
  %v1260 = vshrl.u32 %v1259, 7
  %v1261 = vsub.s32 1, %v1260
  %v1262 = vrot.slane %v1253, %v1261
  %v1265 = vld [vmem:[%s630] sm:$0xff]
  %v1266 = vld [vmem:[%s632] sm:$0xff]
  %v1268 = vcombine.high %v1265, %v1265
  %v1270 = vmul.f32 %v1245, %v1265
  %v1271 = vmul.f32 %v1249, %v1268
  %v1272 = vadd.f32 %v1229, %v1270
  %v1273 = vadd.f32 %v1230, %v1271
  %v1275 = vcombine.high %v1266, %v1266
  %v1277 = vmul.f32 %v1258, %v1266
  %v1278 = vmul.f32 %v1262, %v1275
  %v1279 = vsub.f32 %v1272, %v1277
  %v1280 = vsub.f32 %v1273, %v1278
  %v1281 = vmul.f32 %v1245, %v1266
  %v1282 = vmul.f32 %v1249, %v1275
  %v1283 = vadd.f32 %v1237, %v1281
  %v1284 = vadd.f32 %v1238, %v1282
  %v1285 = vmul.f32 %v1258, %v1265
  %v1286 = vmul.f32 %v1262, %v1268
  %v1287 = vadd.f32 %v1283, %v1285
  %v1288 = vadd.f32 %v1284, %v1286
  %s1289 = scalar_lea.vmem %s3, 80
  %1290 = vst [vmem:[%s1289] sm:$0xf] %v1279
  %1291 = vst [vmem:[%s1289 + $0x8] sm:$0xf] %v1280
  %v1294 = vrot.slane %v1287, 4
  %v1295 = vrot.slane %v1288, 4
  %1298 = vst [vmem:[%s1289] sm:$0xf0] %v1294
  %1299 = vst [vmem:[%s1289 + $0x8] sm:$0xf0] %v1295
  // Predicated region
  $region14: #{fno_block_forward.2} parent=0 // pred_check
    _
  $region15: #{fno_block_forward.2} parent=0 // pred_check_branch
    %1301 = sbr.rel (0) target = $region17
  $region16: #{fno_block_forward.2} parent=0 // pred_region
    _
  $region17: #{fno_block_forward.2} parent=0 // pred_fallthru
    _
  // Predicated region
  $region18: #{fno_block_forward.2} parent=0 // pred_check
    _
  $region19: #{fno_block_forward.2} parent=0 // pred_check_branch
    %1303 = sbr.rel (0) target = $region21
  $region20: #{fno_block_forward.2} parent=0 // pred_region
    _
  $region21: #{fno_block_forward.2} parent=0 // pred_fallthru
    _

// kernel: fno_block_forward.3
$region0: #{fno_block_forward.3}
  #allocation0 [shape = 'u32[]', space=smem, size = 0x4, offset = 0x4, fixed_abs, tag = 'smem constant byte address 0x4 - core index']
  #allocation1 [shape = 'u32[144,128]{1,0:T(1,128)}', space=vmem, size = 0x12000, scoped, tag = 'internal scratch']
  %s0 = inlined_call_operand.vmem [shape: f32[4,4], index: 0, kind: input, shape index: {}]
  %s1 = inlined_call_operand.vmem [shape: f32[4], index: 1, kind: input, shape index: {}]
  %s2 = inlined_call_operand.vmem [shape: f32[64,256], index: 2, kind: input, shape index: {}]
  %s3 = inlined_call_operand.vmem [shape: f32[64,256], index: 3, kind: input, shape index: {}]
  %s4 = inlined_call_operand.vmem [shape: f32[6,4,8,256], index: 4, kind: input, shape index: {}]
  %s5 = inlined_call_operand.vmem [shape: f32[6,32,64], index: 5, kind: input, shape index: {}]
  %s6 = inlined_call_operand.vmem [shape: f32[6,32,64], index: 6, kind: input, shape index: {}]
  %s7 = inlined_call_operand.vmem [shape: f32[6,4,8,256], index: 7, kind: output, shape index: {}]
  %s8 = sld [smem:[#allocation0]]
  $region69: #{fno_block_forward.3} parent=0
    _
  %s10 = ssub.s32 1, %s8
  %s11 = scalar_select 0, %s10, %s8
  $region1: #{fno_block_forward.3} parent=0
    #allocation2 [shape = 'u8[2048]{0}', space=smem, size = 0x800, scoped, tag = 'input window, operand 0, single buffered']
    #allocation3 [shape = 's32[2]{0}', space=sflag, size = 0x8, scoped, tag = 'scoped memory for fno_block_forward.3']
    #allocation4 [shape = 'u8[512]{0}', space=smem, size = 0x200, scoped, tag = 'input window, operand 1, single buffered']
    #allocation5 [shape = 's32[1]{0}', space=sflag, size = 0x4, scoped, tag = 'scoped memory for fno_block_forward.3']
    %12 = vsyncpa [#allocation3], 0
    %13 = vsyncpa [#allocation5], 0
    loop: start=0, step=1, limit=4
    $region2: #{fno_block_forward.3} parent=1 // loop_pre_header
      _
    $region3: #{fno_block_forward.3} parent=1 // loop_header
      %s15 = sphi 0, %s19
      %p16 = scmp.ge.s32.totalorder %s15, 4
      %s23 = sphi 0, %s23
      %s25 = sphi 0, %s23
      %s26 = sphi 0, %s25
      %s40 = sphi 0, %s26
      %s44 = sphi 0, %s44
      %s46 = sphi 0, %s44
      %s47 = sphi 0, %s46
      %s61 = sphi 0, %s47
      %s65 = sphi 0, %s65
      %s67 = sphi 0, %s65
      %s68 = sphi 0, %s67
      %s82 = sphi 0, %s68
      %s86 = sphi 0, %s86
      %s88 = sphi 0, %s86
      %s89 = sphi 0, %s88
      %s103 = sphi 0, %s89
      %s109 = sphi 0, %s111
      %s112 = sphi 0, %s109
      %s113 = sphi 0, %s112
      %s129 = sphi 0, %s113
      %s135 = sphi 0, %s137
      %s138 = sphi 0, %s135
      %s139 = sphi 0, %s138
      %s155 = sphi 0, %s139
      %s161 = sphi 0, %s163
      %s164 = sphi 0, %s161
      %s165 = sphi 0, %s164
      %s181 = sphi 0, %s165
      %s187 = sphi 0, %s189
      %s190 = sphi 0, %s187
      %s191 = sphi 0, %s190
      %s207 = sphi 0, %s191
    $region4: #{fno_block_forward.3} parent=1 // loop_header_branch
      %18 = sbr.rel (%p16) target = $region8
    $region5: #{fno_block_forward.3} parent=1 // loop_body
      %s20 = ssub.s32 %s15, 1
      %s21 = ssub.s32 %s15, 2
      %s22 = sadd.s32 %s15, 1
      %s24 = sadd.s32 %s23, 1
      %p27 = scmp.eq.s32.totalorder %s15, 1
      %p28 = scmp.ne.s32.totalorder %s23, %s25
      %p29 = scmp.eq.s32.totalorder %s15, 0
      %p30 = por %p28, %p29
      %p31 = scmp.ne.s32.totalorder %s23, %s25
      %p32 = scmp.eq.s32.totalorder %s20, 1
      %p33 = por %p31, %p32
      %p34 = scmp.ne.s32.totalorder %s25, %s26
      %p35 = scmp.eq.s32.totalorder %s20, 0
      %p36 = por %p34, %p35
      %p37 = scmp.ne.s32.totalorder %s25, %s26
      %p38 = scmp.eq.s32.totalorder %s21, 1
      %p39 = por %p37, %p38
      %p41 = scmp.ne.s32.totalorder %s26, %s40
      %p42 = scmp.eq.s32.totalorder %s21, 0
      %p43 = por %p41, %p42
      %s45 = sadd.s32 %s44, 1
      %p48 = scmp.eq.s32.totalorder %s15, 1
      %p49 = scmp.ne.s32.totalorder %s44, %s46
      %p50 = scmp.eq.s32.totalorder %s15, 0
      %p51 = por %p49, %p50
      %p52 = scmp.ne.s32.totalorder %s44, %s46
      %p53 = scmp.eq.s32.totalorder %s20, 1
      %p54 = por %p52, %p53
      %p55 = scmp.ne.s32.totalorder %s46, %s47
      %p56 = scmp.eq.s32.totalorder %s20, 0
      %p57 = por %p55, %p56
      %p58 = scmp.ne.s32.totalorder %s46, %s47
      %p59 = scmp.eq.s32.totalorder %s21, 1
      %p60 = por %p58, %p59
      %p62 = scmp.ne.s32.totalorder %s47, %s61
      %p63 = scmp.eq.s32.totalorder %s21, 0
      %p64 = por %p62, %p63
      %s66 = sadd.s32 %s65, 1
      %p69 = scmp.eq.s32.totalorder %s15, 1
      %p70 = scmp.ne.s32.totalorder %s65, %s67
      %p71 = scmp.eq.s32.totalorder %s15, 0
      %p72 = por %p70, %p71
      %p73 = scmp.ne.s32.totalorder %s65, %s67
      %p74 = scmp.eq.s32.totalorder %s20, 1
      %p75 = por %p73, %p74
      %p76 = scmp.ne.s32.totalorder %s67, %s68
      %p77 = scmp.eq.s32.totalorder %s20, 0
      %p78 = por %p76, %p77
      %p79 = scmp.ne.s32.totalorder %s67, %s68
      %p80 = scmp.eq.s32.totalorder %s21, 1
      %p81 = por %p79, %p80
      %p83 = scmp.ne.s32.totalorder %s68, %s82
      %p84 = scmp.eq.s32.totalorder %s21, 0
      %p85 = por %p83, %p84
      %s87 = sadd.s32 %s86, 1
      %p90 = scmp.eq.s32.totalorder %s15, 1
      %p91 = scmp.ne.s32.totalorder %s86, %s88
      %p92 = scmp.eq.s32.totalorder %s15, 0
      %p93 = por %p91, %p92
      %p94 = scmp.ne.s32.totalorder %s86, %s88
      %p95 = scmp.eq.s32.totalorder %s20, 1
      %p96 = por %p94, %p95
      %p97 = scmp.ne.s32.totalorder %s88, %s89
      %p98 = scmp.eq.s32.totalorder %s20, 0
      %p99 = por %p97, %p98
      %p100 = scmp.ne.s32.totalorder %s88, %s89
      %p101 = scmp.eq.s32.totalorder %s21, 1
      %p102 = por %p100, %p101
      %p104 = scmp.ne.s32.totalorder %s89, %s103
      %p105 = scmp.eq.s32.totalorder %s21, 0
      %p106 = por %p104, %p105
      %s107 = ssub.s32 %s15, %s22
      %p108 = scmp.eq.s32.totalorder %s107, 0
      %s110 = sadd.s32 %s109, 1
      %s111 = scalar_select %p108, %s109, %s110
      %p114 = pneg %p108
      %p115 = scmp.eq.s32.totalorder %s15, 1
      %p116 = por %p114, %p115
      %p117 = scmp.ne.s32.totalorder %s109, %s112
      %p118 = scmp.eq.s32.totalorder %s15, 0
      %p119 = por %p117, %p118
      %p120 = scmp.ne.s32.totalorder %s109, %s112
      %p121 = scmp.eq.s32.totalorder %s20, 1
      %p122 = por %p120, %p121
      %p123 = scmp.ne.s32.totalorder %s112, %s113
      %p124 = scmp.eq.s32.totalorder %s20, 0
      %p125 = por %p123, %p124
      %p126 = scmp.ne.s32.totalorder %s112, %s113
      %p127 = scmp.eq.s32.totalorder %s21, 1
      %p128 = por %p126, %p127
      %p130 = scmp.ne.s32.totalorder %s113, %s129
      %p131 = scmp.eq.s32.totalorder %s21, 0
      %p132 = por %p130, %p131
      %s133 = ssub.s32 %s15, %s22
      %p134 = scmp.eq.s32.totalorder %s133, 0
      %s136 = sadd.s32 %s135, 1
      %s137 = scalar_select %p134, %s135, %s136
      %p140 = pneg %p134
      %p141 = scmp.eq.s32.totalorder %s15, 1
      %p142 = por %p140, %p141
      %p143 = scmp.ne.s32.totalorder %s135, %s138
      %p144 = scmp.eq.s32.totalorder %s15, 0
      %p145 = por %p143, %p144
      %p146 = scmp.ne.s32.totalorder %s135, %s138
      %p147 = scmp.eq.s32.totalorder %s20, 1
      %p148 = por %p146, %p147
      %p149 = scmp.ne.s32.totalorder %s138, %s139
      %p150 = scmp.eq.s32.totalorder %s20, 0
      %p151 = por %p149, %p150
      %p152 = scmp.ne.s32.totalorder %s138, %s139
      %p153 = scmp.eq.s32.totalorder %s21, 1
      %p154 = por %p152, %p153
      %p156 = scmp.ne.s32.totalorder %s139, %s155
      %p157 = scmp.eq.s32.totalorder %s21, 0
      %p158 = por %p156, %p157
      %s159 = ssub.s32 %s15, %s22
      %p160 = scmp.eq.s32.totalorder %s159, 0
      %s162 = sadd.s32 %s161, 1
      %s163 = scalar_select %p160, %s161, %s162
      %p166 = pneg %p160
      %p167 = scmp.eq.s32.totalorder %s15, 1
      %p168 = por %p166, %p167
      %p169 = scmp.ne.s32.totalorder %s161, %s164
      %p170 = scmp.eq.s32.totalorder %s15, 0
      %p171 = por %p169, %p170
      %p172 = scmp.ne.s32.totalorder %s161, %s164
      %p173 = scmp.eq.s32.totalorder %s20, 1
      %p174 = por %p172, %p173
      %p175 = scmp.ne.s32.totalorder %s164, %s165
      %p176 = scmp.eq.s32.totalorder %s20, 0
      %p177 = por %p175, %p176
      %p178 = scmp.ne.s32.totalorder %s164, %s165
      %p179 = scmp.eq.s32.totalorder %s21, 1
      %p180 = por %p178, %p179
      %p182 = scmp.ne.s32.totalorder %s165, %s181
      %p183 = scmp.eq.s32.totalorder %s21, 0
      %p184 = por %p182, %p183
      %s185 = ssub.s32 %s15, %s22
      %p186 = scmp.eq.s32.totalorder %s185, 0
      %s188 = sadd.s32 %s187, 1
      %s189 = scalar_select %p186, %s187, %s188
      %p192 = pneg %p186
      %p193 = scmp.eq.s32.totalorder %s15, 1
      %p194 = por %p192, %p193
      %p195 = scmp.ne.s32.totalorder %s187, %s190
      %p196 = scmp.eq.s32.totalorder %s15, 0
      %p197 = por %p195, %p196
      %p198 = scmp.ne.s32.totalorder %s187, %s190
      %p199 = scmp.eq.s32.totalorder %s20, 1
      %p200 = por %p198, %p199
      %p201 = scmp.ne.s32.totalorder %s190, %s191
      %p202 = scmp.eq.s32.totalorder %s20, 0
      %p203 = por %p201, %p202
      %p204 = scmp.ne.s32.totalorder %s190, %s191
      %p205 = scmp.eq.s32.totalorder %s21, 1
      %p206 = por %p204, %p205
      %p208 = scmp.ne.s32.totalorder %s191, %s207
      %p209 = scmp.eq.s32.totalorder %s21, 0
      %p210 = por %p208, %p209
      %p211 = scmp.le.s32.totalorder 1, %s15
      %p212 = scmp.lt.s32.totalorder %s15, 3
      %p213 = pnand %p211, %p212
      %p214 = pneg %p213
      // Predicated region
      $region9: #{fno_block_forward.3} parent=5 // pred_check
        _
      $region10: #{fno_block_forward.3} parent=5 // pred_check_branch
        %216 = sbr.rel (%p213) target = $region12
      $region11: #{fno_block_forward.3} parent=5 // pred_region
        %s217 = ssub.s32 %s15, 1
        // Predicated region
        $region13: #{fno_block_forward.3} parent=11 // pred_check
          %p218 = pneg %p36
        $region14: #{fno_block_forward.3} parent=11 // pred_check_branch
          %220 = sbr.rel (%p218) target = $region16
        $region15: #{fno_block_forward.3} parent=11 // pred_region
          %s222 = ssub.s32 64, 64
          %223 = vsyncadd [#allocation3], %s222
          %s225 = sshll.u32 %s0, 4
          %s226 = int_to_ptr.vmem [resolvable:$true] %s225
          %228 = dma.vmem_to_smem %s226, 64, [#allocation2], [#allocation3]
        $region16: #{fno_block_forward.3} parent=11 // pred_fallthru
          _
        // Predicated region
        $region17: #{fno_block_forward.3} parent=11 // pred_check
          %p229 = pneg %p57
        $region18: #{fno_block_forward.3} parent=11 // pred_check_branch
          %231 = sbr.rel (%p229) target = $region20
        $region19: #{fno_block_forward.3} parent=11 // pred_region
          %s233 = ssub.s32 16, 16
          %234 = vsyncadd [#allocation5], %s233
          %s236 = sshll.u32 %s1, 4
          %s237 = int_to_ptr.vmem [resolvable:$true] %s236
          %239 = dma.vmem_to_smem %s237, 16, [#allocation4], [#allocation5]
        $region20: #{fno_block_forward.3} parent=11 // pred_fallthru
          _
        // Predicated region
        $region21: #{fno_block_forward.3} parent=11 // pred_check
          %p240 = pneg %p78
        $region22: #{fno_block_forward.3} parent=11 // pred_check_branch
          %242 = sbr.rel (%p240) target = $region24
        $region23: #{fno_block_forward.3} parent=11 // pred_region
          _
        $region24: #{fno_block_forward.3} parent=11 // pred_fallthru
          _
        // Predicated region
        $region25: #{fno_block_forward.3} parent=11 // pred_check
          %p243 = pneg %p99
        $region26: #{fno_block_forward.3} parent=11 // pred_check_branch
          %245 = sbr.rel (%p243) target = $region28
        $region27: #{fno_block_forward.3} parent=11 // pred_region
          _
        $region28: #{fno_block_forward.3} parent=11 // pred_fallthru
          _
      $region12: #{fno_block_forward.3} parent=5 // pred_fallthru
        _
      %p246 = scmp.lt.s32.totalorder %s15, 2
      // Predicated region
      $region29: #{fno_block_forward.3} parent=5 // pred_check
        %p247 = pneg %p246
      $region30: #{fno_block_forward.3} parent=5 // pred_check_branch
        %249 = sbr.rel (%p247) target = $region32
      $region31: #{fno_block_forward.3} parent=5 // pred_region
        // Predicated region
        $region33: #{fno_block_forward.3} parent=31 // pred_check
          %p250 = pneg %p119
        $region34: #{fno_block_forward.3} parent=31 // pred_check_branch
          %252 = sbr.rel (%p250) target = $region36
        $region35: #{fno_block_forward.3} parent=31 // pred_region
          %s253 = smul.u32 3, %s15
          %p254 = scmp.lt.s32.totalorder %s253, 5
          %s255 = scalar_select %p254, %s253, 5
          %s256 = smul.addr %s255, 8
          %s257 = smul.addr %s256, 8
          %s258 = scalar_lea.vmem %s4, %s257
          %s259 = smul.u32 3, %s15
        $region36: #{fno_block_forward.3} parent=31 // pred_fallthru
          _
        // Predicated region
        $region37: #{fno_block_forward.3} parent=31 // pred_check
          %p260 = pneg %p145
        $region38: #{fno_block_forward.3} parent=31 // pred_check_branch
          %262 = sbr.rel (%p260) target = $region40
        $region39: #{fno_block_forward.3} parent=31 // pred_region
          %s263 = smul.u32 3, %s15
          %p264 = scmp.lt.s32.totalorder %s263, 5
          %s265 = scalar_select %p264, %s263, 5
          %s266 = smul.addr %s265, 4
          %s267 = smul.addr %s266, 8
          %s268 = scalar_lea.vmem %s5, %s267
          %s269 = smul.u32 3, %s15
        $region40: #{fno_block_forward.3} parent=31 // pred_fallthru
          _
        // Predicated region
        $region41: #{fno_block_forward.3} parent=31 // pred_check
          %p270 = pneg %p171
        $region42: #{fno_block_forward.3} parent=31 // pred_check_branch
          %272 = sbr.rel (%p270) target = $region44
        $region43: #{fno_block_forward.3} parent=31 // pred_region
          %s273 = smul.u32 3, %s15
          %p274 = scmp.lt.s32.totalorder %s273, 5
          %s275 = scalar_select %p274, %s273, 5
          %s276 = smul.addr %s275, 4
          %s277 = smul.addr %s276, 8
          %s278 = scalar_lea.vmem %s6, %s277
          %s279 = smul.u32 3, %s15
        $region44: #{fno_block_forward.3} parent=31 // pred_fallthru
          _
      $region32: #{fno_block_forward.3} parent=5 // pred_fallthru
        _
      %p280 = scmp.le.s32.totalorder 1, %s15
      %p281 = scmp.lt.s32.totalorder %s15, 3
      %p282 = pnand %p280, %p281
      %p283 = pneg %p282
      // Predicated region
      $region45: #{fno_block_forward.3} parent=5 // pred_check
        _
      $region46: #{fno_block_forward.3} parent=5 // pred_check_branch
        %285 = sbr.rel (%p282) target = $region48
      $region47: #{fno_block_forward.3} parent=5 // pred_region
        %s286 = ssub.s32 %s15, 1
        // Predicated region
        $region49: #{fno_block_forward.3} parent=47 // pred_check
          %p287 = pneg %p36
        $region50: #{fno_block_forward.3} parent=47 // pred_check_branch
          %289 = sbr.rel (%p287) target = $region52
        $region51: #{fno_block_forward.3} parent=47 // pred_region
          %290 = dma.done [#allocation3], 64
        $region52: #{fno_block_forward.3} parent=47 // pred_fallthru
          _
        // Predicated region
        $region53: #{fno_block_forward.3} parent=47 // pred_check
          %p291 = pneg %p57
        $region54: #{fno_block_forward.3} parent=47 // pred_check_branch
          %293 = sbr.rel (%p291) target = $region56
        $region55: #{fno_block_forward.3} parent=47 // pred_region
          %294 = dma.done [#allocation5], 16
        $region56: #{fno_block_forward.3} parent=47 // pred_fallthru
          _
        %295 = sfence
        %p296 = pneg %p36
        %p297 = pneg %p33
        %p298 = pneg %p57
        %p299 = pneg %p54
        %p300 = pneg %p78
        %p301 = pneg %p75
        %p302 = pneg %p99
        %p303 = pneg %p96
        %s304 = smul.u32 3, %s20
        %p305 = scmp.lt.s32.totalorder %s304, 5
        %s306 = scalar_select %p305, %s304, 5
        %s307 = smul.addr %s306, 8
        %s308 = smul.addr %s307, 8
        %s309 = scalar_lea.vmem %s4, %s308
        %p310 = pneg %p125
        %p311 = pneg %p122
        %s312 = smul.u32 3, %s20
        %p313 = scmp.lt.s32.totalorder %s312, 5
        %s314 = scalar_select %p313, %s312, 5
        %s315 = smul.addr %s314, 4
        %s316 = smul.addr %s315, 8
        %s317 = scalar_lea.vmem %s5, %s316
        %p318 = pneg %p151
        %p319 = pneg %p148
        %s320 = smul.u32 3, %s20
        %p321 = scmp.lt.s32.totalorder %s320, 5
        %s322 = scalar_select %p321, %s320, 5
        %s323 = smul.addr %s322, 4
        %s324 = smul.addr %s323, 8
        %s325 = scalar_lea.vmem %s6, %s324
        %p326 = pneg %p177
        %p327 = pneg %p174
        %p328 = pneg %p203
        %p329 = pneg %p200
        %s330 = smul.u32 3, %s20
        %p331 = scmp.lt.s32.totalorder %s330, 5
        %s332 = scalar_select %p331, %s330, 5
        %s333 = smul.addr %s332, 8
        %s334 = smul.addr %s333, 8
        %s335 = scalar_lea.vmem %s7, %s334
        %s336 = smul.u32 3, %s20
        %p337 = scmp.lt.s32.totalorder %s336, 5
        %s338 = scalar_select %p337, %s336, 5
        %s339 = smul.addr %s338, 8
        %s340 = smul.addr %s339, 8
        %s341 = scalar_lea.vmem %s4, %s340
        %s342 = smul.u32 3, %s20
        %s343 = smul.u32 3, %s20
        %p344 = scmp.lt.s32.totalorder %s343, 5
        %s345 = scalar_select %p344, %s343, 5
        %s346 = smul.addr %s345, 4
        %s347 = smul.addr %s346, 8
        %s348 = scalar_lea.vmem %s5, %s347
        %s349 = smul.u32 3, %s20
        %s350 = smul.u32 3, %s20
        %p351 = scmp.lt.s32.totalorder %s350, 5
        %s352 = scalar_select %p351, %s350, 5
        %s353 = smul.addr %s352, 4
        %s354 = smul.addr %s353, 8
        %s355 = scalar_lea.vmem %s6, %s354
        %s356 = smul.u32 3, %s20
        %s357 = smul.u32 3, %s20
        %p358 = scmp.lt.s32.totalorder %s357, 5
        %s359 = scalar_select %p358, %s357, 5
        %s360 = smul.addr %s359, 8
        %s361 = smul.addr %s360, 8
        %s362 = scalar_lea.vmem %s7, %s361
        %s363 = smul.u32 3, %s20
        %v364 = vld [vmem:[%s348] sm:$0xff]
        %v365 = vld [vmem:[%s348 + $0x8] sm:$0xff]
        %v366 = vld [vmem:[%s348 + $0x10] sm:$0xff]
        %v367 = vld [vmem:[%s348 + $0x18] sm:$0xff]
        %v368 = vld [vmem:[%s2] sm:$0xff]
        %v369 = vld [vmem:[%s2 + $0x8] sm:$0xff]
        %v370 = vld [vmem:[%s2 + $0x10] sm:$0xff]
        %v371 = vld [vmem:[%s2 + $0x18] sm:$0xff]
        %v372 = vld [vmem:[%s2 + $0x20] sm:$0xff]
        %v373 = vld [vmem:[%s2 + $0x28] sm:$0xff]
        %v374 = vld [vmem:[%s2 + $0x30] sm:$0xff]
        %v375 = vld [vmem:[%s2 + $0x38] sm:$0xff]
        %v376 = vld [vmem:[%s2 + $0x40] sm:$0xff]
        %v377 = vld [vmem:[%s2 + $0x48] sm:$0xff]
        %v378 = vld [vmem:[%s2 + $0x50] sm:$0xff]
        %v379 = vld [vmem:[%s2 + $0x58] sm:$0xff]
        %v380 = vld [vmem:[%s2 + $0x60] sm:$0xff]
        %v381 = vld [vmem:[%s2 + $0x68] sm:$0xff]
        %v382 = vld [vmem:[%s2 + $0x70] sm:$0xff]
        %v383 = vld [vmem:[%s2 + $0x78] sm:$0xff]
        %v384 = vld [vmem:[%s355] sm:$0xff]
        %v385 = vld [vmem:[%s355 + $0x8] sm:$0xff]
        %v386 = vld [vmem:[%s355 + $0x10] sm:$0xff]
        %v387 = vld [vmem:[%s355 + $0x18] sm:$0xff]
        %v388 = vld [vmem:[%s3] sm:$0xff]
        %v389 = vld [vmem:[%s3 + $0x8] sm:$0xff]
        %v390 = vld [vmem:[%s3 + $0x10] sm:$0xff]
        %v391 = vld [vmem:[%s3 + $0x18] sm:$0xff]
        %v392 = vld [vmem:[%s3 + $0x20] sm:$0xff]
        %v393 = vld [vmem:[%s3 + $0x28] sm:$0xff]
        %v394 = vld [vmem:[%s3 + $0x30] sm:$0xff]
        %v395 = vld [vmem:[%s3 + $0x38] sm:$0xff]
        %v396 = vld [vmem:[%s3 + $0x40] sm:$0xff]
        %v397 = vld [vmem:[%s3 + $0x48] sm:$0xff]
        %v398 = vld [vmem:[%s3 + $0x50] sm:$0xff]
        %v399 = vld [vmem:[%s3 + $0x58] sm:$0xff]
        %v400 = vld [vmem:[%s3 + $0x60] sm:$0xff]
        %v401 = vld [vmem:[%s3 + $0x68] sm:$0xff]
        %v402 = vld [vmem:[%s3 + $0x70] sm:$0xff]
        %v403 = vld [vmem:[%s3 + $0x78] sm:$0xff]
        %vm404 = vcmask 523264
        %v406 = vsel %vm404, %v384, 0
        %v409 = vsel %vm404, %v385, 0
        %v412 = vsel %vm404, %v386, 0
        %v415 = vsel %vm404, %v387, 0
        %417 = vmatprep.subr.mxu0 %v389
        %418 = vmatpush1.msra.mxu0 %v388
        %419 = vmatprep.subr.mxu0 %v391
        %420 = vmatpush1.msra.mxu0 %v390
        %421 = vmatprep.subr.mxu0 %v393
        %422 = vmatpush1.msra.mxu0 %v392
        %423 = vmatprep.subr.mxu0 %v395
        %424 = vmatpush1.msra.mxu0 %v394
        %425 = vmatprep.subr.mxu0 %v397
        %426 = vmatpush1.msra.mxu0 %v396
        %427 = vmatprep.subr.mxu0 %v399
        %428 = vmatpush1.msra.mxu0 %v398
        %429 = vmatprep.subr.mxu0 %v401
        %430 = vmatpush1.msra.mxu0 %v400
        %431 = vmatprep.subr.mxu0 %v403
        %432 = vmatpush1.msra.mxu0 %v402
        %433 = vmatprep.subr.mxu0 0.0
        %434 = vmatpush1.msra.mxu0 0.0
        %435 = vmatprep.subr.mxu0 0.0
        %436 = vmatpush1.msra.mxu0 0.0
        %437 = vmatprep.subr.mxu0 0.0
        %438 = vmatpush1.msra.mxu0 0.0
        %439 = vmatprep.subr.mxu0 0.0
        %440 = vmatpush1.msra.mxu0 0.0
        %441 = vmatprep.subr.mxu0 0.0
        %442 = vmatpush1.msra.mxu0 0.0
        %443 = vmatprep.subr.mxu0 0.0
        %444 = vmatpush1.msra.mxu0 0.0
        %445 = vmatprep.subr.mxu0 0.0
        %446 = vmatpush1.msra.mxu0 0.0
        %447 = vmatprep.subr.mxu0 0.0
        %448 = vmatpush1.msra.mxu0 0.0
        %449 = vmatprep.subr.mxu0 0.0
        %450 = vmatpush1.msra.mxu0 0.0
        %451 = vmatprep.subr.mxu0 0.0
        %452 = vmatpush1.msra.mxu0 0.0
        %453 = vmatprep.subr.mxu0 0.0
        %454 = vmatpush1.msra.mxu0 0.0
        %455 = vmatprep.subr.mxu0 0.0
        %456 = vmatpush1.msra.mxu0 0.0
        %457 = vmatprep.subr.mxu0 0.0
        %458 = vmatpush1.msra.mxu0 0.0
        %459 = vmatprep.subr.mxu0 0.0
        %460 = vmatpush1.msra.mxu0 0.0
        %461 = vmatprep.subr.mxu0 0.0
        %462 = vmatpush1.msra.mxu0 0.0
        %463 = vmatprep.subr.mxu0 0.0
        %464 = vmatpush1.msra.mxu0 0.0
        %465 = vmatprep.subr.mxu0 0.0
        %466 = vmatpush1.msra.mxu0 0.0
        %467 = vmatprep.subr.mxu0 0.0
        %468 = vmatpush1.msra.mxu0 0.0
        %469 = vmatprep.subr.mxu0 0.0
        %470 = vmatpush1.msra.mxu0 0.0
        %471 = vmatprep.subr.mxu0 0.0
        %472 = vmatpush1.msra.mxu0 0.0
        %473 = vmatprep.subr.mxu0 0.0
        %474 = vmatpush1.msra.mxu0 0.0
        %475 = vmatprep.subr.mxu0 0.0
        %476 = vmatpush1.msra.mxu0 0.0
        %477 = vmatprep.subr.mxu0 0.0
        %478 = vmatpush1.msra.mxu0 0.0
        %479 = vmatprep.subr.mxu0 0.0
        %480 = vmatpush1.msra.mxu0 0.0
        %481 = vmatprep.mubr.f32.mxu0 0.0
        %482 = vmatmul.mubr.f32.gmra.mrb[0].mxu0 %v406
        %v483 = vpop.f32.mrb[0].mxu0
        %v484 = vadd.f32 0.0, %v483
        %v485 = vpop.f32.mrb[0].mxu0
        %v486 = vadd.f32 0.0, %v485
        %487 = vmatprep.mubr.f32.mxu0 0.0
        %488 = vmatmul.mubr.f32.gmra.mrb[0].mxu0 %v409
        %v489 = vpop.f32.mrb[0].mxu0
        %v490 = vadd.f32 0.0, %v489
        %v491 = vpop.f32.mrb[0].mxu0
        %v492 = vadd.f32 0.0, %v491
        %493 = vmatprep.mubr.f32.mxu0 0.0
        %494 = vmatmul.mubr.f32.gmra.mrb[0].mxu0 %v412
        %v495 = vpop.f32.mrb[0].mxu0
        %v496 = vadd.f32 0.0, %v495
        %v497 = vpop.f32.mrb[0].mxu0
        %v498 = vadd.f32 0.0, %v497
        %499 = vmatprep.mubr.f32.mxu0 0.0
        %500 = vmatmul.mubr.f32.gmra.mrb[0].mxu0 %v415
        %v501 = vpop.f32.mrb[0].mxu0
        %v502 = vadd.f32 0.0, %v501
        %v503 = vpop.f32.mrb[0].mxu0
        %v504 = vadd.f32 0.0, %v503
        %505 = vdwg.mxu0
        %v507 = vsel %vm404, %v364, 0
        %v510 = vsel %vm404, %v365, 0
        %v513 = vsel %vm404, %v366, 0
        %v516 = vsel %vm404, %v367, 0
        %518 = vmatprep.subr.mxu0 %v369
        %519 = vmatpush1.msra.mxu0 %v368
        %520 = vmatprep.subr.mxu0 %v371
        %521 = vmatpush1.msra.mxu0 %v370
        %522 = vmatprep.subr.mxu0 %v373
        %523 = vmatpush1.msra.mxu0 %v372
        %524 = vmatprep.subr.mxu0 %v375
        %525 = vmatpush1.msra.mxu0 %v374
        %526 = vmatprep.subr.mxu0 %v377
        %527 = vmatpush1.msra.mxu0 %v376
        %528 = vmatprep.subr.mxu0 %v379
        %529 = vmatpush1.msra.mxu0 %v378
        %530 = vmatprep.subr.mxu0 %v381
        %531 = vmatpush1.msra.mxu0 %v380
        %532 = vmatprep.subr.mxu0 %v383
        %533 = vmatpush1.msra.mxu0 %v382
        %534 = vmatprep.subr.mxu0 0.0
        %535 = vmatpush1.msra.mxu0 0.0
        %536 = vmatprep.subr.mxu0 0.0
        %537 = vmatpush1.msra.mxu0 0.0
        %538 = vmatprep.subr.mxu0 0.0
        %539 = vmatpush1.msra.mxu0 0.0
        %540 = vmatprep.subr.mxu0 0.0
        %541 = vmatpush1.msra.mxu0 0.0
        %542 = vmatprep.subr.mxu0 0.0
        %543 = vmatpush1.msra.mxu0 0.0
        %544 = vmatprep.subr.mxu0 0.0
        %545 = vmatpush1.msra.mxu0 0.0
        %546 = vmatprep.subr.mxu0 0.0
        %547 = vmatpush1.msra.mxu0 0.0
        %548 = vmatprep.subr.mxu0 0.0
        %549 = vmatpush1.msra.mxu0 0.0
        %550 = vmatprep.subr.mxu0 0.0
        %551 = vmatpush1.msra.mxu0 0.0
        %552 = vmatprep.subr.mxu0 0.0
        %553 = vmatpush1.msra.mxu0 0.0
        %554 = vmatprep.subr.mxu0 0.0
        %555 = vmatpush1.msra.mxu0 0.0
        %556 = vmatprep.subr.mxu0 0.0
        %557 = vmatpush1.msra.mxu0 0.0
        %558 = vmatprep.subr.mxu0 0.0
        %559 = vmatpush1.msra.mxu0 0.0
        %560 = vmatprep.subr.mxu0 0.0
        %561 = vmatpush1.msra.mxu0 0.0
        %562 = vmatprep.subr.mxu0 0.0
        %563 = vmatpush1.msra.mxu0 0.0
        %564 = vmatprep.subr.mxu0 0.0
        %565 = vmatpush1.msra.mxu0 0.0
        %566 = vmatprep.subr.mxu0 0.0
        %567 = vmatpush1.msra.mxu0 0.0
        %568 = vmatprep.subr.mxu0 0.0
        %569 = vmatpush1.msra.mxu0 0.0
        %570 = vmatprep.subr.mxu0 0.0
        %571 = vmatpush1.msra.mxu0 0.0
        %572 = vmatprep.subr.mxu0 0.0
        %573 = vmatpush1.msra.mxu0 0.0
        %574 = vmatprep.subr.mxu0 0.0
        %575 = vmatpush1.msra.mxu0 0.0
        %576 = vmatprep.subr.mxu0 0.0
        %577 = vmatpush1.msra.mxu0 0.0
        %578 = vmatprep.subr.mxu0 0.0
        %579 = vmatpush1.msra.mxu0 0.0
        %580 = vmatprep.subr.mxu0 0.0
        %581 = vmatpush1.msra.mxu0 0.0
        %582 = vmatprep.mubr.f32.mxu0 0.0
        %583 = vmatmul.mubr.f32.gmra.mrb[0].mxu0 %v507
        %v584 = vpop.f32.mrb[0].mxu0
        %v585 = vadd.f32 %v484, %v584
        %v586 = vpop.f32.mrb[0].mxu0
        %v587 = vadd.f32 %v486, %v586
        %588 = vmatprep.mubr.f32.mxu0 0.0
        %589 = vmatmul.mubr.f32.gmra.mrb[0].mxu0 %v510
        %v590 = vpop.f32.mrb[0].mxu0
        %v591 = vadd.f32 %v490, %v590
        %v592 = vpop.f32.mrb[0].mxu0
        %v593 = vadd.f32 %v492, %v592
        %594 = vmatprep.mubr.f32.mxu0 0.0
        %595 = vmatmul.mubr.f32.gmra.mrb[0].mxu0 %v513
        %v596 = vpop.f32.mrb[0].mxu0
        %v597 = vadd.f32 %v496, %v596
        %v598 = vpop.f32.mrb[0].mxu0
        %v599 = vadd.f32 %v498, %v598
        %600 = vmatprep.mubr.f32.mxu0 0.0
        %601 = vmatmul.mubr.f32.gmra.mrb[0].mxu0 %v516
        %v602 = vpop.f32.mrb[0].mxu0
        %v603 = vadd.f32 %v502, %v602
        %v604 = vpop.f32.mrb[0].mxu0
        %v605 = vadd.f32 %v504, %v604
        %606 = vdwg.mxu0
        %v607 = vld [vmem:[%s341] sm:$0xff]
        %v608 = vld [vmem:[%s341 + $0x8] sm:$0xff]
        %s609 = scalar_lea.vmem %s341, 16
        %v610 = vld [vmem:[%s609] sm:$0xff]
        %v611 = vld [vmem:[%s609 + $0x8] sm:$0xff]
        %s612 = scalar_lea.vmem %s341, 32
        %v613 = vld [vmem:[%s612] sm:$0xff]
        %v614 = vld [vmem:[%s612 + $0x8] sm:$0xff]
        %s615 = scalar_lea.vmem %s341, 48
        %v616 = vld [vmem:[%s615] sm:$0xff]
        %v617 = vld [vmem:[%s615 + $0x8] sm:$0xff]
        %s618 = sld [smem:[#allocation4]]
        %v619 = vstv %s618
        %v620 = vadd.f32 %v585, %v619
        %v621 = vadd.f32 %v587, %v619
        %s622 = sld [smem:[#allocation2]]
        %v623 = vstv %s622
        %v624 = vmul.f32 %v623, %v607
        %v625 = vmul.f32 %v623, %v608
        %v626 = vadd.f32 %v620, %v624
        %v627 = vadd.f32 %v621, %v625
        %s628 = sld [smem:[#allocation2 + $0x1]]
        %v629 = vstv %s628
        %v630 = vmul.f32 %v629, %v610
        %v631 = vmul.f32 %v629, %v611
        %v632 = vadd.f32 %v626, %v630
        %v633 = vadd.f32 %v627, %v631
        %s634 = sld [smem:[#allocation2 + $0x2]]
        %v635 = vstv %s634
        %v636 = vmul.f32 %v635, %v613
        %v637 = vmul.f32 %v635, %v614
        %v638 = vadd.f32 %v632, %v636
        %v639 = vadd.f32 %v633, %v637
        %s640 = sld [smem:[#allocation2 + $0x3]]
        %v641 = vstv %s640
        %v642 = vmul.f32 %v641, %v616
        %v643 = vmul.f32 %v641, %v617
        %v644 = vadd.f32 %v638, %v642
        %v645 = vadd.f32 %v639, %v643
        %v646 = vmul.f32 %v644, 0.5
        %v647 = vmul.f32 %v645, 0.5
        %v648 = vmul.f32 %v644, 0.044715
        %v649 = vmul.f32 %v645, 0.044715
        %v650 = vmul.f32 %v648, %v644
        %v651 = vmul.f32 %v649, %v645
        %v652 = vmul.f32 %v650, %v644
        %v653 = vmul.f32 %v651, %v645
        %v654 = vadd.f32 %v644, %v652
        %v655 = vadd.f32 %v645, %v653
        %v656 = vmul.f32 %v654, 0.7978846
        %v657 = vmul.f32 %v655, 0.7978846
        %v658 = vtanh.pop %v656
        %v659 = vtanh.pop %v657
        %v660 = vadd.f32 %v658, 1.0
        %v661 = vadd.f32 %v659, 1.0
        %v662 = vmul.f32 %v646, %v660
        %v663 = vmul.f32 %v647, %v661
        %664 = vst [vmem:[%s362] sm:$0xff] %v662
        %665 = vst [vmem:[%s362 + $0x8] sm:$0xff] %v663
        %s666 = sld [smem:[#allocation4 + $0x1]]
        %v667 = vstv %s666
        %v668 = vadd.f32 %v591, %v667
        %v669 = vadd.f32 %v593, %v667
        %s670 = sld [smem:[#allocation2 + $0x80]]
        %v671 = vstv %s670
        %v672 = vmul.f32 %v671, %v607
        %v673 = vmul.f32 %v671, %v608
        %v674 = vadd.f32 %v668, %v672
        %v675 = vadd.f32 %v669, %v673
        %s676 = sld [smem:[#allocation2 + $0x81]]
        %v677 = vstv %s676
        %v678 = vmul.f32 %v677, %v610
        %v679 = vmul.f32 %v677, %v611
        %v680 = vadd.f32 %v674, %v678
        %v681 = vadd.f32 %v675, %v679
        %s682 = sld [smem:[#allocation2 + $0x82]]
        %v683 = vstv %s682
        %v684 = vmul.f32 %v683, %v613
        %v685 = vmul.f32 %v683, %v614
        %v686 = vadd.f32 %v680, %v684
        %v687 = vadd.f32 %v681, %v685
        %s688 = sld [smem:[#allocation2 + $0x83]]
        %v689 = vstv %s688
        %v690 = vmul.f32 %v689, %v616
        %v691 = vmul.f32 %v689, %v617
        %v692 = vadd.f32 %v686, %v690
        %v693 = vadd.f32 %v687, %v691
        %v694 = vmul.f32 %v692, 0.5
        %v695 = vmul.f32 %v693, 0.5
        %v696 = vmul.f32 %v692, 0.044715
        %v697 = vmul.f32 %v693, 0.044715
        %v698 = vmul.f32 %v696, %v692
        %v699 = vmul.f32 %v697, %v693
        %v700 = vmul.f32 %v698, %v692
        %v701 = vmul.f32 %v699, %v693
        %v702 = vadd.f32 %v692, %v700
        %v703 = vadd.f32 %v693, %v701
        %v704 = vmul.f32 %v702, 0.7978846
        %v705 = vmul.f32 %v703, 0.7978846
        %v706 = vtanh.pop %v704
        %v707 = vtanh.pop %v705
        %v708 = vadd.f32 %v706, 1.0
        %v709 = vadd.f32 %v707, 1.0
        %v710 = vmul.f32 %v694, %v708
        %v711 = vmul.f32 %v695, %v709
        %s712 = scalar_lea.vmem %s362, 16
        %713 = vst [vmem:[%s712] sm:$0xff] %v710
        %714 = vst [vmem:[%s712 + $0x8] sm:$0xff] %v711
        %s715 = sld [smem:[#allocation4 + $0x2]]
        %v716 = vstv %s715
        %v717 = vadd.f32 %v597, %v716
        %v718 = vadd.f32 %v599, %v716
        %s719 = sld [smem:[#allocation2 + $0x100]]
        %v720 = vstv %s719
        %v721 = vmul.f32 %v720, %v607
        %v722 = vmul.f32 %v720, %v608
        %v723 = vadd.f32 %v717, %v721
        %v724 = vadd.f32 %v718, %v722
        %s725 = sld [smem:[#allocation2 + $0x101]]
        %v726 = vstv %s725
        %v727 = vmul.f32 %v726, %v610
        %v728 = vmul.f32 %v726, %v611
        %v729 = vadd.f32 %v723, %v727
        %v730 = vadd.f32 %v724, %v728
        %s731 = sld [smem:[#allocation2 + $0x102]]
        %v732 = vstv %s731
        %v733 = vmul.f32 %v732, %v613
        %v734 = vmul.f32 %v732, %v614
        %v735 = vadd.f32 %v729, %v733
        %v736 = vadd.f32 %v730, %v734
        %s737 = sld [smem:[#allocation2 + $0x103]]
        %v738 = vstv %s737
        %v739 = vmul.f32 %v738, %v616
        %v740 = vmul.f32 %v738, %v617
        %v741 = vadd.f32 %v735, %v739
        %v742 = vadd.f32 %v736, %v740
        %v743 = vmul.f32 %v741, 0.5
        %v744 = vmul.f32 %v742, 0.5
        %v745 = vmul.f32 %v741, 0.044715
        %v746 = vmul.f32 %v742, 0.044715
        %v747 = vmul.f32 %v745, %v741
        %v748 = vmul.f32 %v746, %v742
        %v749 = vmul.f32 %v747, %v741
        %v750 = vmul.f32 %v748, %v742
        %v751 = vadd.f32 %v741, %v749
        %v752 = vadd.f32 %v742, %v750
        %v753 = vmul.f32 %v751, 0.7978846
        %v754 = vmul.f32 %v752, 0.7978846
        %v755 = vtanh.pop %v753
        %v756 = vtanh.pop %v754
        %v757 = vadd.f32 %v755, 1.0
        %v758 = vadd.f32 %v756, 1.0
        %v759 = vmul.f32 %v743, %v757
        %v760 = vmul.f32 %v744, %v758
        %s761 = scalar_lea.vmem %s362, 32
        %762 = vst [vmem:[%s761] sm:$0xff] %v759
        %763 = vst [vmem:[%s761 + $0x8] sm:$0xff] %v760
        %s764 = sld [smem:[#allocation4 + $0x3]]
        %v765 = vstv %s764
        %v766 = vadd.f32 %v603, %v765
        %v767 = vadd.f32 %v605, %v765
        %s768 = sld [smem:[#allocation2 + $0x180]]
        %v769 = vstv %s768
        %v770 = vmul.f32 %v769, %v607
        %v771 = vmul.f32 %v769, %v608
        %v772 = vadd.f32 %v766, %v770
        %v773 = vadd.f32 %v767, %v771
        %s774 = sld [smem:[#allocation2 + $0x181]]
        %v775 = vstv %s774
        %v776 = vmul.f32 %v775, %v610
        %v777 = vmul.f32 %v775, %v611
        %v778 = vadd.f32 %v772, %v776
        %v779 = vadd.f32 %v773, %v777
        %s780 = sld [smem:[#allocation2 + $0x182]]
        %v781 = vstv %s780
        %v782 = vmul.f32 %v781, %v613
        %v783 = vmul.f32 %v781, %v614
        %v784 = vadd.f32 %v778, %v782
        %v785 = vadd.f32 %v779, %v783
        %s786 = sld [smem:[#allocation2 + $0x183]]
        %v787 = vstv %s786
        %v788 = vmul.f32 %v787, %v616
        %v789 = vmul.f32 %v787, %v617
        %v790 = vadd.f32 %v784, %v788
        %v791 = vadd.f32 %v785, %v789
        %v792 = vmul.f32 %v790, 0.5
        %v793 = vmul.f32 %v791, 0.5
        %v794 = vmul.f32 %v790, 0.044715
        %v795 = vmul.f32 %v791, 0.044715
        %v796 = vmul.f32 %v794, %v790
        %v797 = vmul.f32 %v795, %v791
        %v798 = vmul.f32 %v796, %v790
        %v799 = vmul.f32 %v797, %v791
        %v800 = vadd.f32 %v790, %v798
        %v801 = vadd.f32 %v791, %v799
        %v802 = vmul.f32 %v800, 0.7978846
        %v803 = vmul.f32 %v801, 0.7978846
        %v804 = vtanh.pop %v802
        %v805 = vtanh.pop %v803
        %v806 = vadd.f32 %v804, 1.0
        %v807 = vadd.f32 %v805, 1.0
        %v808 = vmul.f32 %v792, %v806
        %v809 = vmul.f32 %v793, %v807
        %s810 = scalar_lea.vmem %s362, 48
        %811 = vst [vmem:[%s810] sm:$0xff] %v808
        %812 = vst [vmem:[%s810 + $0x8] sm:$0xff] %v809
        %s813 = scalar_lea.vmem %s348, 32
        %v814 = vld [vmem:[%s813] sm:$0xff]
        %v815 = vld [vmem:[%s813 + $0x8] sm:$0xff]
        %v816 = vld [vmem:[%s813 + $0x10] sm:$0xff]
        %v817 = vld [vmem:[%s813 + $0x18] sm:$0xff]
        %v818 = vld [vmem:[%s2] sm:$0xff]
        %v819 = vld [vmem:[%s2 + $0x8] sm:$0xff]
        %v820 = vld [vmem:[%s2 + $0x10] sm:$0xff]
        %v821 = vld [vmem:[%s2 + $0x18] sm:$0xff]
        %v822 = vld [vmem:[%s2 + $0x20] sm:$0xff]
        %v823 = vld [vmem:[%s2 + $0x28] sm:$0xff]
        %v824 = vld [vmem:[%s2 + $0x30] sm:$0xff]
        %v825 = vld [vmem:[%s2 + $0x38] sm:$0xff]
        %v826 = vld [vmem:[%s2 + $0x40] sm:$0xff]
        %v827 = vld [vmem:[%s2 + $0x48] sm:$0xff]
        %v828 = vld [vmem:[%s2 + $0x50] sm:$0xff]
        %v829 = vld [vmem:[%s2 + $0x58] sm:$0xff]
        %v830 = vld [vmem:[%s2 + $0x60] sm:$0xff]
        %v831 = vld [vmem:[%s2 + $0x68] sm:$0xff]
        %v832 = vld [vmem:[%s2 + $0x70] sm:$0xff]
        %v833 = vld [vmem:[%s2 + $0x78] sm:$0xff]
        %s834 = scalar_lea.vmem %s355, 32
        %v835 = vld [vmem:[%s834] sm:$0xff]
        %v836 = vld [vmem:[%s834 + $0x8] sm:$0xff]
        %v837 = vld [vmem:[%s834 + $0x10] sm:$0xff]
        %v838 = vld [vmem:[%s834 + $0x18] sm:$0xff]
        %v839 = vld [vmem:[%s3] sm:$0xff]
        %v840 = vld [vmem:[%s3 + $0x8] sm:$0xff]
        %v841 = vld [vmem:[%s3 + $0x10] sm:$0xff]
        %v842 = vld [vmem:[%s3 + $0x18] sm:$0xff]
        %v843 = vld [vmem:[%s3 + $0x20] sm:$0xff]
        %v844 = vld [vmem:[%s3 + $0x28] sm:$0xff]
        %v845 = vld [vmem:[%s3 + $0x30] sm:$0xff]
        %v846 = vld [vmem:[%s3 + $0x38] sm:$0xff]
        %v847 = vld [vmem:[%s3 + $0x40] sm:$0xff]
        %v848 = vld [vmem:[%s3 + $0x48] sm:$0xff]
        %v849 = vld [vmem:[%s3 + $0x50] sm:$0xff]
        %v850 = vld [vmem:[%s3 + $0x58] sm:$0xff]
        %v851 = vld [vmem:[%s3 + $0x60] sm:$0xff]
        %v852 = vld [vmem:[%s3 + $0x68] sm:$0xff]
        %v853 = vld [vmem:[%s3 + $0x70] sm:$0xff]
        %v854 = vld [vmem:[%s3 + $0x78] sm:$0xff]
        %v856 = vsel %vm404, %v835, 0
        %v859 = vsel %vm404, %v836, 0
        %v862 = vsel %vm404, %v837, 0
        %v865 = vsel %vm404, %v838, 0
        %867 = vmatprep.subr.mxu0 %v840
        %868 = vmatpush1.msra.mxu0 %v839
        %869 = vmatprep.subr.mxu0 %v842
        %870 = vmatpush1.msra.mxu0 %v841
        %871 = vmatprep.subr.mxu0 %v844
        %872 = vmatpush1.msra.mxu0 %v843
        %873 = vmatprep.subr.mxu0 %v846
        %874 = vmatpush1.msra.mxu0 %v845
        %875 = vmatprep.subr.mxu0 %v848
        %876 = vmatpush1.msra.mxu0 %v847
        %877 = vmatprep.subr.mxu0 %v850
        %878 = vmatpush1.msra.mxu0 %v849
        %879 = vmatprep.subr.mxu0 %v852
        %880 = vmatpush1.msra.mxu0 %v851
        %881 = vmatprep.subr.mxu0 %v854
        %882 = vmatpush1.msra.mxu0 %v853
        %883 = vmatprep.subr.mxu0 0.0
        %884 = vmatpush1.msra.mxu0 0.0
        %885 = vmatprep.subr.mxu0 0.0
        %886 = vmatpush1.msra.mxu0 0.0
        %887 = vmatprep.subr.mxu0 0.0
        %888 = vmatpush1.msra.mxu0 0.0
        %889 = vmatprep.subr.mxu0 0.0
        %890 = vmatpush1.msra.mxu0 0.0
        %891 = vmatprep.subr.mxu0 0.0
        %892 = vmatpush1.msra.mxu0 0.0
        %893 = vmatprep.subr.mxu0 0.0
        %894 = vmatpush1.msra.mxu0 0.0
        %895 = vmatprep.subr.mxu0 0.0
        %896 = vmatpush1.msra.mxu0 0.0
        %897 = vmatprep.subr.mxu0 0.0
        %898 = vmatpush1.msra.mxu0 0.0
        %899 = vmatprep.subr.mxu0 0.0
        %900 = vmatpush1.msra.mxu0 0.0
        %901 = vmatprep.subr.mxu0 0.0
        %902 = vmatpush1.msra.mxu0 0.0
        %903 = vmatprep.subr.mxu0 0.0
        %904 = vmatpush1.msra.mxu0 0.0
        %905 = vmatprep.subr.mxu0 0.0
        %906 = vmatpush1.msra.mxu0 0.0
        %907 = vmatprep.subr.mxu0 0.0
        %908 = vmatpush1.msra.mxu0 0.0
        %909 = vmatprep.subr.mxu0 0.0
        %910 = vmatpush1.msra.mxu0 0.0
        %911 = vmatprep.subr.mxu0 0.0
        %912 = vmatpush1.msra.mxu0 0.0
        %913 = vmatprep.subr.mxu0 0.0
        %914 = vmatpush1.msra.mxu0 0.0
        %915 = vmatprep.subr.mxu0 0.0
        %916 = vmatpush1.msra.mxu0 0.0
        %917 = vmatprep.subr.mxu0 0.0
        %918 = vmatpush1.msra.mxu0 0.0
        %919 = vmatprep.subr.mxu0 0.0
        %920 = vmatpush1.msra.mxu0 0.0
        %921 = vmatprep.subr.mxu0 0.0
        %922 = vmatpush1.msra.mxu0 0.0
        %923 = vmatprep.subr.mxu0 0.0
        %924 = vmatpush1.msra.mxu0 0.0
        %925 = vmatprep.subr.mxu0 0.0
        %926 = vmatpush1.msra.mxu0 0.0
        %927 = vmatprep.subr.mxu0 0.0
        %928 = vmatpush1.msra.mxu0 0.0
        %929 = vmatprep.subr.mxu0 0.0
        %930 = vmatpush1.msra.mxu0 0.0
        %931 = vmatprep.mubr.f32.mxu0 0.0
        %932 = vmatmul.mubr.f32.gmra.mrb[0].mxu0 %v856
        %v933 = vpop.f32.mrb[0].mxu0
        %v934 = vadd.f32 0.0, %v933
        %v935 = vpop.f32.mrb[0].mxu0
        %v936 = vadd.f32 0.0, %v935
        %937 = vmatprep.mubr.f32.mxu0 0.0
        %938 = vmatmul.mubr.f32.gmra.mrb[0].mxu0 %v859
        %v939 = vpop.f32.mrb[0].mxu0
        %v940 = vadd.f32 0.0, %v939
        %v941 = vpop.f32.mrb[0].mxu0
        %v942 = vadd.f32 0.0, %v941
        %943 = vmatprep.mubr.f32.mxu0 0.0
        %944 = vmatmul.mubr.f32.gmra.mrb[0].mxu0 %v862
        %v945 = vpop.f32.mrb[0].mxu0
        %v946 = vadd.f32 0.0, %v945
        %v947 = vpop.f32.mrb[0].mxu0
        %v948 = vadd.f32 0.0, %v947
        %949 = vmatprep.mubr.f32.mxu0 0.0
        %950 = vmatmul.mubr.f32.gmra.mrb[0].mxu0 %v865
        %v951 = vpop.f32.mrb[0].mxu0
        %v952 = vadd.f32 0.0, %v951
        %v953 = vpop.f32.mrb[0].mxu0
        %v954 = vadd.f32 0.0, %v953
        %955 = vdwg.mxu0
        %v957 = vsel %vm404, %v814, 0
        %v960 = vsel %vm404, %v815, 0
        %v963 = vsel %vm404, %v816, 0
        %v966 = vsel %vm404, %v817, 0
        %968 = vmatprep.subr.mxu0 %v819
        %969 = vmatpush1.msra.mxu0 %v818
        %970 = vmatprep.subr.mxu0 %v821
        %971 = vmatpush1.msra.mxu0 %v820
        %972 = vmatprep.subr.mxu0 %v823
        %973 = vmatpush1.msra.mxu0 %v822
        %974 = vmatprep.subr.mxu0 %v825
        %975 = vmatpush1.msra.mxu0 %v824
        %976 = vmatprep.subr.mxu0 %v827
        %977 = vmatpush1.msra.mxu0 %v826
        %978 = vmatprep.subr.mxu0 %v829
        %979 = vmatpush1.msra.mxu0 %v828
        %980 = vmatprep.subr.mxu0 %v831
        %981 = vmatpush1.msra.mxu0 %v830
        %982 = vmatprep.subr.mxu0 %v833
        %983 = vmatpush1.msra.mxu0 %v832
        %984 = vmatprep.subr.mxu0 0.0
        %985 = vmatpush1.msra.mxu0 0.0
        %986 = vmatprep.subr.mxu0 0.0
        %987 = vmatpush1.msra.mxu0 0.0
        %988 = vmatprep.subr.mxu0 0.0
        %989 = vmatpush1.msra.mxu0 0.0
        %990 = vmatprep.subr.mxu0 0.0
        %991 = vmatpush1.msra.mxu0 0.0
        %992 = vmatprep.subr.mxu0 0.0
        %993 = vmatpush1.msra.mxu0 0.0
        %994 = vmatprep.subr.mxu0 0.0
        %995 = vmatpush1.msra.mxu0 0.0
        %996 = vmatprep.subr.mxu0 0.0
        %997 = vmatpush1.msra.mxu0 0.0
        %998 = vmatprep.subr.mxu0 0.0
        %999 = vmatpush1.msra.mxu0 0.0
        %1000 = vmatprep.subr.mxu0 0.0
        %1001 = vmatpush1.msra.mxu0 0.0
        %1002 = vmatprep.subr.mxu0 0.0
        %1003 = vmatpush1.msra.mxu0 0.0
        %1004 = vmatprep.subr.mxu0 0.0
        %1005 = vmatpush1.msra.mxu0 0.0
        %1006 = vmatprep.subr.mxu0 0.0
        %1007 = vmatpush1.msra.mxu0 0.0
        %1008 = vmatprep.subr.mxu0 0.0
        %1009 = vmatpush1.msra.mxu0 0.0
        %1010 = vmatprep.subr.mxu0 0.0
        %1011 = vmatpush1.msra.mxu0 0.0
        %1012 = vmatprep.subr.mxu0 0.0
        %1013 = vmatpush1.msra.mxu0 0.0
        %1014 = vmatprep.subr.mxu0 0.0
        %1015 = vmatpush1.msra.mxu0 0.0
        %1016 = vmatprep.subr.mxu0 0.0
        %1017 = vmatpush1.msra.mxu0 0.0
        %1018 = vmatprep.subr.mxu0 0.0
        %1019 = vmatpush1.msra.mxu0 0.0
        %1020 = vmatprep.subr.mxu0 0.0
        %1021 = vmatpush1.msra.mxu0 0.0
        %1022 = vmatprep.subr.mxu0 0.0
        %1023 = vmatpush1.msra.mxu0 0.0
        %1024 = vmatprep.subr.mxu0 0.0
        %1025 = vmatpush1.msra.mxu0 0.0
        %1026 = vmatprep.subr.mxu0 0.0
        %1027 = vmatpush1.msra.mxu0 0.0
        %1028 = vmatprep.subr.mxu0 0.0
        %1029 = vmatpush1.msra.mxu0 0.0
        %1030 = vmatprep.subr.mxu0 0.0
        %1031 = vmatpush1.msra.mxu0 0.0
        %1032 = vmatprep.mubr.f32.mxu0 0.0
        %1033 = vmatmul.mubr.f32.gmra.mrb[0].mxu0 %v957
        %v1034 = vpop.f32.mrb[0].mxu0
        %v1035 = vadd.f32 %v934, %v1034
        %v1036 = vpop.f32.mrb[0].mxu0
        %v1037 = vadd.f32 %v936, %v1036
        %1038 = vmatprep.mubr.f32.mxu0 0.0
        %1039 = vmatmul.mubr.f32.gmra.mrb[0].mxu0 %v960
        %v1040 = vpop.f32.mrb[0].mxu0
        %v1041 = vadd.f32 %v940, %v1040
        %v1042 = vpop.f32.mrb[0].mxu0
        %v1043 = vadd.f32 %v942, %v1042
        %1044 = vmatprep.mubr.f32.mxu0 0.0
        %1045 = vmatmul.mubr.f32.gmra.mrb[0].mxu0 %v963
        %v1046 = vpop.f32.mrb[0].mxu0
        %v1047 = vadd.f32 %v946, %v1046
        %v1048 = vpop.f32.mrb[0].mxu0
        %v1049 = vadd.f32 %v948, %v1048
        %1050 = vmatprep.mubr.f32.mxu0 0.0
        %1051 = vmatmul.mubr.f32.gmra.mrb[0].mxu0 %v966
        %v1052 = vpop.f32.mrb[0].mxu0
        %v1053 = vadd.f32 %v952, %v1052
        %v1054 = vpop.f32.mrb[0].mxu0
        %v1055 = vadd.f32 %v954, %v1054
        %1056 = vdwg.mxu0
        %s1057 = scalar_lea.vmem %s341, 64
        %v1058 = vld [vmem:[%s1057] sm:$0xff]
        %v1059 = vld [vmem:[%s1057 + $0x8] sm:$0xff]
        %s1060 = scalar_lea.vmem %s341, 80
        %v1061 = vld [vmem:[%s1060] sm:$0xff]
        %v1062 = vld [vmem:[%s1060 + $0x8] sm:$0xff]
        %s1063 = scalar_lea.vmem %s341, 96
        %v1064 = vld [vmem:[%s1063] sm:$0xff]
        %v1065 = vld [vmem:[%s1063 + $0x8] sm:$0xff]
        %s1066 = scalar_lea.vmem %s341, 112
        %v1067 = vld [vmem:[%s1066] sm:$0xff]
        %v1068 = vld [vmem:[%s1066 + $0x8] sm:$0xff]
        %s1069 = sld [smem:[#allocation4]]
        %v1070 = vstv %s1069
        %v1071 = vadd.f32 %v1035, %v1070
        %v1072 = vadd.f32 %v1037, %v1070
        %s1073 = sld [smem:[#allocation2]]
        %v1074 = vstv %s1073
        %v1075 = vmul.f32 %v1074, %v1058
        %v1076 = vmul.f32 %v1074, %v1059
        %v1077 = vadd.f32 %v1071, %v1075
        %v1078 = vadd.f32 %v1072, %v1076
        %s1079 = sld [smem:[#allocation2 + $0x1]]
        %v1080 = vstv %s1079
        %v1081 = vmul.f32 %v1080, %v1061
        %v1082 = vmul.f32 %v1080, %v1062
        %v1083 = vadd.f32 %v1077, %v1081
        %v1084 = vadd.f32 %v1078, %v1082
        %s1085 = sld [smem:[#allocation2 + $0x2]]
        %v1086 = vstv %s1085
        %v1087 = vmul.f32 %v1086, %v1064
        %v1088 = vmul.f32 %v1086, %v1065
        %v1089 = vadd.f32 %v1083, %v1087
        %v1090 = vadd.f32 %v1084, %v1088
        %s1091 = sld [smem:[#allocation2 + $0x3]]
        %v1092 = vstv %s1091
        %v1093 = vmul.f32 %v1092, %v1067
        %v1094 = vmul.f32 %v1092, %v1068
        %v1095 = vadd.f32 %v1089, %v1093
        %v1096 = vadd.f32 %v1090, %v1094
        %v1097 = vmul.f32 %v1095, 0.5
        %v1098 = vmul.f32 %v1096, 0.5
        %v1099 = vmul.f32 %v1095, 0.044715
        %v1100 = vmul.f32 %v1096, 0.044715
        %v1101 = vmul.f32 %v1099, %v1095
        %v1102 = vmul.f32 %v1100, %v1096
        %v1103 = vmul.f32 %v1101, %v1095
        %v1104 = vmul.f32 %v1102, %v1096
        %v1105 = vadd.f32 %v1095, %v1103
        %v1106 = vadd.f32 %v1096, %v1104
        %v1107 = vmul.f32 %v1105, 0.7978846
        %v1108 = vmul.f32 %v1106, 0.7978846
        %v1109 = vtanh.pop %v1107
        %v1110 = vtanh.pop %v1108
        %v1111 = vadd.f32 %v1109, 1.0
        %v1112 = vadd.f32 %v1110, 1.0
        %v1113 = vmul.f32 %v1097, %v1111
        %v1114 = vmul.f32 %v1098, %v1112
        %s1115 = scalar_lea.vmem %s362, 64
        %1116 = vst [vmem:[%s1115] sm:$0xff] %v1113
        %1117 = vst [vmem:[%s1115 + $0x8] sm:$0xff] %v1114
        %s1118 = sld [smem:[#allocation4 + $0x1]]
        %v1119 = vstv %s1118
        %v1120 = vadd.f32 %v1041, %v1119
        %v1121 = vadd.f32 %v1043, %v1119
        %s1122 = sld [smem:[#allocation2 + $0x80]]
        %v1123 = vstv %s1122
        %v1124 = vmul.f32 %v1123, %v1058
        %v1125 = vmul.f32 %v1123, %v1059
        %v1126 = vadd.f32 %v1120, %v1124
        %v1127 = vadd.f32 %v1121, %v1125
        %s1128 = sld [smem:[#allocation2 + $0x81]]
        %v1129 = vstv %s1128
        %v1130 = vmul.f32 %v1129, %v1061
        %v1131 = vmul.f32 %v1129, %v1062
        %v1132 = vadd.f32 %v1126, %v1130
        %v1133 = vadd.f32 %v1127, %v1131
        %s1134 = sld [smem:[#allocation2 + $0x82]]
        %v1135 = vstv %s1134
        %v1136 = vmul.f32 %v1135, %v1064
        %v1137 = vmul.f32 %v1135, %v1065
        %v1138 = vadd.f32 %v1132, %v1136
        %v1139 = vadd.f32 %v1133, %v1137
        %s1140 = sld [smem:[#allocation2 + $0x83]]
        %v1141 = vstv %s1140
        %v1142 = vmul.f32 %v1141, %v1067
        %v1143 = vmul.f32 %v1141, %v1068
        %v1144 = vadd.f32 %v1138, %v1142
        %v1145 = vadd.f32 %v1139, %v1143
        %v1146 = vmul.f32 %v1144, 0.5
        %v1147 = vmul.f32 %v1145, 0.5
        %v1148 = vmul.f32 %v1144, 0.044715
        %v1149 = vmul.f32 %v1145, 0.044715
        %v1150 = vmul.f32 %v1148, %v1144
        %v1151 = vmul.f32 %v1149, %v1145
        %v1152 = vmul.f32 %v1150, %v1144
        %v1153 = vmul.f32 %v1151, %v1145
        %v1154 = vadd.f32 %v1144, %v1152
        %v1155 = vadd.f32 %v1145, %v1153
        %v1156 = vmul.f32 %v1154, 0.7978846
        %v1157 = vmul.f32 %v1155, 0.7978846
        %v1158 = vtanh.pop %v1156
        %v1159 = vtanh.pop %v1157
        %v1160 = vadd.f32 %v1158, 1.0
        %v1161 = vadd.f32 %v1159, 1.0
        %v1162 = vmul.f32 %v1146, %v1160
        %v1163 = vmul.f32 %v1147, %v1161
        %s1164 = scalar_lea.vmem %s362, 80
        %1165 = vst [vmem:[%s1164] sm:$0xff] %v1162
        %1166 = vst [vmem:[%s1164 + $0x8] sm:$0xff] %v1163
        %s1167 = sld [smem:[#allocation4 + $0x2]]
        %v1168 = vstv %s1167
        %v1169 = vadd.f32 %v1047, %v1168
        %v1170 = vadd.f32 %v1049, %v1168
        %s1171 = sld [smem:[#allocation2 + $0x100]]
        %v1172 = vstv %s1171
        %v1173 = vmul.f32 %v1172, %v1058
        %v1174 = vmul.f32 %v1172, %v1059
        %v1175 = vadd.f32 %v1169, %v1173
        %v1176 = vadd.f32 %v1170, %v1174
        %s1177 = sld [smem:[#allocation2 + $0x101]]
        %v1178 = vstv %s1177
        %v1179 = vmul.f32 %v1178, %v1061
        %v1180 = vmul.f32 %v1178, %v1062
        %v1181 = vadd.f32 %v1175, %v1179
        %v1182 = vadd.f32 %v1176, %v1180
        %s1183 = sld [smem:[#allocation2 + $0x102]]
        %v1184 = vstv %s1183
        %v1185 = vmul.f32 %v1184, %v1064
        %v1186 = vmul.f32 %v1184, %v1065
        %v1187 = vadd.f32 %v1181, %v1185
        %v1188 = vadd.f32 %v1182, %v1186
        %s1189 = sld [smem:[#allocation2 + $0x103]]
        %v1190 = vstv %s1189
        %v1191 = vmul.f32 %v1190, %v1067
        %v1192 = vmul.f32 %v1190, %v1068
        %v1193 = vadd.f32 %v1187, %v1191
        %v1194 = vadd.f32 %v1188, %v1192
        %v1195 = vmul.f32 %v1193, 0.5
        %v1196 = vmul.f32 %v1194, 0.5
        %v1197 = vmul.f32 %v1193, 0.044715
        %v1198 = vmul.f32 %v1194, 0.044715
        %v1199 = vmul.f32 %v1197, %v1193
        %v1200 = vmul.f32 %v1198, %v1194
        %v1201 = vmul.f32 %v1199, %v1193
        %v1202 = vmul.f32 %v1200, %v1194
        %v1203 = vadd.f32 %v1193, %v1201
        %v1204 = vadd.f32 %v1194, %v1202
        %v1205 = vmul.f32 %v1203, 0.7978846
        %v1206 = vmul.f32 %v1204, 0.7978846
        %v1207 = vtanh.pop %v1205
        %v1208 = vtanh.pop %v1206
        %v1209 = vadd.f32 %v1207, 1.0
        %v1210 = vadd.f32 %v1208, 1.0
        %v1211 = vmul.f32 %v1195, %v1209
        %v1212 = vmul.f32 %v1196, %v1210
        %s1213 = scalar_lea.vmem %s362, 96
        %1214 = vst [vmem:[%s1213] sm:$0xff] %v1211
        %1215 = vst [vmem:[%s1213 + $0x8] sm:$0xff] %v1212
        %s1216 = sld [smem:[#allocation4 + $0x3]]
        %v1217 = vstv %s1216
        %v1218 = vadd.f32 %v1053, %v1217
        %v1219 = vadd.f32 %v1055, %v1217
        %s1220 = sld [smem:[#allocation2 + $0x180]]
        %v1221 = vstv %s1220
        %v1222 = vmul.f32 %v1221, %v1058
        %v1223 = vmul.f32 %v1221, %v1059
        %v1224 = vadd.f32 %v1218, %v1222
        %v1225 = vadd.f32 %v1219, %v1223
        %s1226 = sld [smem:[#allocation2 + $0x181]]
        %v1227 = vstv %s1226
        %v1228 = vmul.f32 %v1227, %v1061
        %v1229 = vmul.f32 %v1227, %v1062
        %v1230 = vadd.f32 %v1224, %v1228
        %v1231 = vadd.f32 %v1225, %v1229
        %s1232 = sld [smem:[#allocation2 + $0x182]]
        %v1233 = vstv %s1232
        %v1234 = vmul.f32 %v1233, %v1064
        %v1235 = vmul.f32 %v1233, %v1065
        %v1236 = vadd.f32 %v1230, %v1234
        %v1237 = vadd.f32 %v1231, %v1235
        %s1238 = sld [smem:[#allocation2 + $0x183]]
        %v1239 = vstv %s1238
        %v1240 = vmul.f32 %v1239, %v1067
        %v1241 = vmul.f32 %v1239, %v1068
        %v1242 = vadd.f32 %v1236, %v1240
        %v1243 = vadd.f32 %v1237, %v1241
        %v1244 = vmul.f32 %v1242, 0.5
        %v1245 = vmul.f32 %v1243, 0.5
        %v1246 = vmul.f32 %v1242, 0.044715
        %v1247 = vmul.f32 %v1243, 0.044715
        %v1248 = vmul.f32 %v1246, %v1242
        %v1249 = vmul.f32 %v1247, %v1243
        %v1250 = vmul.f32 %v1248, %v1242
        %v1251 = vmul.f32 %v1249, %v1243
        %v1252 = vadd.f32 %v1242, %v1250
        %v1253 = vadd.f32 %v1243, %v1251
        %v1254 = vmul.f32 %v1252, 0.7978846
        %v1255 = vmul.f32 %v1253, 0.7978846
        %v1256 = vtanh.pop %v1254
        %v1257 = vtanh.pop %v1255
        %v1258 = vadd.f32 %v1256, 1.0
        %v1259 = vadd.f32 %v1257, 1.0
        %v1260 = vmul.f32 %v1244, %v1258
        %v1261 = vmul.f32 %v1245, %v1259
        %s1262 = scalar_lea.vmem %s362, 112
        %1263 = vst [vmem:[%s1262] sm:$0xff] %v1260
        %1264 = vst [vmem:[%s1262 + $0x8] sm:$0xff] %v1261
        %s1265 = scalar_lea.vmem %s348, 64
        %v1266 = vld [vmem:[%s1265] sm:$0xff]
        %v1267 = vld [vmem:[%s1265 + $0x8] sm:$0xff]
        %v1268 = vld [vmem:[%s1265 + $0x10] sm:$0xff]
        %v1269 = vld [vmem:[%s1265 + $0x18] sm:$0xff]
        %v1270 = vld [vmem:[%s2] sm:$0xff]
        %v1271 = vld [vmem:[%s2 + $0x8] sm:$0xff]
        %v1272 = vld [vmem:[%s2 + $0x10] sm:$0xff]
        %v1273 = vld [vmem:[%s2 + $0x18] sm:$0xff]
        %v1274 = vld [vmem:[%s2 + $0x20] sm:$0xff]
        %v1275 = vld [vmem:[%s2 + $0x28] sm:$0xff]
        %v1276 = vld [vmem:[%s2 + $0x30] sm:$0xff]
        %v1277 = vld [vmem:[%s2 + $0x38] sm:$0xff]
        %v1278 = vld [vmem:[%s2 + $0x40] sm:$0xff]
        %v1279 = vld [vmem:[%s2 + $0x48] sm:$0xff]
        %v1280 = vld [vmem:[%s2 + $0x50] sm:$0xff]
        %v1281 = vld [vmem:[%s2 + $0x58] sm:$0xff]
        %v1282 = vld [vmem:[%s2 + $0x60] sm:$0xff]
        %v1283 = vld [vmem:[%s2 + $0x68] sm:$0xff]
        %v1284 = vld [vmem:[%s2 + $0x70] sm:$0xff]
        %v1285 = vld [vmem:[%s2 + $0x78] sm:$0xff]
        %s1286 = scalar_lea.vmem %s355, 64
        %v1287 = vld [vmem:[%s1286] sm:$0xff]
        %v1288 = vld [vmem:[%s1286 + $0x8] sm:$0xff]
        %v1289 = vld [vmem:[%s1286 + $0x10] sm:$0xff]
        %v1290 = vld [vmem:[%s1286 + $0x18] sm:$0xff]
        %v1291 = vld [vmem:[%s3] sm:$0xff]
        %v1292 = vld [vmem:[%s3 + $0x8] sm:$0xff]
        %v1293 = vld [vmem:[%s3 + $0x10] sm:$0xff]
        %v1294 = vld [vmem:[%s3 + $0x18] sm:$0xff]
        %v1295 = vld [vmem:[%s3 + $0x20] sm:$0xff]
        %v1296 = vld [vmem:[%s3 + $0x28] sm:$0xff]
        %v1297 = vld [vmem:[%s3 + $0x30] sm:$0xff]
        %v1298 = vld [vmem:[%s3 + $0x38] sm:$0xff]
        %v1299 = vld [vmem:[%s3 + $0x40] sm:$0xff]
        %v1300 = vld [vmem:[%s3 + $0x48] sm:$0xff]
        %v1301 = vld [vmem:[%s3 + $0x50] sm:$0xff]
        %v1302 = vld [vmem:[%s3 + $0x58] sm:$0xff]
        %v1303 = vld [vmem:[%s3 + $0x60] sm:$0xff]
        %v1304 = vld [vmem:[%s3 + $0x68] sm:$0xff]
        %v1305 = vld [vmem:[%s3 + $0x70] sm:$0xff]
        %v1306 = vld [vmem:[%s3 + $0x78] sm:$0xff]
        %v1308 = vsel %vm404, %v1287, 0
        %v1311 = vsel %vm404, %v1288, 0
        %v1314 = vsel %vm404, %v1289, 0
        %v1317 = vsel %vm404, %v1290, 0
        %1319 = vmatprep.subr.mxu0 %v1292
        %1320 = vmatpush1.msra.mxu0 %v1291
        %1321 = vmatprep.subr.mxu0 %v1294
        %1322 = vmatpush1.msra.mxu0 %v1293
        %1323 = vmatprep.subr.mxu0 %v1296
        %1324 = vmatpush1.msra.mxu0 %v1295
        %1325 = vmatprep.subr.mxu0 %v1298
        %1326 = vmatpush1.msra.mxu0 %v1297
        %1327 = vmatprep.subr.mxu0 %v1300
        %1328 = vmatpush1.msra.mxu0 %v1299
        %1329 = vmatprep.subr.mxu0 %v1302
        %1330 = vmatpush1.msra.mxu0 %v1301
        %1331 = vmatprep.subr.mxu0 %v1304
        %1332 = vmatpush1.msra.mxu0 %v1303
        %1333 = vmatprep.subr.mxu0 %v1306
        %1334 = vmatpush1.msra.mxu0 %v1305
        %1335 = vmatprep.subr.mxu0 0.0
        %1336 = vmatpush1.msra.mxu0 0.0
        %1337 = vmatprep.subr.mxu0 0.0
        %1338 = vmatpush1.msra.mxu0 0.0
        %1339 = vmatprep.subr.mxu0 0.0
        %1340 = vmatpush1.msra.mxu0 0.0
        %1341 = vmatprep.subr.mxu0 0.0
        %1342 = vmatpush1.msra.mxu0 0.0
        %1343 = vmatprep.subr.mxu0 0.0
        %1344 = vmatpush1.msra.mxu0 0.0
        %1345 = vmatprep.subr.mxu0 0.0
        %1346 = vmatpush1.msra.mxu0 0.0
        %1347 = vmatprep.subr.mxu0 0.0
        %1348 = vmatpush1.msra.mxu0 0.0
        %1349 = vmatprep.subr.mxu0 0.0
        %1350 = vmatpush1.msra.mxu0 0.0
        %1351 = vmatprep.subr.mxu0 0.0
        %1352 = vmatpush1.msra.mxu0 0.0
        %1353 = vmatprep.subr.mxu0 0.0
        %1354 = vmatpush1.msra.mxu0 0.0
        %1355 = vmatprep.subr.mxu0 0.0
        %1356 = vmatpush1.msra.mxu0 0.0
        %1357 = vmatprep.subr.mxu0 0.0
        %1358 = vmatpush1.msra.mxu0 0.0
        %1359 = vmatprep.subr.mxu0 0.0
        %1360 = vmatpush1.msra.mxu0 0.0
        %1361 = vmatprep.subr.mxu0 0.0
        %1362 = vmatpush1.msra.mxu0 0.0
        %1363 = vmatprep.subr.mxu0 0.0
        %1364 = vmatpush1.msra.mxu0 0.0
        %1365 = vmatprep.subr.mxu0 0.0
        %1366 = vmatpush1.msra.mxu0 0.0
        %1367 = vmatprep.subr.mxu0 0.0
        %1368 = vmatpush1.msra.mxu0 0.0
        %1369 = vmatprep.subr.mxu0 0.0
        %1370 = vmatpush1.msra.mxu0 0.0
        %1371 = vmatprep.subr.mxu0 0.0
        %1372 = vmatpush1.msra.mxu0 0.0
        %1373 = vmatprep.subr.mxu0 0.0
        %1374 = vmatpush1.msra.mxu0 0.0
        %1375 = vmatprep.subr.mxu0 0.0
        %1376 = vmatpush1.msra.mxu0 0.0
        %1377 = vmatprep.subr.mxu0 0.0
        %1378 = vmatpush1.msra.mxu0 0.0
        %1379 = vmatprep.subr.mxu0 0.0
        %1380 = vmatpush1.msra.mxu0 0.0
        %1381 = vmatprep.subr.mxu0 0.0
        %1382 = vmatpush1.msra.mxu0 0.0
        %1383 = vmatprep.mubr.f32.mxu0 0.0
        %1384 = vmatmul.mubr.f32.gmra.mrb[0].mxu0 %v1308
        %v1385 = vpop.f32.mrb[0].mxu0
        %v1386 = vadd.f32 0.0, %v1385
        %v1387 = vpop.f32.mrb[0].mxu0
        %v1388 = vadd.f32 0.0, %v1387
        %1389 = vmatprep.mubr.f32.mxu0 0.0
        %1390 = vmatmul.mubr.f32.gmra.mrb[0].mxu0 %v1311
        %v1391 = vpop.f32.mrb[0].mxu0
        %v1392 = vadd.f32 0.0, %v1391
        %v1393 = vpop.f32.mrb[0].mxu0
        %v1394 = vadd.f32 0.0, %v1393
        %1395 = vmatprep.mubr.f32.mxu0 0.0
        %1396 = vmatmul.mubr.f32.gmra.mrb[0].mxu0 %v1314
        %v1397 = vpop.f32.mrb[0].mxu0
        %v1398 = vadd.f32 0.0, %v1397
        %v1399 = vpop.f32.mrb[0].mxu0
        %v1400 = vadd.f32 0.0, %v1399
        %1401 = vmatprep.mubr.f32.mxu0 0.0
        %1402 = vmatmul.mubr.f32.gmra.mrb[0].mxu0 %v1317
        %v1403 = vpop.f32.mrb[0].mxu0
        %v1404 = vadd.f32 0.0, %v1403
        %v1405 = vpop.f32.mrb[0].mxu0
        %v1406 = vadd.f32 0.0, %v1405
        %1407 = vdwg.mxu0
        %v1409 = vsel %vm404, %v1266, 0
        %v1412 = vsel %vm404, %v1267, 0
        %v1415 = vsel %vm404, %v1268, 0
        %v1418 = vsel %vm404, %v1269, 0
        %1420 = vmatprep.subr.mxu0 %v1271
        %1421 = vmatpush1.msra.mxu0 %v1270
        %1422 = vmatprep.subr.mxu0 %v1273
        %1423 = vmatpush1.msra.mxu0 %v1272
        %1424 = vmatprep.subr.mxu0 %v1275
        %1425 = vmatpush1.msra.mxu0 %v1274
        %1426 = vmatprep.subr.mxu0 %v1277
        %1427 = vmatpush1.msra.mxu0 %v1276
        %1428 = vmatprep.subr.mxu0 %v1279
        %1429 = vmatpush1.msra.mxu0 %v1278
        %1430 = vmatprep.subr.mxu0 %v1281
        %1431 = vmatpush1.msra.mxu0 %v1280
        %1432 = vmatprep.subr.mxu0 %v1283
        %1433 = vmatpush1.msra.mxu0 %v1282
        %1434 = vmatprep.subr.mxu0 %v1285
        %1435 = vmatpush1.msra.mxu0 %v1284
        %1436 = vmatprep.subr.mxu0 0.0
        %1437 = vmatpush1.msra.mxu0 0.0
        %1438 = vmatprep.subr.mxu0 0.0
        %1439 = vmatpush1.msra.mxu0 0.0
        %1440 = vmatprep.subr.mxu0 0.0
        %1441 = vmatpush1.msra.mxu0 0.0
        %1442 = vmatprep.subr.mxu0 0.0
        %1443 = vmatpush1.msra.mxu0 0.0
        %1444 = vmatprep.subr.mxu0 0.0
        %1445 = vmatpush1.msra.mxu0 0.0
        %1446 = vmatprep.subr.mxu0 0.0
        %1447 = vmatpush1.msra.mxu0 0.0
        %1448 = vmatprep.subr.mxu0 0.0
        %1449 = vmatpush1.msra.mxu0 0.0
        %1450 = vmatprep.subr.mxu0 0.0
        %1451 = vmatpush1.msra.mxu0 0.0
        %1452 = vmatprep.subr.mxu0 0.0
        %1453 = vmatpush1.msra.mxu0 0.0
        %1454 = vmatprep.subr.mxu0 0.0
        %1455 = vmatpush1.msra.mxu0 0.0
        %1456 = vmatprep.subr.mxu0 0.0
        %1457 = vmatpush1.msra.mxu0 0.0
        %1458 = vmatprep.subr.mxu0 0.0
        %1459 = vmatpush1.msra.mxu0 0.0
        %1460 = vmatprep.subr.mxu0 0.0
        %1461 = vmatpush1.msra.mxu0 0.0
        %1462 = vmatprep.subr.mxu0 0.0
        %1463 = vmatpush1.msra.mxu0 0.0
        %1464 = vmatprep.subr.mxu0 0.0
        %1465 = vmatpush1.msra.mxu0 0.0
        %1466 = vmatprep.subr.mxu0 0.0
        %1467 = vmatpush1.msra.mxu0 0.0
        %1468 = vmatprep.subr.mxu0 0.0
        %1469 = vmatpush1.msra.mxu0 0.0
        %1470 = vmatprep.subr.mxu0 0.0
        %1471 = vmatpush1.msra.mxu0 0.0
        %1472 = vmatprep.subr.mxu0 0.0
        %1473 = vmatpush1.msra.mxu0 0.0
        %1474 = vmatprep.subr.mxu0 0.0
        %1475 = vmatpush1.msra.mxu0 0.0
        %1476 = vmatprep.subr.mxu0 0.0
        %1477 = vmatpush1.msra.mxu0 0.0
        %1478 = vmatprep.subr.mxu0 0.0
        %1479 = vmatpush1.msra.mxu0 0.0
        %1480 = vmatprep.subr.mxu0 0.0
        %1481 = vmatpush1.msra.mxu0 0.0
        %1482 = vmatprep.subr.mxu0 0.0
        %1483 = vmatpush1.msra.mxu0 0.0
        %1484 = vmatprep.mubr.f32.mxu0 0.0
        %1485 = vmatmul.mubr.f32.gmra.mrb[0].mxu0 %v1409
        %v1486 = vpop.f32.mrb[0].mxu0
        %v1487 = vadd.f32 %v1386, %v1486
        %v1488 = vpop.f32.mrb[0].mxu0
        %v1489 = vadd.f32 %v1388, %v1488
        %1490 = vmatprep.mubr.f32.mxu0 0.0
        %1491 = vmatmul.mubr.f32.gmra.mrb[0].mxu0 %v1412
        %v1492 = vpop.f32.mrb[0].mxu0
        %v1493 = vadd.f32 %v1392, %v1492
        %v1494 = vpop.f32.mrb[0].mxu0
        %v1495 = vadd.f32 %v1394, %v1494
        %1496 = vmatprep.mubr.f32.mxu0 0.0
        %1497 = vmatmul.mubr.f32.gmra.mrb[0].mxu0 %v1415
        %v1498 = vpop.f32.mrb[0].mxu0
        %v1499 = vadd.f32 %v1398, %v1498
        %v1500 = vpop.f32.mrb[0].mxu0
        %v1501 = vadd.f32 %v1400, %v1500
        %1502 = vmatprep.mubr.f32.mxu0 0.0
        %1503 = vmatmul.mubr.f32.gmra.mrb[0].mxu0 %v1418
        %v1504 = vpop.f32.mrb[0].mxu0
        %v1505 = vadd.f32 %v1404, %v1504
        %v1506 = vpop.f32.mrb[0].mxu0
        %v1507 = vadd.f32 %v1406, %v1506
        %1508 = vdwg.mxu0
        %s1509 = scalar_lea.vmem %s341, 128
        %v1510 = vld [vmem:[%s1509] sm:$0xff]
        %v1511 = vld [vmem:[%s1509 + $0x8] sm:$0xff]
        %s1512 = scalar_lea.vmem %s341, 144
        %v1513 = vld [vmem:[%s1512] sm:$0xff]
        %v1514 = vld [vmem:[%s1512 + $0x8] sm:$0xff]
        %s1515 = scalar_lea.vmem %s341, 160
        %v1516 = vld [vmem:[%s1515] sm:$0xff]
        %v1517 = vld [vmem:[%s1515 + $0x8] sm:$0xff]
        %s1518 = scalar_lea.vmem %s341, 176
        %v1519 = vld [vmem:[%s1518] sm:$0xff]
        %v1520 = vld [vmem:[%s1518 + $0x8] sm:$0xff]
        %s1521 = sld [smem:[#allocation4]]
        %v1522 = vstv %s1521
        %v1523 = vadd.f32 %v1487, %v1522
        %v1524 = vadd.f32 %v1489, %v1522
        %s1525 = sld [smem:[#allocation2]]
        %v1526 = vstv %s1525
        %v1527 = vmul.f32 %v1526, %v1510
        %v1528 = vmul.f32 %v1526, %v1511
        %v1529 = vadd.f32 %v1523, %v1527
        %v1530 = vadd.f32 %v1524, %v1528
        %s1531 = sld [smem:[#allocation2 + $0x1]]
        %v1532 = vstv %s1531
        %v1533 = vmul.f32 %v1532, %v1513
        %v1534 = vmul.f32 %v1532, %v1514
        %v1535 = vadd.f32 %v1529, %v1533
        %v1536 = vadd.f32 %v1530, %v1534
        %s1537 = sld [smem:[#allocation2 + $0x2]]
        %v1538 = vstv %s1537
        %v1539 = vmul.f32 %v1538, %v1516
        %v1540 = vmul.f32 %v1538, %v1517
        %v1541 = vadd.f32 %v1535, %v1539
        %v1542 = vadd.f32 %v1536, %v1540
        %s1543 = sld [smem:[#allocation2 + $0x3]]
        %v1544 = vstv %s1543
        %v1545 = vmul.f32 %v1544, %v1519
        %v1546 = vmul.f32 %v1544, %v1520
        %v1547 = vadd.f32 %v1541, %v1545
        %v1548 = vadd.f32 %v1542, %v1546
        %v1549 = vmul.f32 %v1547, 0.5
        %v1550 = vmul.f32 %v1548, 0.5
        %v1551 = vmul.f32 %v1547, 0.044715
        %v1552 = vmul.f32 %v1548, 0.044715
        %v1553 = vmul.f32 %v1551, %v1547
        %v1554 = vmul.f32 %v1552, %v1548
        %v1555 = vmul.f32 %v1553, %v1547
        %v1556 = vmul.f32 %v1554, %v1548
        %v1557 = vadd.f32 %v1547, %v1555
        %v1558 = vadd.f32 %v1548, %v1556
        %v1559 = vmul.f32 %v1557, 0.7978846
        %v1560 = vmul.f32 %v1558, 0.7978846
        %v1561 = vtanh.pop %v1559
        %v1562 = vtanh.pop %v1560
        %v1563 = vadd.f32 %v1561, 1.0
        %v1564 = vadd.f32 %v1562, 1.0
        %v1565 = vmul.f32 %v1549, %v1563
        %v1566 = vmul.f32 %v1550, %v1564
        %s1567 = scalar_lea.vmem %s362, 128
        %1568 = vst [vmem:[%s1567] sm:$0xff] %v1565
        %1569 = vst [vmem:[%s1567 + $0x8] sm:$0xff] %v1566
        %s1570 = sld [smem:[#allocation4 + $0x1]]
        %v1571 = vstv %s1570
        %v1572 = vadd.f32 %v1493, %v1571
        %v1573 = vadd.f32 %v1495, %v1571
        %s1574 = sld [smem:[#allocation2 + $0x80]]
        %v1575 = vstv %s1574
        %v1576 = vmul.f32 %v1575, %v1510
        %v1577 = vmul.f32 %v1575, %v1511
        %v1578 = vadd.f32 %v1572, %v1576
        %v1579 = vadd.f32 %v1573, %v1577
        %s1580 = sld [smem:[#allocation2 + $0x81]]
        %v1581 = vstv %s1580
        %v1582 = vmul.f32 %v1581, %v1513
        %v1583 = vmul.f32 %v1581, %v1514
        %v1584 = vadd.f32 %v1578, %v1582
        %v1585 = vadd.f32 %v1579, %v1583
        %s1586 = sld [smem:[#allocation2 + $0x82]]
        %v1587 = vstv %s1586
        %v1588 = vmul.f32 %v1587, %v1516
        %v1589 = vmul.f32 %v1587, %v1517
        %v1590 = vadd.f32 %v1584, %v1588
        %v1591 = vadd.f32 %v1585, %v1589
        %s1592 = sld [smem:[#allocation2 + $0x83]]
        %v1593 = vstv %s1592
        %v1594 = vmul.f32 %v1593, %v1519
        %v1595 = vmul.f32 %v1593, %v1520
        %v1596 = vadd.f32 %v1590, %v1594
        %v1597 = vadd.f32 %v1591, %v1595
        %v1598 = vmul.f32 %v1596, 0.5
        %v1599 = vmul.f32 %v1597, 0.5
        %v1600 = vmul.f32 %v1596, 0.044715
        %v1601 = vmul.f32 %v1597, 0.044715
        %v1602 = vmul.f32 %v1600, %v1596
        %v1603 = vmul.f32 %v1601, %v1597
        %v1604 = vmul.f32 %v1602, %v1596
        %v1605 = vmul.f32 %v1603, %v1597
        %v1606 = vadd.f32 %v1596, %v1604
        %v1607 = vadd.f32 %v1597, %v1605
        %v1608 = vmul.f32 %v1606, 0.7978846
        %v1609 = vmul.f32 %v1607, 0.7978846
        %v1610 = vtanh.pop %v1608
        %v1611 = vtanh.pop %v1609
        %v1612 = vadd.f32 %v1610, 1.0
        %v1613 = vadd.f32 %v1611, 1.0
        %v1614 = vmul.f32 %v1598, %v1612
        %v1615 = vmul.f32 %v1599, %v1613
        %s1616 = scalar_lea.vmem %s362, 144
        %1617 = vst [vmem:[%s1616] sm:$0xff] %v1614
        %1618 = vst [vmem:[%s1616 + $0x8] sm:$0xff] %v1615
        %s1619 = sld [smem:[#allocation4 + $0x2]]
        %v1620 = vstv %s1619
        %v1621 = vadd.f32 %v1499, %v1620
        %v1622 = vadd.f32 %v1501, %v1620
        %s1623 = sld [smem:[#allocation2 + $0x100]]
        %v1624 = vstv %s1623
        %v1625 = vmul.f32 %v1624, %v1510
        %v1626 = vmul.f32 %v1624, %v1511
        %v1627 = vadd.f32 %v1621, %v1625
        %v1628 = vadd.f32 %v1622, %v1626
        %s1629 = sld [smem:[#allocation2 + $0x101]]
        %v1630 = vstv %s1629
        %v1631 = vmul.f32 %v1630, %v1513
        %v1632 = vmul.f32 %v1630, %v1514
        %v1633 = vadd.f32 %v1627, %v1631
        %v1634 = vadd.f32 %v1628, %v1632
        %s1635 = sld [smem:[#allocation2 + $0x102]]
        %v1636 = vstv %s1635
        %v1637 = vmul.f32 %v1636, %v1516
        %v1638 = vmul.f32 %v1636, %v1517
        %v1639 = vadd.f32 %v1633, %v1637
        %v1640 = vadd.f32 %v1634, %v1638
        %s1641 = sld [smem:[#allocation2 + $0x103]]
        %v1642 = vstv %s1641
        %v1643 = vmul.f32 %v1642, %v1519
        %v1644 = vmul.f32 %v1642, %v1520
        %v1645 = vadd.f32 %v1639, %v1643
        %v1646 = vadd.f32 %v1640, %v1644
        %v1647 = vmul.f32 %v1645, 0.5
        %v1648 = vmul.f32 %v1646, 0.5
        %v1649 = vmul.f32 %v1645, 0.044715
        %v1650 = vmul.f32 %v1646, 0.044715
        %v1651 = vmul.f32 %v1649, %v1645
        %v1652 = vmul.f32 %v1650, %v1646
        %v1653 = vmul.f32 %v1651, %v1645
        %v1654 = vmul.f32 %v1652, %v1646
        %v1655 = vadd.f32 %v1645, %v1653
        %v1656 = vadd.f32 %v1646, %v1654
        %v1657 = vmul.f32 %v1655, 0.7978846
        %v1658 = vmul.f32 %v1656, 0.7978846
        %v1659 = vtanh.pop %v1657
        %v1660 = vtanh.pop %v1658
        %v1661 = vadd.f32 %v1659, 1.0
        %v1662 = vadd.f32 %v1660, 1.0
        %v1663 = vmul.f32 %v1647, %v1661
        %v1664 = vmul.f32 %v1648, %v1662
        %s1665 = scalar_lea.vmem %s362, 160
        %1666 = vst [vmem:[%s1665] sm:$0xff] %v1663
        %1667 = vst [vmem:[%s1665 + $0x8] sm:$0xff] %v1664
        %s1668 = sld [smem:[#allocation4 + $0x3]]
        %v1669 = vstv %s1668
        %v1670 = vadd.f32 %v1505, %v1669
        %v1671 = vadd.f32 %v1507, %v1669
        %s1672 = sld [smem:[#allocation2 + $0x180]]
        %v1673 = vstv %s1672
        %v1674 = vmul.f32 %v1673, %v1510
        %v1675 = vmul.f32 %v1673, %v1511
        %v1676 = vadd.f32 %v1670, %v1674
        %v1677 = vadd.f32 %v1671, %v1675
        %s1678 = sld [smem:[#allocation2 + $0x181]]
        %v1679 = vstv %s1678
        %v1680 = vmul.f32 %v1679, %v1513
        %v1681 = vmul.f32 %v1679, %v1514
        %v1682 = vadd.f32 %v1676, %v1680
        %v1683 = vadd.f32 %v1677, %v1681
        %s1684 = sld [smem:[#allocation2 + $0x182]]
        %v1685 = vstv %s1684
        %v1686 = vmul.f32 %v1685, %v1516
        %v1687 = vmul.f32 %v1685, %v1517
        %v1688 = vadd.f32 %v1682, %v1686
        %v1689 = vadd.f32 %v1683, %v1687
        %s1690 = sld [smem:[#allocation2 + $0x183]]
        %v1691 = vstv %s1690
        %v1692 = vmul.f32 %v1691, %v1519
        %v1693 = vmul.f32 %v1691, %v1520
        %v1694 = vadd.f32 %v1688, %v1692
        %v1695 = vadd.f32 %v1689, %v1693
        %v1696 = vmul.f32 %v1694, 0.5
        %v1697 = vmul.f32 %v1695, 0.5
        %v1698 = vmul.f32 %v1694, 0.044715
        %v1699 = vmul.f32 %v1695, 0.044715
        %v1700 = vmul.f32 %v1698, %v1694
        %v1701 = vmul.f32 %v1699, %v1695
        %v1702 = vmul.f32 %v1700, %v1694
        %v1703 = vmul.f32 %v1701, %v1695
        %v1704 = vadd.f32 %v1694, %v1702
        %v1705 = vadd.f32 %v1695, %v1703
        %v1706 = vmul.f32 %v1704, 0.7978846
        %v1707 = vmul.f32 %v1705, 0.7978846
        %v1708 = vtanh.pop %v1706
        %v1709 = vtanh.pop %v1707
        %v1710 = vadd.f32 %v1708, 1.0
        %v1711 = vadd.f32 %v1709, 1.0
        %v1712 = vmul.f32 %v1696, %v1710
        %v1713 = vmul.f32 %v1697, %v1711
        %s1714 = scalar_lea.vmem %s362, 176
        %1715 = vst [vmem:[%s1714] sm:$0xff] %v1712
        %1716 = vst [vmem:[%s1714 + $0x8] sm:$0xff] %v1713
        %s1717 = smul.u32 3, %s20
        %p1718 = scmp.lt.s32.totalorder %s1717, 5
        %s1719 = scalar_select %p1718, %s1717, 5
        %s1720 = smul.addr %s1719, 8
        %s1721 = smul.addr %s1720, 8
        %s1722 = scalar_lea.vmem %s7, %s1721
        // Predicated region
        $region57: #{fno_block_forward.3} parent=47 // pred_check
          %p1723 = pneg %p200
        $region58: #{fno_block_forward.3} parent=47 // pred_check_branch
          %1725 = sbr.rel (%p1723) target = $region60
        $region59: #{fno_block_forward.3} parent=47 // pred_region
          %s1726 = smul.u32 3, %s20
        $region60: #{fno_block_forward.3} parent=47 // pred_fallthru
          _
      $region48: #{fno_block_forward.3} parent=5 // pred_fallthru
        _
      %p1727 = scmp.le.s32.totalorder 2, %s15
      // Predicated region
      $region61: #{fno_block_forward.3} parent=5 // pred_check
        %p1728 = pneg %p1727
      $region62: #{fno_block_forward.3} parent=5 // pred_check_branch
        %1730 = sbr.rel (%p1728) target = $region64
      $region63: #{fno_block_forward.3} parent=5 // pred_region
        %s1731 = ssub.s32 %s15, 2
        // Predicated region
        $region65: #{fno_block_forward.3} parent=63 // pred_check
          %p1732 = pneg %p206
        $region66: #{fno_block_forward.3} parent=63 // pred_check_branch
          %1734 = sbr.rel (%p1732) target = $region68
        $region67: #{fno_block_forward.3} parent=63 // pred_region
          %s1735 = smul.u32 3, %s21
          %p1736 = scmp.lt.s32.totalorder %s1735, 5
          %s1737 = scalar_select %p1736, %s1735, 5
          %s1738 = smul.addr %s1737, 8
          %s1739 = smul.addr %s1738, 8
          %s1740 = scalar_lea.vmem %s7, %s1739
        $region68: #{fno_block_forward.3} parent=63 // pred_fallthru
          _
      $region64: #{fno_block_forward.3} parent=5 // pred_fallthru
        _
    $region6: #{fno_block_forward.3} parent=1 // loop_footer
      %s19 = sadd.s32 1, %s15
    $region7: #{fno_block_forward.3} parent=1 // loop_footer_branch
      %14 = sbr.rel target = $region3
    $region8: #{fno_block_forward.3} parent=1 // loop_exit
      _
    %1741 = vsyncpa [#allocation3], 1
    %s1742 = scalar_lea.sflag [#allocation3], 1
    %1743 = vsyncpa %s1742, 1
    %1744 = vsyncpa [#allocation5], 1

</llo_original>
